<compile_context>
chip_gen: v6e
topology: v6e:2x2x1
jax: 0.10.0
libtpu: 0.0.40
codegen_flags: <defaults>
</compile_context>

<pallas_src>
import math

import numpy as np
import jax
import jax.numpy as jnp
from jax import lax
from jax.experimental import pallas as pl
from jax.experimental.pallas import tpu as pltpu

HIDDEN = 128     # hidden_dim (module default is 300; kept lane-aligned & small)
NUM_GCN = 3
PAD_IN = 8       # coords (N,2) / edge_attr (E,1) zero-padded to this width
OUT_PAD = 128    # lane-dense output width (real score in column 0)


def tspgnn_kernel(coords_ref, eattr_ref, row_ref, col_ref, colT_ref,
                  win_ref, bin_ref, wedge_ref, bedge_ref,
                  wt_ref, bt_ref, gw_ref, gb_ref, gew_ref, geb_ref,
                  w1_ref, b1_ref, w2_ref, b2_ref,
                  out_ref):
    N = coords_ref.shape[0]
    E = row_ref.shape[0]
    H = win_ref.shape[1]
    f32 = jnp.float32
    bf16 = jnp.bfloat16

    def mm(a, b):
        # MXU matmul: operands are already bf16, accumulate in f32.
        return jnp.dot(a, b, preferred_element_type=f32)

    # ---- input / edge linear projections (inputs arrive bf16) -------------
    x = mm(coords_ref[...], win_ref[...]) + bin_ref[...]        # (N, H) f32
    ea = mm(eattr_ref[...], wedge_ref[...]) + bedge_ref[...]    # (E, H) f32

    # ---- one-hot selectors, built ONCE in bf16 -----------------------------
    node_ids = lax.broadcasted_iota(jnp.int32, (E, N), 1)
    col_mask = node_ids == col_ref[...]                         # (E, N) bool (softmax)
    Rf = (node_ids == row_ref[...]).astype(bf16)                # x[row] == Rf @ x
    Cf = col_mask.astype(bf16)                                  # x[col] == Cf @ x
    Df = Rf - Cf                                                # exact in bf16 (0 / +-1)
    node_ids_T = lax.broadcasted_iota(jnp.int32, (N, E), 0)
    CfT = (node_ids_T == colT_ref[...]).astype(bf16)            # (N, E): index_add == CfT @ m

    # ---- TransformerConv (heads=1): fused q|k|v|skip projection -----------
    qkvs = mm(x.astype(bf16), wt_ref[...]) + bt_ref[...]        # (N, 4H) f32
    qkv_b = qkvs[:, 0:3 * H].astype(bf16)                       # one cast for q|k|v
    skip = qkvs[:, 3 * H:4 * H]                                 # f32 residual branch

    q_i = mm(Cf, qkv_b[:, 0:H])                                 # (E, H)  target query
    kv_j = mm(Rf, qkv_b[:, H:3 * H])                            # (E, 2H) source key|value
    k_j = kv_j[:, :H]
    v_j = kv_j[:, H:]
    logits = jnp.sum(q_i * k_j, axis=-1, keepdims=True) * (1.0 / math.sqrt(H))

    # segment softmax over incoming edges of each target node (f32, VPU
    # selects + XLU reductions; lane waste at N=16 accepted at toy scale).
    neg = jnp.float32(-1e30)
    node_max = jnp.max(jnp.where(col_mask, logits, neg), axis=0, keepdims=True)    # (1, N)
    edge_max = jnp.max(jnp.where(col_mask, node_max, neg), axis=1, keepdims=True)  # (E, 1)
    exp_l = jnp.exp(logits - edge_max)                                             # (E, 1)
    node_den = jnp.sum(jnp.where(col_mask, exp_l, 0.0), axis=0, keepdims=True)     # (1, N)
    edge_den = jnp.sum(jnp.where(col_mask, node_den, 0.0), axis=1, keepdims=True)  # (E, 1)
    alpha = exp_l * pl.reciprocal(edge_den, approx=True)

    x = mm(CfT, (alpha * v_j).astype(bf16)) + skip              # (N, H) f32

    # ---- Gated GCN layers --------------------------------------------------
    # ea is constant across layers -> all three E-projections hoisted out.
    ee_all = mm(ea.astype(bf16), gew_ref[...]) + geb_ref[...]   # (E, 3H) f32
    for l in range(NUM_GCN):
        # fused A|B|C|res projection; static Ref slices of the packed weights.
        proj = mm(x.astype(bf16), gw_ref[l * H:(l + 1) * H, :]) + gb_ref[l:l + 1, :]  # (N,4H) f32
        proj_b = proj[:, 0:3 * H].astype(bf16)                  # one cast for A|B|C
        Rx = proj[:, 3 * H:4 * H]                               # f32 residual branch
        ab_r = mm(Rf, proj_b[:, 0:2 * H])                       # (E, 2H): A(x)[row] | B(x)[row]
        Ax_r = ab_r[:, :H]
        Bx_r = ab_r[:, H:]
        Cx_c = mm(Cf, proj_b[:, 2 * H:3 * H])                   # (E, H): C(x)[col]
        Ee = ee_all[:, l * H:(l + 1) * H]                       # (E, H)
        m = jax.nn.sigmoid(Bx_r + Cx_c + Ee) * Ax_r             # (E, H) f32
        x = jnp.maximum(mm(CfT, m.astype(bf16)) + Rx, 0.0)      # index_add + res + relu

    # ---- edge MLP head ------------------------------------------------------
    # |x[row]-x[col]| via the +-1 selector; note x is bf16-rounded before the
    # subtraction (same as subtracting two bf16 gathered rows) -- within the
    # 5e-2 tolerance used here.
    ef = jnp.abs(mm(Df, x.astype(bf16)))                        # (E, H)
    h = jnp.maximum(mm(ef.astype(bf16), w1_ref[...]) + b1_ref[...], 0.0)
    out_ref[...] = mm(h.astype(bf16), w2_ref[...]) + b2_ref[...]   # (E, 128) lane-dense


def pack_params(p):
    """One-time packing of PyTorch-layout params into the fused kernel layout."""
    H = p["Win"].shape[1]
    f32 = jnp.float32
    bf16 = jnp.bfloat16

    Win = jnp.zeros((PAD_IN, H), f32).at[:p["Win"].shape[0]].set(p["Win"]).astype(bf16)
    Wedge = jnp.zeros((PAD_IN, H), f32).at[:p["Wedge"].shape[0]].set(p["Wedge"]).astype(bf16)

    # TransformerConv: fused (H, 4H) weight, columns [q | k | v | skip].
    Wt = jnp.concatenate([p["Wq"], p["Wk"], p["Wv"], p["Wskip"]], axis=1).astype(bf16)
    bt = jnp.concatenate([p["bq"], p["bk"], p["bv"], p["bskip"]], axis=1)

    # GatedGCN: per layer fused (H, 4H) [A|B|C|res] stacked on rows; E-weights
    # packed side-by-side as (H, 3H) so the edge projection is hoisted once.
    gw_rows, gb_rows, gew_cols, geb_cols = [], [], [], []
    for (A, B, Cw, Ew, Rw, bA, bB, bC, bE, bR) in p["gcn"]:
        gw_rows.append(jnp.concatenate([A, B, Cw, Rw], axis=1))
        gb_rows.append(jnp.concatenate([bA, bB, bC, bR], axis=1))
        gew_cols.append(Ew)
        geb_cols.append(bE)

    packed = dict(
        Win=Win, b_in=p["b_in"], Wedge=Wedge, b_edge=p["b_edge"],
        Wt=Wt, bt=bt,
        Gw=jnp.concatenate(gw_rows, axis=0).astype(bf16),       # (3H, 4H)
        Gb=jnp.concatenate(gb_rows, axis=0),                    # (3, 4H)
        Gew=jnp.concatenate(gew_cols, axis=1).astype(bf16),     # (H, 3H)
        Geb=jnp.concatenate(geb_cols, axis=1),                  # (1, 3H)
        W1=p["W1"].astype(bf16), b1=p["b1"],
        # lane-dense head: pad the (H, 1) output projection to 128 lanes.
        W2=jnp.zeros((H, OUT_PAD), f32).at[:, :1].set(p["W2"]).astype(bf16),
        b2=jnp.zeros((1, OUT_PAD), f32).at[:, :1].set(p["b2"]),
    )
    # materialize now so packing never reruns per call
    return jax.tree_util.tree_map(jnp.asarray, packed)


def _cost_estimate(N, E, H, args):
    flops = 2 * (N * PAD_IN * H + E * PAD_IN * H                 # input / edge lin
                 + N * H * 4 * H                                 # qkv|skip
                 + E * N * 3 * H + N * E * H                     # attn gathers + scatter
                 + E * H * 3 * H                                 # hoisted edge proj
                 + NUM_GCN * (N * H * 4 * H + E * N * 3 * H + N * E * H)
                 + E * N * H                                     # |x[row]-x[col]| gather
                 + E * H * H + E * H * OUT_PAD)                  # edge MLP
    transcendentals = 2 * E + NUM_GCN * E * H                    # exp, recip, sigmoids
    bytes_accessed = sum(a.size * a.dtype.itemsize for a in args) + E * OUT_PAD * 4
    return pl.CostEstimate(flops=flops, transcendentals=transcendentals,
                           bytes_accessed=bytes_accessed)


@jax.jit
def tspgnn_forward(coords, edge_attr, row, col, packed):
    """Per-call path: pad tiny inputs, launch the fused kernel."""
    N = coords.shape[0]
    E = row.shape[0]
    H = packed["Win"].shape[1]
    bf16 = jnp.bfloat16

    coords_p = jnp.zeros((N, PAD_IN), bf16).at[:, :coords.shape[1]].set(coords.astype(bf16))
    eattr_p = jnp.zeros((E, PAD_IN), bf16).at[:, :edge_attr.shape[1]].set(edge_attr.astype(bf16))
    row2 = row.reshape(E, 1).astype(jnp.int32)
    col2 = col.reshape(E, 1).astype(jnp.int32)
    colT = col.reshape(1, E).astype(jnp.int32)

    args = (coords_p, eattr_p, row2, col2, colT,
            packed["Win"], packed["b_in"], packed["Wedge"], packed["b_edge"],
            packed["Wt"], packed["bt"], packed["Gw"], packed["Gb"],
            packed["Gew"], packed["Geb"],
            packed["W1"], packed["b1"], packed["W2"], packed["b2"])

    out = pl.pallas_call(
        tspgnn_kernel,
        out_shape=jax.ShapeDtypeStruct((E, OUT_PAD), jnp.float32),
        in_specs=[pl.BlockSpec(memory_space=pltpu.MemorySpace.VMEM)] * len(args),
        out_specs=pl.BlockSpec(memory_space=pltpu.MemorySpace.VMEM),
        cost_estimate=_cost_estimate(N, E, H, args),
    )(*args)
    return out[:, 0]


def ref_forward(coords, edge_attr, row, col, params):
    """Pure-JAX f32 reference with scatter ops (matches PyTorch semantics)."""
    p = params
    x = coords @ p["Win"] + p["b_in"]
    ea = edge_attr @ p["Wedge"] + p["b_edge"]
    N, H = x.shape
    q = x @ p["Wq"] + p["bq"]
    k = x @ p["Wk"] + p["bk"]
    v = x @ p["Wv"] + p["bv"]
    skip = x @ p["Wskip"] + p["bskip"]
    logits = jnp.sum(q[col] * k[row], -1) / math.sqrt(H)
    node_max = jnp.full((N,), -1e30, jnp.float32).at[col].max(logits)
    e = jnp.exp(logits - node_max[col])
    den = jnp.zeros((N,), jnp.float32).at[col].add(e)
    alpha = e / den[col]
    x = jnp.zeros_like(x).at[col].add(alpha[:, None] * v[row]) + skip
    for (A, B, Cw, Ew, Rw, bA, bB, bC, bE, bR) in p["gcn"]:
        Ax = x @ A + bA
        Bx = x @ B + bB
        Cx = x @ Cw + bC
        Ee = ea @ Ew + bE
        Rx = x @ Rw + bR
        m = Bx[row] + Cx[col] + Ee
        m = jax.nn.sigmoid(m) * Ax[row]
        x = jax.nn.relu(jnp.zeros_like(x).at[col].add(m) + Rx)
    ef = jnp.abs(x[row] - x[col])
    h = jax.nn.relu(ef @ p["W1"] + p["b1"])
    return (h @ p["W2"] + p["b2"])[:, 0]


if __name__ == "__main__":
    H = HIDDEN
    master = jax.random.PRNGKey(0)
    k_data, k_param = jax.random.split(master)

    # ---------------- deterministic parameters (synthetic init) ------------
    _pk = iter(jax.random.split(k_param, 64))

    def lin(fin, fout):
        kw, kb = jax.random.split(next(_pk))
        w = jax.random.normal(kw, (fin, fout), jnp.float32) * (1.0 / math.sqrt(fin))
        b = jax.random.normal(kb, (1, fout), jnp.float32) * 0.01
        return w, b

    Win, b_in = lin(2, H)            # input_lin
    Wedge, b_edge = lin(1, H)        # edge_lin
    Wq, bq = lin(H, H)               # TransformerConv lin_query
    Wk, bk = lin(H, H)               # lin_key
    Wv, bv = lin(H, H)               # lin_value
    Wskip, bskip = lin(H, H)         # lin_skip
    gcn = []
    for _ in range(NUM_GCN):         # GatedGCN: A, B, C, E, res per layer
        A, bA = lin(H, H)
        B, bB = lin(H, H)
        Cw, bC = lin(H, H)
        Ew, bE = lin(H, H)
        Rw, bR = lin(H, H)
        gcn.append((A, B, Cw, Ew, Rw, bA, bB, bC, bE, bR))
    W1, b1 = lin(H, H)               # edge_mlp[0]
    W2, b2 = lin(H, 1)               # edge_mlp[2]

    params = dict(Win=Win, b_in=b_in, Wedge=Wedge, b_edge=b_edge,
                  Wq=Wq, bq=bq, Wk=Wk, bk=bk, Wv=Wv, bv=bv,
                  Wskip=Wskip, bskip=bskip, gcn=gcn,
                  W1=W1, b1=b1, W2=W2, b2=b2)

    # one-time packing (off the per-call path)
    packed = jax.block_until_ready(pack_params(params))

    # ---------------- deterministic graph data ------------------------------
    N = 16
    coords = jax.random.uniform(k_data, (N, 2), jnp.float32)     # data.x : (N, 2)
    src, dst = [], []
    for i in range(N):
        for d in (1, 2, N - 1, N - 2):                           # 4 neighbours each
            src.append(i)
            dst.append((i + d) % N)
    row = jnp.array(src, dtype=jnp.int32)                        # edge_index[0]
    col = jnp.array(dst, dtype=jnp.int32)                        # edge_index[1]
    edge_attr = jnp.linalg.norm(coords[row] - coords[col],
                                axis=-1, keepdims=True)          # (E, 1)

    # ---------------- run kernel + check ------------------------------------
    out = jax.block_until_ready(tspgnn_forward(coords, edge_attr, row, col, packed))
    ref = jax.block_until_ready(ref_forward(coords, edge_attr, row, col, params))
    if not np.allclose(np.asarray(out), np.asarray(ref), rtol=5e-2, atol=5e-2):
        raise AssertionError(
            f"mismatch: max abs diff = {float(jnp.max(jnp.abs(out - ref)))}")

    print("KERNEL_OK")
</pallas_src>

<mosaic_0001>
module attributes {stable_mosaic.version = 11 : i64} {
  func.func @tspgnn_kernel(%arg0: memref<16x8xbf16, #tpu.memory_space<vmem>>, %arg1: memref<64x8xbf16, #tpu.memory_space<vmem>>, %arg2: memref<64x1xi32, #tpu.memory_space<vmem>>, %arg3: memref<64x1xi32, #tpu.memory_space<vmem>>, %arg4: memref<1x64xi32, #tpu.memory_space<vmem>>, %arg5: memref<8x128xbf16, #tpu.memory_space<vmem>>, %arg6: memref<1x128xf32, #tpu.memory_space<vmem>>, %arg7: memref<8x128xbf16, #tpu.memory_space<vmem>>, %arg8: memref<1x128xf32, #tpu.memory_space<vmem>>, %arg9: memref<128x512xbf16, #tpu.memory_space<vmem>>, %arg10: memref<1x512xf32, #tpu.memory_space<vmem>>, %arg11: memref<384x512xbf16, #tpu.memory_space<vmem>>, %arg12: memref<3x512xf32, #tpu.memory_space<vmem>>, %arg13: memref<128x384xbf16, #tpu.memory_space<vmem>>, %arg14: memref<1x384xf32, #tpu.memory_space<vmem>>, %arg15: memref<128x128xbf16, #tpu.memory_space<vmem>>, %arg16: memref<1x128xf32, #tpu.memory_space<vmem>>, %arg17: memref<128x128xbf16, #tpu.memory_space<vmem>>, %arg18: memref<1x128xf32, #tpu.memory_space<vmem>>, %arg19: memref<64x128xf32, #tpu.memory_space<vmem>>) attributes {dimension_semantics = [], scalar_prefetch = 0 : i64, scratch_operands = 0 : i64, tpu.core_type = #tpu.core_type<tc>} {
    %c0 = arith.constant 0 : index
    %c0_0 = arith.constant 0 : index
    %0 = vector.load %arg0[%c0, %c0_0] : memref<16x8xbf16, #tpu.memory_space<vmem>>, vector<16x8xbf16>
    %c0_1 = arith.constant 0 : index
    %c0_2 = arith.constant 0 : index
    %1 = vector.load %arg5[%c0_1, %c0_2] : memref<8x128xbf16, #tpu.memory_space<vmem>>, vector<8x128xbf16>
    %cst = arith.constant dense<0.000000e+00> : vector<16x128xf32>
    %2 = tpu.matmul %0, %1, %cst {dimension_numbers = #tpu.dot_dimension_numbers<[1], [0], [0], [1], [0, 0, 1, 1], [], []>} : vector<16x8xbf16>, vector<8x128xbf16>, vector<16x128xf32> -> vector<16x128xf32>
    %c0_3 = arith.constant 0 : index
    %c0_4 = arith.constant 0 : index
    %3 = vector.load %arg6[%c0_3, %c0_4] : memref<1x128xf32, #tpu.memory_space<vmem>>, vector<1x128xf32>
    %4 = vector.broadcast %3 : vector<1x128xf32> to vector<16x128xf32>
    %5 = arith.addf %2, %4 : vector<16x128xf32>
    %c0_5 = arith.constant 0 : index
    %c0_6 = arith.constant 0 : index
    %6 = vector.load %arg1[%c0_5, %c0_6] : memref<64x8xbf16, #tpu.memory_space<vmem>>, vector<64x8xbf16>
    %c0_7 = arith.constant 0 : index
    %c0_8 = arith.constant 0 : index
    %7 = vector.load %arg7[%c0_7, %c0_8] : memref<8x128xbf16, #tpu.memory_space<vmem>>, vector<8x128xbf16>
    %cst_9 = arith.constant dense<0.000000e+00> : vector<64x128xf32>
    %8 = tpu.matmul %6, %7, %cst_9 {dimension_numbers = #tpu.dot_dimension_numbers<[1], [0], [0], [1], [0, 0, 1, 1], [], []>} : vector<64x8xbf16>, vector<8x128xbf16>, vector<64x128xf32> -> vector<64x128xf32>
    %c0_10 = arith.constant 0 : index
    %c0_11 = arith.constant 0 : index
    %9 = vector.load %arg8[%c0_10, %c0_11] : memref<1x128xf32, #tpu.memory_space<vmem>>, vector<1x128xf32>
    %10 = vector.broadcast %9 : vector<1x128xf32> to vector<64x128xf32>
    %11 = arith.addf %8, %10 : vector<64x128xf32>
    %12 = tpu.iota {dimensions = array<i32: 1>} : vector<64x16xi32>
    %c0_12 = arith.constant 0 : index
    %c0_13 = arith.constant 0 : index
    %13 = vector.load %arg3[%c0_12, %c0_13] : memref<64x1xi32, #tpu.memory_space<vmem>>, vector<64x1xi32>
    %14 = vector.broadcast %13 : vector<64x1xi32> to vector<64x16xi32>
    %15 = arith.cmpi eq, %12, %14 : vector<64x16xi32>
    %c0_14 = arith.constant 0 : index
    %c0_15 = arith.constant 0 : index
    %16 = vector.load %arg2[%c0_14, %c0_15] : memref<64x1xi32, #tpu.memory_space<vmem>>, vector<64x1xi32>
    %17 = vector.broadcast %16 : vector<64x1xi32> to vector<64x16xi32>
    %18 = arith.cmpi eq, %12, %17 : vector<64x16xi32>
    %19 = arith.extui %18 : vector<64x16xi1> to vector<64x16xi32>
    %20 = arith.sitofp %19 : vector<64x16xi32> to vector<64x16xf32>
    %21 = arith.truncf %20 : vector<64x16xf32> to vector<64x16xbf16>
    %22 = arith.extui %15 : vector<64x16xi1> to vector<64x16xi32>
    %23 = arith.sitofp %22 : vector<64x16xi32> to vector<64x16xf32>
    %24 = arith.truncf %23 : vector<64x16xf32> to vector<64x16xbf16>
    %25 = arith.subf %21, %24 : vector<64x16xbf16>
    %26 = tpu.iota {dimensions = array<i32: 0>} : vector<16x64xi32>
    %c0_16 = arith.constant 0 : index
    %c0_17 = arith.constant 0 : index
    %27 = vector.load %arg4[%c0_16, %c0_17] : memref<1x64xi32, #tpu.memory_space<vmem>>, vector<1x64xi32>
    %28 = vector.broadcast %27 : vector<1x64xi32> to vector<16x64xi32>
    %29 = arith.cmpi eq, %26, %28 : vector<16x64xi32>
    %30 = arith.extui %29 : vector<16x64xi1> to vector<16x64xi32>
    %31 = arith.sitofp %30 : vector<16x64xi32> to vector<16x64xf32>
    %32 = arith.truncf %31 : vector<16x64xf32> to vector<16x64xbf16>
    %33 = arith.truncf %5 : vector<16x128xf32> to vector<16x128xbf16>
    %c0_18 = arith.constant 0 : index
    %c0_19 = arith.constant 0 : index
    %34 = vector.load %arg9[%c0_18, %c0_19] : memref<128x512xbf16, #tpu.memory_space<vmem>>, vector<128x512xbf16>
    %cst_20 = arith.constant dense<0.000000e+00> : vector<16x512xf32>
    %35 = tpu.matmul %33, %34, %cst_20 {dimension_numbers = #tpu.dot_dimension_numbers<[1], [0], [0], [1], [0, 0, 1, 1], [], []>} : vector<16x128xbf16>, vector<128x512xbf16>, vector<16x512xf32> -> vector<16x512xf32>
    %c0_21 = arith.constant 0 : index
    %c0_22 = arith.constant 0 : index
    %36 = vector.load %arg10[%c0_21, %c0_22] : memref<1x512xf32, #tpu.memory_space<vmem>>, vector<1x512xf32>
    %37 = vector.broadcast %36 : vector<1x512xf32> to vector<16x512xf32>
    %38 = arith.addf %35, %37 : vector<16x512xf32>
    %39 = vector.extract_strided_slice %38 {offsets = [0, 0], sizes = [16, 384], strides = [1, 1]} : vector<16x512xf32> to vector<16x384xf32>
    %40 = arith.truncf %39 : vector<16x384xf32> to vector<16x384xbf16>
    %41 = vector.extract_strided_slice %38 {offsets = [0, 384], sizes = [16, 128], strides = [1, 1]} : vector<16x512xf32> to vector<16x128xf32>
    %42 = vector.extract_strided_slice %40 {offsets = [0, 0], sizes = [16, 128], strides = [1, 1]} : vector<16x384xbf16> to vector<16x128xbf16>
    %cst_23 = arith.constant dense<0.000000e+00> : vector<64x128xf32>
    %43 = tpu.matmul %24, %42, %cst_23 {dimension_numbers = #tpu.dot_dimension_numbers<[1], [0], [0], [1], [0, 0, 1, 1], [], []>} : vector<64x16xbf16>, vector<16x128xbf16>, vector<64x128xf32> -> vector<64x128xf32>
    %44 = vector.extract_strided_slice %40 {offsets = [0, 128], sizes = [16, 256], strides = [1, 1]} : vector<16x384xbf16> to vector<16x256xbf16>
    %cst_24 = arith.constant dense<0.000000e+00> : vector<64x256xf32>
    %45 = tpu.matmul %21, %44, %cst_24 {dimension_numbers = #tpu.dot_dimension_numbers<[1], [0], [0], [1], [0, 0, 1, 1], [], []>} : vector<64x16xbf16>, vector<16x256xbf16>, vector<64x256xf32> -> vector<64x256xf32>
    %46 = vector.extract_strided_slice %45 {offsets = [0, 0], sizes = [64, 128], strides = [1, 1]} : vector<64x256xf32> to vector<64x128xf32>
    %47 = vector.extract_strided_slice %45 {offsets = [0, 128], sizes = [64, 128], strides = [1, 1]} : vector<64x256xf32> to vector<64x128xf32>
    %48 = arith.mulf %43, %46 : vector<64x128xf32>
    %cst_25 = arith.constant dense<0.000000e+00> : vector<64xf32>
    %49 = vector.multi_reduction <add>, %48, %cst_25 [1] : vector<64x128xf32> to vector<64xf32>
    %50 = vector.shape_cast %49 : vector<64xf32> to vector<64x1xf32>
    %cst_26 = arith.constant 0.0883883461 : f32
    %51 = vector.broadcast %cst_26 : f32 to vector<64x1xf32>
    %52 = arith.mulf %50, %51 : vector<64x1xf32>
    %cst_27 = arith.constant -1.000000e+30 : f32
    %53 = vector.shape_cast %52 : vector<64x1xf32> to vector<64x1xf32>
    %54 = vector.broadcast %53 : vector<64x1xf32> to vector<64x16xf32>
    %55 = vector.broadcast %cst_27 : f32 to vector<64x16xf32>
    %56 = arith.select %15, %54, %55 : vector<64x16xi1>, vector<64x16xf32>
    %cst_28 = arith.constant dense<0xFF800000> : vector<16xf32>
    %57 = vector.multi_reduction <maximumf>, %56, %cst_28 [0] : vector<64x16xf32> to vector<16xf32>
    %58 = vector.shape_cast %57 : vector<16xf32> to vector<1x16xf32>
    %cst_29 = arith.constant -1.000000e+30 : f32
    %59 = vector.shape_cast %58 : vector<1x16xf32> to vector<1x16xf32>
    %60 = vector.broadcast %59 : vector<1x16xf32> to vector<64x16xf32>
    %61 = vector.broadcast %cst_29 : f32 to vector<64x16xf32>
    %62 = arith.select %15, %60, %61 : vector<64x16xi1>, vector<64x16xf32>
    %cst_30 = arith.constant dense<0xFF800000> : vector<64xf32>
    %63 = vector.multi_reduction <maximumf>, %62, %cst_30 [1] : vector<64x16xf32> to vector<64xf32>
    %64 = vector.shape_cast %63 : vector<64xf32> to vector<64x1xf32>
    %65 = arith.subf %52, %64 : vector<64x1xf32>
    %66 = math.exp %65 : vector<64x1xf32>
    %cst_31 = arith.constant 0.000000e+00 : f32
    %67 = vector.shape_cast %66 : vector<64x1xf32> to vector<64x1xf32>
    %68 = vector.broadcast %67 : vector<64x1xf32> to vector<64x16xf32>
    %69 = vector.broadcast %cst_31 : f32 to vector<64x16xf32>
    %70 = arith.select %15, %68, %69 : vector<64x16xi1>, vector<64x16xf32>
    %cst_32 = arith.constant dense<0.000000e+00> : vector<16xf32>
    %71 = vector.multi_reduction <add>, %70, %cst_32 [0] : vector<64x16xf32> to vector<16xf32>
    %72 = vector.shape_cast %71 : vector<16xf32> to vector<1x16xf32>
    %cst_33 = arith.constant 0.000000e+00 : f32
    %73 = vector.shape_cast %72 : vector<1x16xf32> to vector<1x16xf32>
    %74 = vector.broadcast %73 : vector<1x16xf32> to vector<64x16xf32>
    %75 = vector.broadcast %cst_33 : f32 to vector<64x16xf32>
    %76 = arith.select %15, %74, %75 : vector<64x16xi1>, vector<64x16xf32>
    %cst_34 = arith.constant dense<0.000000e+00> : vector<64xf32>
    %77 = vector.multi_reduction <add>, %76, %cst_34 [1] : vector<64x16xf32> to vector<64xf32>
    %78 = vector.shape_cast %77 : vector<64xf32> to vector<64x1xf32>
    %79 = tpu.reciprocal %78 {approx = true} : vector<64x1xf32> -> vector<64x1xf32>
    %80 = arith.mulf %66, %79 : vector<64x1xf32>
    %81 = vector.broadcast %80 : vector<64x1xf32> to vector<64x128xf32>
    %82 = arith.mulf %81, %47 : vector<64x128xf32>
    %83 = arith.truncf %82 : vector<64x128xf32> to vector<64x128xbf16>
    %cst_35 = arith.constant dense<0.000000e+00> : vector<16x128xf32>
    %84 = tpu.matmul %32, %83, %cst_35 {dimension_numbers = #tpu.dot_dimension_numbers<[1], [0], [0], [1], [0, 0, 1, 1], [], []>} : vector<16x64xbf16>, vector<64x128xbf16>, vector<16x128xf32> -> vector<16x128xf32>
    %85 = arith.addf %84, %41 : vector<16x128xf32>
    %86 = arith.truncf %11 : vector<64x128xf32> to vector<64x128xbf16>
    %c0_36 = arith.constant 0 : index
    %c0_37 = arith.constant 0 : index
    %87 = vector.load %arg13[%c0_36, %c0_37] : memref<128x384xbf16, #tpu.memory_space<vmem>>, vector<128x384xbf16>
    %cst_38 = arith.constant dense<0.000000e+00> : vector<64x384xf32>
    %88 = tpu.matmul %86, %87, %cst_38 {dimension_numbers = #tpu.dot_dimension_numbers<[1], [0], [0], [1], [0, 0, 1, 1], [], []>} : vector<64x128xbf16>, vector<128x384xbf16>, vector<64x384xf32> -> vector<64x384xf32>
    %c0_39 = arith.constant 0 : index
    %c0_40 = arith.constant 0 : index
    %89 = vector.load %arg14[%c0_39, %c0_40] : memref<1x384xf32, #tpu.memory_space<vmem>>, vector<1x384xf32>
    %90 = vector.broadcast %89 : vector<1x384xf32> to vector<64x384xf32>
    %91 = arith.addf %88, %90 : vector<64x384xf32>
    %92 = arith.truncf %85 : vector<16x128xf32> to vector<16x128xbf16>
    %c0_41 = arith.constant 0 : index
    %c0_42 = arith.constant 0 : index
    %93 = vector.load %arg11[%c0_41, %c0_42] : memref<384x512xbf16, #tpu.memory_space<vmem>>, vector<128x512xbf16>
    %cst_43 = arith.constant dense<0.000000e+00> : vector<16x512xf32>
    %94 = tpu.matmul %92, %93, %cst_43 {dimension_numbers = #tpu.dot_dimension_numbers<[1], [0], [0], [1], [0, 0, 1, 1], [], []>} : vector<16x128xbf16>, vector<128x512xbf16>, vector<16x512xf32> -> vector<16x512xf32>
    %c0_44 = arith.constant 0 : index
    %c0_45 = arith.constant 0 : index
    %95 = vector.load %arg12[%c0_44, %c0_45] : memref<3x512xf32, #tpu.memory_space<vmem>>, vector<1x512xf32>
    %96 = vector.broadcast %95 : vector<1x512xf32> to vector<16x512xf32>
    %97 = arith.addf %94, %96 : vector<16x512xf32>
    %98 = vector.extract_strided_slice %97 {offsets = [0, 0], sizes = [16, 384], strides = [1, 1]} : vector<16x512xf32> to vector<16x384xf32>
    %99 = arith.truncf %98 : vector<16x384xf32> to vector<16x384xbf16>
    %100 = vector.extract_strided_slice %97 {offsets = [0, 384], sizes = [16, 128], strides = [1, 1]} : vector<16x512xf32> to vector<16x128xf32>
    %101 = vector.extract_strided_slice %99 {offsets = [0, 0], sizes = [16, 256], strides = [1, 1]} : vector<16x384xbf16> to vector<16x256xbf16>
    %cst_46 = arith.constant dense<0.000000e+00> : vector<64x256xf32>
    %102 = tpu.matmul %21, %101, %cst_46 {dimension_numbers = #tpu.dot_dimension_numbers<[1], [0], [0], [1], [0, 0, 1, 1], [], []>} : vector<64x16xbf16>, vector<16x256xbf16>, vector<64x256xf32> -> vector<64x256xf32>
    %103 = vector.extract_strided_slice %102 {offsets = [0, 0], sizes = [64, 128], strides = [1, 1]} : vector<64x256xf32> to vector<64x128xf32>
    %104 = vector.extract_strided_slice %102 {offsets = [0, 128], sizes = [64, 128], strides = [1, 1]} : vector<64x256xf32> to vector<64x128xf32>
    %105 = vector.extract_strided_slice %99 {offsets = [0, 256], sizes = [16, 128], strides = [1, 1]} : vector<16x384xbf16> to vector<16x128xbf16>
    %cst_47 = arith.constant dense<0.000000e+00> : vector<64x128xf32>
    %106 = tpu.matmul %24, %105, %cst_47 {dimension_numbers = #tpu.dot_dimension_numbers<[1], [0], [0], [1], [0, 0, 1, 1], [], []>} : vector<64x16xbf16>, vector<16x128xbf16>, vector<64x128xf32> -> vector<64x128xf32>
    %107 = vector.extract_strided_slice %91 {offsets = [0, 0], sizes = [64, 128], strides = [1, 1]} : vector<64x384xf32> to vector<64x128xf32>
    %108 = arith.addf %104, %106 : vector<64x128xf32>
    %109 = arith.addf %108, %107 : vector<64x128xf32>
    %110 = arith.negf %109 : vector<64x128xf32>
    %111 = math.exp %110 : vector<64x128xf32>
    %cst_48 = arith.constant 1.000000e+00 : f32
    %112 = vector.broadcast %cst_48 : f32 to vector<64x128xf32>
    %113 = arith.addf %112, %111 : vector<64x128xf32>
    %114 = arith.divf %112, %113 : vector<64x128xf32>
    %115 = arith.mulf %114, %103 : vector<64x128xf32>
    %116 = arith.truncf %115 : vector<64x128xf32> to vector<64x128xbf16>
    %cst_49 = arith.constant dense<0.000000e+00> : vector<16x128xf32>
    %117 = tpu.matmul %32, %116, %cst_49 {dimension_numbers = #tpu.dot_dimension_numbers<[1], [0], [0], [1], [0, 0, 1, 1], [], []>} : vector<16x64xbf16>, vector<64x128xbf16>, vector<16x128xf32> -> vector<16x128xf32>
    %118 = arith.addf %117, %100 : vector<16x128xf32>
    %cst_50 = arith.constant 0.000000e+00 : f32
    %119 = vector.broadcast %cst_50 : f32 to vector<16x128xf32>
    %120 = arith.maximumf %118, %119 : vector<16x128xf32>
    %121 = arith.truncf %120 : vector<16x128xf32> to vector<16x128xbf16>
    %c128 = arith.constant 128 : index
    %c0_51 = arith.constant 0 : index
    %122 = vector.load %arg11[%c128, %c0_51] : memref<384x512xbf16, #tpu.memory_space<vmem>>, vector<128x512xbf16>
    %cst_52 = arith.constant dense<0.000000e+00> : vector<16x512xf32>
    %123 = tpu.matmul %121, %122, %cst_52 {dimension_numbers = #tpu.dot_dimension_numbers<[1], [0], [0], [1], [0, 0, 1, 1], [], []>} : vector<16x128xbf16>, vector<128x512xbf16>, vector<16x512xf32> -> vector<16x512xf32>
    %c1 = arith.constant 1 : index
    %c0_53 = arith.constant 0 : index
    %124 = vector.load %arg12[%c1, %c0_53] : memref<3x512xf32, #tpu.memory_space<vmem>>, vector<1x512xf32>
    %125 = vector.broadcast %124 : vector<1x512xf32> to vector<16x512xf32>
    %126 = arith.addf %123, %125 : vector<16x512xf32>
    %127 = vector.extract_strided_slice %126 {offsets = [0, 0], sizes = [16, 384], strides = [1, 1]} : vector<16x512xf32> to vector<16x384xf32>
    %128 = arith.truncf %127 : vector<16x384xf32> to vector<16x384xbf16>
    %129 = vector.extract_strided_slice %126 {offsets = [0, 384], sizes = [16, 128], strides = [1, 1]} : vector<16x512xf32> to vector<16x128xf32>
    %130 = vector.extract_strided_slice %128 {offsets = [0, 0], sizes = [16, 256], strides = [1, 1]} : vector<16x384xbf16> to vector<16x256xbf16>
    %cst_54 = arith.constant dense<0.000000e+00> : vector<64x256xf32>
    %131 = tpu.matmul %21, %130, %cst_54 {dimension_numbers = #tpu.dot_dimension_numbers<[1], [0], [0], [1], [0, 0, 1, 1], [], []>} : vector<64x16xbf16>, vector<16x256xbf16>, vector<64x256xf32> -> vector<64x256xf32>
    %132 = vector.extract_strided_slice %131 {offsets = [0, 0], sizes = [64, 128], strides = [1, 1]} : vector<64x256xf32> to vector<64x128xf32>
    %133 = vector.extract_strided_slice %131 {offsets = [0, 128], sizes = [64, 128], strides = [1, 1]} : vector<64x256xf32> to vector<64x128xf32>
    %134 = vector.extract_strided_slice %128 {offsets = [0, 256], sizes = [16, 128], strides = [1, 1]} : vector<16x384xbf16> to vector<16x128xbf16>
    %cst_55 = arith.constant dense<0.000000e+00> : vector<64x128xf32>
    %135 = tpu.matmul %24, %134, %cst_55 {dimension_numbers = #tpu.dot_dimension_numbers<[1], [0], [0], [1], [0, 0, 1, 1], [], []>} : vector<64x16xbf16>, vector<16x128xbf16>, vector<64x128xf32> -> vector<64x128xf32>
    %136 = vector.extract_strided_slice %91 {offsets = [0, 128], sizes = [64, 128], strides = [1, 1]} : vector<64x384xf32> to vector<64x128xf32>
    %137 = arith.addf %133, %135 : vector<64x128xf32>
    %138 = arith.addf %137, %136 : vector<64x128xf32>
    %139 = arith.negf %138 : vector<64x128xf32>
    %140 = math.exp %139 : vector<64x128xf32>
    %cst_56 = arith.constant 1.000000e+00 : f32
    %141 = vector.broadcast %cst_56 : f32 to vector<64x128xf32>
    %142 = arith.addf %141, %140 : vector<64x128xf32>
    %143 = arith.divf %141, %142 : vector<64x128xf32>
    %144 = arith.mulf %143, %132 : vector<64x128xf32>
    %145 = arith.truncf %144 : vector<64x128xf32> to vector<64x128xbf16>
    %cst_57 = arith.constant dense<0.000000e+00> : vector<16x128xf32>
    %146 = tpu.matmul %32, %145, %cst_57 {dimension_numbers = #tpu.dot_dimension_numbers<[1], [0], [0], [1], [0, 0, 1, 1], [], []>} : vector<16x64xbf16>, vector<64x128xbf16>, vector<16x128xf32> -> vector<16x128xf32>
    %147 = arith.addf %146, %129 : vector<16x128xf32>
    %cst_58 = arith.constant 0.000000e+00 : f32
    %148 = vector.broadcast %cst_58 : f32 to vector<16x128xf32>
    %149 = arith.maximumf %147, %148 : vector<16x128xf32>
    %150 = arith.truncf %149 : vector<16x128xf32> to vector<16x128xbf16>
    %c256 = arith.constant 256 : index
    %c0_59 = arith.constant 0 : index
    %151 = vector.load %arg11[%c256, %c0_59] : memref<384x512xbf16, #tpu.memory_space<vmem>>, vector<128x512xbf16>
    %cst_60 = arith.constant dense<0.000000e+00> : vector<16x512xf32>
    %152 = tpu.matmul %150, %151, %cst_60 {dimension_numbers = #tpu.dot_dimension_numbers<[1], [0], [0], [1], [0, 0, 1, 1], [], []>} : vector<16x128xbf16>, vector<128x512xbf16>, vector<16x512xf32> -> vector<16x512xf32>
    %c2 = arith.constant 2 : index
    %c0_61 = arith.constant 0 : index
    %153 = vector.load %arg12[%c2, %c0_61] : memref<3x512xf32, #tpu.memory_space<vmem>>, vector<1x512xf32>
    %154 = vector.broadcast %153 : vector<1x512xf32> to vector<16x512xf32>
    %155 = arith.addf %152, %154 : vector<16x512xf32>
    %156 = vector.extract_strided_slice %155 {offsets = [0, 0], sizes = [16, 384], strides = [1, 1]} : vector<16x512xf32> to vector<16x384xf32>
    %157 = arith.truncf %156 : vector<16x384xf32> to vector<16x384xbf16>
    %158 = vector.extract_strided_slice %155 {offsets = [0, 384], sizes = [16, 128], strides = [1, 1]} : vector<16x512xf32> to vector<16x128xf32>
    %159 = vector.extract_strided_slice %157 {offsets = [0, 0], sizes = [16, 256], strides = [1, 1]} : vector<16x384xbf16> to vector<16x256xbf16>
    %cst_62 = arith.constant dense<0.000000e+00> : vector<64x256xf32>
    %160 = tpu.matmul %21, %159, %cst_62 {dimension_numbers = #tpu.dot_dimension_numbers<[1], [0], [0], [1], [0, 0, 1, 1], [], []>} : vector<64x16xbf16>, vector<16x256xbf16>, vector<64x256xf32> -> vector<64x256xf32>
    %161 = vector.extract_strided_slice %160 {offsets = [0, 0], sizes = [64, 128], strides = [1, 1]} : vector<64x256xf32> to vector<64x128xf32>
    %162 = vector.extract_strided_slice %160 {offsets = [0, 128], sizes = [64, 128], strides = [1, 1]} : vector<64x256xf32> to vector<64x128xf32>
    %163 = vector.extract_strided_slice %157 {offsets = [0, 256], sizes = [16, 128], strides = [1, 1]} : vector<16x384xbf16> to vector<16x128xbf16>
    %cst_63 = arith.constant dense<0.000000e+00> : vector<64x128xf32>
    %164 = tpu.matmul %24, %163, %cst_63 {dimension_numbers = #tpu.dot_dimension_numbers<[1], [0], [0], [1], [0, 0, 1, 1], [], []>} : vector<64x16xbf16>, vector<16x128xbf16>, vector<64x128xf32> -> vector<64x128xf32>
    %165 = vector.extract_strided_slice %91 {offsets = [0, 256], sizes = [64, 128], strides = [1, 1]} : vector<64x384xf32> to vector<64x128xf32>
    %166 = arith.addf %162, %164 : vector<64x128xf32>
    %167 = arith.addf %166, %165 : vector<64x128xf32>
    %168 = arith.negf %167 : vector<64x128xf32>
    %169 = math.exp %168 : vector<64x128xf32>
    %cst_64 = arith.constant 1.000000e+00 : f32
    %170 = vector.broadcast %cst_64 : f32 to vector<64x128xf32>
    %171 = arith.addf %170, %169 : vector<64x128xf32>
    %172 = arith.divf %170, %171 : vector<64x128xf32>
    %173 = arith.mulf %172, %161 : vector<64x128xf32>
    %174 = arith.truncf %173 : vector<64x128xf32> to vector<64x128xbf16>
    %cst_65 = arith.constant dense<0.000000e+00> : vector<16x128xf32>
    %175 = tpu.matmul %32, %174, %cst_65 {dimension_numbers = #tpu.dot_dimension_numbers<[1], [0], [0], [1], [0, 0, 1, 1], [], []>} : vector<16x64xbf16>, vector<64x128xbf16>, vector<16x128xf32> -> vector<16x128xf32>
    %176 = arith.addf %175, %158 : vector<16x128xf32>
    %cst_66 = arith.constant 0.000000e+00 : f32
    %177 = vector.broadcast %cst_66 : f32 to vector<16x128xf32>
    %178 = arith.maximumf %176, %177 : vector<16x128xf32>
    %179 = arith.truncf %178 : vector<16x128xf32> to vector<16x128xbf16>
    %cst_67 = arith.constant dense<0.000000e+00> : vector<64x128xf32>
    %180 = tpu.matmul %25, %179, %cst_67 {dimension_numbers = #tpu.dot_dimension_numbers<[1], [0], [0], [1], [0, 0, 1, 1], [], []>} : vector<64x16xbf16>, vector<16x128xbf16>, vector<64x128xf32> -> vector<64x128xf32>
    %181 = math.absf %180 : vector<64x128xf32>
    %182 = arith.truncf %181 : vector<64x128xf32> to vector<64x128xbf16>
    %c0_68 = arith.constant 0 : index
    %c0_69 = arith.constant 0 : index
    %183 = vector.load %arg15[%c0_68, %c0_69] : memref<128x128xbf16, #tpu.memory_space<vmem>>, vector<128x128xbf16>
    %cst_70 = arith.constant dense<0.000000e+00> : vector<64x128xf32>
    %184 = tpu.matmul %182, %183, %cst_70 {dimension_numbers = #tpu.dot_dimension_numbers<[1], [0], [0], [1], [0, 0, 1, 1], [], []>} : vector<64x128xbf16>, vector<128x128xbf16>, vector<64x128xf32> -> vector<64x128xf32>
    %c0_71 = arith.constant 0 : index
    %c0_72 = arith.constant 0 : index
    %185 = vector.load %arg16[%c0_71, %c0_72] : memref<1x128xf32, #tpu.memory_space<vmem>>, vector<1x128xf32>
    %186 = vector.broadcast %185 : vector<1x128xf32> to vector<64x128xf32>
    %187 = arith.addf %184, %186 : vector<64x128xf32>
    %cst_73 = arith.constant 0.000000e+00 : f32
    %188 = vector.broadcast %cst_73 : f32 to vector<64x128xf32>
    %189 = arith.maximumf %187, %188 : vector<64x128xf32>
    %190 = arith.truncf %189 : vector<64x128xf32> to vector<64x128xbf16>
    %c0_74 = arith.constant 0 : index
    %c0_75 = arith.constant 0 : index
    %191 = vector.load %arg17[%c0_74, %c0_75] : memref<128x128xbf16, #tpu.memory_space<vmem>>, vector<128x128xbf16>
    %cst_76 = arith.constant dense<0.000000e+00> : vector<64x128xf32>
    %192 = tpu.matmul %190, %191, %cst_76 {dimension_numbers = #tpu.dot_dimension_numbers<[1], [0], [0], [1], [0, 0, 1, 1], [], []>} : vector<64x128xbf16>, vector<128x128xbf16>, vector<64x128xf32> -> vector<64x128xf32>
    %c0_77 = arith.constant 0 : index
    %c0_78 = arith.constant 0 : index
    %193 = vector.load %arg18[%c0_77, %c0_78] : memref<1x128xf32, #tpu.memory_space<vmem>>, vector<1x128xf32>
    %194 = vector.broadcast %193 : vector<1x128xf32> to vector<64x128xf32>
    %195 = arith.addf %192, %194 : vector<64x128xf32>
    %c0_79 = arith.constant 0 : index
    %c0_80 = arith.constant 0 : index
    %196 = vector.load %arg19[%c0_79, %c0_80] : memref<64x128xf32, #tpu.memory_space<vmem>>, vector<64x128xf32>
    tpu.vector_store %arg19[%c0_79, %c0_80], %195 {strides = array<i32>} : memref<64x128xf32, #tpu.memory_space<vmem>>, vector<64x128xf32>,
    return
  }
}

</mosaic_0001>

<llo_original>
// kernel: tspgnn_forward.1
$region0: #{tspgnn_forward.1}
  #allocation0 [shape = 'u32[]', space=smem, size = 0x4, offset = 0x4, fixed_abs, tag = 'smem constant byte address 0x4 - core index']
  #allocation1 [shape = 'u32[144,128]{1,0:T(1,128)}', space=vmem, size = 0x12000, scoped, tag = 'internal scratch']
  %s0 = inlined_call_operand.vmem [shape: bf16[16,8], index: 0, kind: input, shape index: {}]
  %s1 = inlined_call_operand.vmem [shape: bf16[64,8], index: 1, kind: input, shape index: {}]
  %s2 = inlined_call_operand.vmem [shape: s32[64,1], index: 2, kind: input, shape index: {}]
  %s3 = inlined_call_operand.vmem [shape: s32[64,1], index: 3, kind: input, shape index: {}]
  %s4 = inlined_call_operand.vmem [shape: s32[1,64], index: 4, kind: input, shape index: {}]
  %s5 = inlined_call_operand.vmem [shape: bf16[8,128], index: 5, kind: input, shape index: {}]
  %s6 = inlined_call_operand.vmem [shape: f32[1,128], index: 6, kind: input, shape index: {}]
  %s7 = inlined_call_operand.vmem [shape: bf16[8,128], index: 7, kind: input, shape index: {}]
  %s8 = inlined_call_operand.vmem [shape: f32[1,128], index: 8, kind: input, shape index: {}]
  %s9 = inlined_call_operand.vmem [shape: bf16[128,512], index: 9, kind: input, shape index: {}]
  %s10 = inlined_call_operand.vmem [shape: f32[1,512], index: 10, kind: input, shape index: {}]
  %s11 = inlined_call_operand.hbm [shape: bf16[384,512], index: 11, kind: input, shape index: {}]
  %s12 = inlined_call_operand.vmem [shape: f32[3,512], index: 12, kind: input, shape index: {}]
  %s13 = inlined_call_operand.hbm [shape: bf16[128,384], index: 13, kind: input, shape index: {}]
  %s14 = inlined_call_operand.vmem [shape: f32[1,384], index: 14, kind: input, shape index: {}]
  %s15 = inlined_call_operand.vmem [shape: bf16[128,128], index: 15, kind: input, shape index: {}]
  %s16 = inlined_call_operand.vmem [shape: f32[1,128], index: 16, kind: input, shape index: {}]
  %s17 = inlined_call_operand.hbm [shape: bf16[128,128], index: 17, kind: input, shape index: {}]
  %s18 = inlined_call_operand.vmem [shape: f32[1,128], index: 18, kind: input, shape index: {}]
  %s19 = inlined_call_operand.vmem [shape: f32[64,128], index: 19, kind: output, shape index: {}]
  %s20 = sld [smem:[#allocation0]]
  $region98: #{tspgnn_forward.1} parent=0
    _
  %s22 = ssub.s32 1, %s20
  %s23 = scalar_select 0, %s22, %s20
  $region1: #{tspgnn_forward.1} parent=0
    #allocation2 [shape = 'u8[393216]{0}', space=vmem, size = 0x60000, scoped, tag = 'input window, operand 11, single buffered']
    #allocation3 [shape = 's32[1]{0}', space=sflag, size = 0x4, scoped, tag = 'scoped memory for tspgnn_forward.1']
    #allocation4 [shape = 'u8[98304]{0}', space=vmem, size = 0x18000, scoped, tag = 'input window, operand 13, single buffered']
    #allocation5 [shape = 's32[1]{0}', space=sflag, size = 0x4, scoped, tag = 'scoped memory for tspgnn_forward.1']
    #allocation6 [shape = 'u8[32768]{0}', space=vmem, size = 0x8000, scoped, tag = 'input window, operand 17, single buffered']
    %24 = vsyncpa [#allocation3], 0
    %25 = vsyncpa [#allocation5], 0
    // Predicated region
    $region2: #{tspgnn_forward.1} parent=1 // pred_check
      _
    $region3: #{tspgnn_forward.1} parent=1 // pred_check_branch
      %27 = sbr.rel (0) target = $region5
    $region4: #{tspgnn_forward.1} parent=1 // pred_region
      _
    $region5: #{tspgnn_forward.1} parent=1 // pred_fallthru
      _
    // Predicated region
    $region6: #{tspgnn_forward.1} parent=1 // pred_check
      _
    $region7: #{tspgnn_forward.1} parent=1 // pred_check_branch
      %29 = sbr.rel (0) target = $region9
    $region8: #{tspgnn_forward.1} parent=1 // pred_region
      _
    $region9: #{tspgnn_forward.1} parent=1 // pred_fallthru
      _
    // Predicated region
    $region10: #{tspgnn_forward.1} parent=1 // pred_check
      _
    $region11: #{tspgnn_forward.1} parent=1 // pred_check_branch
      %31 = sbr.rel (0) target = $region13
    $region12: #{tspgnn_forward.1} parent=1 // pred_region
      _
    $region13: #{tspgnn_forward.1} parent=1 // pred_fallthru
      _
    // Predicated region
    $region14: #{tspgnn_forward.1} parent=1 // pred_check
      _
    $region15: #{tspgnn_forward.1} parent=1 // pred_check_branch
      %33 = sbr.rel (0) target = $region17
    $region16: #{tspgnn_forward.1} parent=1 // pred_region
      _
    $region17: #{tspgnn_forward.1} parent=1 // pred_fallthru
      _
    // Predicated region
    $region18: #{tspgnn_forward.1} parent=1 // pred_check
      _
    $region19: #{tspgnn_forward.1} parent=1 // pred_check_branch
      %35 = sbr.rel (0) target = $region21
    $region20: #{tspgnn_forward.1} parent=1 // pred_region
      _
    $region21: #{tspgnn_forward.1} parent=1 // pred_fallthru
      _
    // Predicated region
    $region22: #{tspgnn_forward.1} parent=1 // pred_check
      _
    $region23: #{tspgnn_forward.1} parent=1 // pred_check_branch
      %37 = sbr.rel (0) target = $region25
    $region24: #{tspgnn_forward.1} parent=1 // pred_region
      _
    $region25: #{tspgnn_forward.1} parent=1 // pred_fallthru
      _
    // Predicated region
    $region26: #{tspgnn_forward.1} parent=1 // pred_check
      _
    $region27: #{tspgnn_forward.1} parent=1 // pred_check_branch
      %39 = sbr.rel (0) target = $region29
    $region28: #{tspgnn_forward.1} parent=1 // pred_region
      _
    $region29: #{tspgnn_forward.1} parent=1 // pred_fallthru
      _
    // Predicated region
    $region30: #{tspgnn_forward.1} parent=1 // pred_check
      _
    $region31: #{tspgnn_forward.1} parent=1 // pred_check_branch
      %41 = sbr.rel (0) target = $region33
    $region32: #{tspgnn_forward.1} parent=1 // pred_region
      _
    $region33: #{tspgnn_forward.1} parent=1 // pred_fallthru
      _
    // Predicated region
    $region34: #{tspgnn_forward.1} parent=1 // pred_check
      _
    $region35: #{tspgnn_forward.1} parent=1 // pred_check_branch
      %43 = sbr.rel (0) target = $region37
    $region36: #{tspgnn_forward.1} parent=1 // pred_region
      _
    $region37: #{tspgnn_forward.1} parent=1 // pred_fallthru
      _
    // Predicated region
    $region38: #{tspgnn_forward.1} parent=1 // pred_check
      _
    $region39: #{tspgnn_forward.1} parent=1 // pred_check_branch
      %45 = sbr.rel (0) target = $region41
    $region40: #{tspgnn_forward.1} parent=1 // pred_region
      _
    $region41: #{tspgnn_forward.1} parent=1 // pred_fallthru
      _
    // Predicated region
    $region42: #{tspgnn_forward.1} parent=1 // pred_check
      _
    $region43: #{tspgnn_forward.1} parent=1 // pred_check_branch
      %47 = sbr.rel (0) target = $region45
    $region44: #{tspgnn_forward.1} parent=1 // pred_region
      _
    $region45: #{tspgnn_forward.1} parent=1 // pred_fallthru
      _
    // Predicated region
    $region46: #{tspgnn_forward.1} parent=1 // pred_check
      _
    $region47: #{tspgnn_forward.1} parent=1 // pred_check_branch
      %49 = sbr.rel (0) target = $region49
    $region48: #{tspgnn_forward.1} parent=1 // pred_region
      %s51 = ssub.s32 12288, 12288
      %52 = vsyncadd [#allocation3], %s51
      %s53 = sshll.u32 [#allocation2], 4
      %s54 = int_to_ptr.vmem [resolvable:$true] %s53
      %59 = dma.hbm_to_vmem [thread:$0]  %s11, 12288, %s54, [#allocation3], 256, 256, 16
    $region49: #{tspgnn_forward.1} parent=1 // pred_fallthru
      _
    // Predicated region
    $region50: #{tspgnn_forward.1} parent=1 // pred_check
      _
    $region51: #{tspgnn_forward.1} parent=1 // pred_check_branch
      %61 = sbr.rel (0) target = $region53
    $region52: #{tspgnn_forward.1} parent=1 // pred_region
      _
    $region53: #{tspgnn_forward.1} parent=1 // pred_fallthru
      _
    // Predicated region
    $region54: #{tspgnn_forward.1} parent=1 // pred_check
      _
    $region55: #{tspgnn_forward.1} parent=1 // pred_check_branch
      %63 = sbr.rel (0) target = $region57
    $region56: #{tspgnn_forward.1} parent=1 // pred_region
      %s65 = ssub.s32 3072, 3072
      %66 = vsyncadd [#allocation5], %s65
      %s67 = sshll.u32 [#allocation4], 4
      %s68 = int_to_ptr.vmem [resolvable:$true] %s67
      %73 = dma.hbm_to_vmem [thread:$0]  %s13, 3072, %s68, [#allocation5], 192, 192, 12
    $region57: #{tspgnn_forward.1} parent=1 // pred_fallthru
      _
    // Predicated region
    $region58: #{tspgnn_forward.1} parent=1 // pred_check
      _
    $region59: #{tspgnn_forward.1} parent=1 // pred_check_branch
      %75 = sbr.rel (0) target = $region61
    $region60: #{tspgnn_forward.1} parent=1 // pred_region
      _
    $region61: #{tspgnn_forward.1} parent=1 // pred_fallthru
      _
    // Predicated region
    $region62: #{tspgnn_forward.1} parent=1 // pred_check
      _
    $region63: #{tspgnn_forward.1} parent=1 // pred_check_branch
      %77 = sbr.rel (0) target = $region65
    $region64: #{tspgnn_forward.1} parent=1 // pred_region
      _
    $region65: #{tspgnn_forward.1} parent=1 // pred_fallthru
      _
    // Predicated region
    $region66: #{tspgnn_forward.1} parent=1 // pred_check
      _
    $region67: #{tspgnn_forward.1} parent=1 // pred_check_branch
      %79 = sbr.rel (0) target = $region69
    $region68: #{tspgnn_forward.1} parent=1 // pred_region
      _
    $region69: #{tspgnn_forward.1} parent=1 // pred_fallthru
      _
    // Predicated region
    $region70: #{tspgnn_forward.1} parent=1 // pred_check
      _
    $region71: #{tspgnn_forward.1} parent=1 // pred_check_branch
      %81 = sbr.rel (0) target = $region73
    $region72: #{tspgnn_forward.1} parent=1 // pred_region
      %s83 = ssub.s32 1024, 1024
      %84 = vsyncadd [#allocation5], %s83
      %s85 = sshll.u32 [#allocation6], 4
      %s86 = int_to_ptr.vmem [resolvable:$true] %s85
      %91 = dma.hbm_to_vmem [thread:$0]  %s17, 1024, %s86, [#allocation5], 64, 64, 4
    $region73: #{tspgnn_forward.1} parent=1 // pred_fallthru
      _
    // Predicated region
    $region74: #{tspgnn_forward.1} parent=1 // pred_check
      _
    $region75: #{tspgnn_forward.1} parent=1 // pred_check_branch
      %93 = sbr.rel (0) target = $region77
    $region76: #{tspgnn_forward.1} parent=1 // pred_region
      _
    $region77: #{tspgnn_forward.1} parent=1 // pred_fallthru
      _
    // Predicated region
    $region78: #{tspgnn_forward.1} parent=1 // pred_check
      _
    $region79: #{tspgnn_forward.1} parent=1 // pred_check_branch
      %95 = sbr.rel (0) target = $region81
    $region80: #{tspgnn_forward.1} parent=1 // pred_region
      %96 = dma.done [#allocation3], 12288
    $region81: #{tspgnn_forward.1} parent=1 // pred_fallthru
      _
    // Predicated region
    $region82: #{tspgnn_forward.1} parent=1 // pred_check
      _
    $region83: #{tspgnn_forward.1} parent=1 // pred_check_branch
      %98 = sbr.rel (0) target = $region85
    $region84: #{tspgnn_forward.1} parent=1 // pred_region
      %99 = dma.done [#allocation5], 3072
    $region85: #{tspgnn_forward.1} parent=1 // pred_fallthru
      _
    // Predicated region
    $region86: #{tspgnn_forward.1} parent=1 // pred_check
      _
    $region87: #{tspgnn_forward.1} parent=1 // pred_check_branch
      %101 = sbr.rel (0) target = $region89
    $region88: #{tspgnn_forward.1} parent=1 // pred_region
      %102 = dma.done [#allocation5], 1024
    $region89: #{tspgnn_forward.1} parent=1 // pred_fallthru
      _
    %v104 = vld [vmem:[%s0] sm:$0xf]
    %v105 = vld [vmem:[%s0 + $0x4] sm:$0xf]
    %v106 = vld [vmem:[%s5] sm:$0xf]
    %v107 = vld [vmem:[%s6] sm:$0x1]
    %v109 = vlaneseq
    %v110 = vshrl.u32 %v109, 7
    %v111 = vsub.s32 0, %v110
    %v112 = vrot.slane %v107, %v111
    %v116 = vunpack.c.l.b16 %v104
    %v117 = vunpack.c.l.b16 %v105
    %v118 = vpack.c.b16 %v117, %v116
    %vm119 = vcmask 64512
    %v121 = vsel %vm119, %v118, 0
    %vm123 = vcmask 1043456
    %v125 = vsel %vm123, %v106, 0
    %127 = vmatprep.subr.bf16.mxu0 0
    %128 = vmatpush1.bf16.msra.mxu0 0
    %129 = vmatprep.subr.bf16.mxu0 0
    %130 = vmatpush1.bf16.msra.mxu0 0
    %131 = vmatprep.subr.bf16.mxu0 0
    %132 = vmatpush1.bf16.msra.mxu0 0
    %133 = vmatprep.subr.bf16.mxu0 0
    %134 = vmatpush1.bf16.msra.mxu0 0
    %135 = vmatprep.subr.bf16.mxu0 0
    %136 = vmatpush1.bf16.msra.mxu0 0
    %137 = vmatprep.subr.bf16.mxu0 0
    %138 = vmatpush1.bf16.msra.mxu0 0
    %139 = vmatprep.subr.bf16.mxu0 0
    %140 = vmatpush1.bf16.msra.mxu0 0
    %141 = vmatprep.subr.bf16.mxu0 0
    %142 = vmatpush1.bf16.msra.mxu0 %v125
    %143 = vmatprep.subr.bf16.mxu0 0
    %144 = vmatpush2.bf16.msra.mxu0 0
    %145 = vmatprep.subr.bf16.mxu0 0
    %146 = vmatpush2.bf16.msra.mxu0 0
    %147 = vmatprep.subr.bf16.mxu0 0
    %148 = vmatpush2.bf16.msra.mxu0 0
    %149 = vmatprep.subr.bf16.mxu0 0
    %150 = vmatpush2.bf16.msra.mxu0 0
    %151 = vmatprep.subr.bf16.mxu0 0
    %152 = vmatpush2.bf16.msra.mxu0 0
    %153 = vmatprep.subr.bf16.mxu0 0
    %154 = vmatpush2.bf16.msra.mxu0 0
    %155 = vmatprep.subr.bf16.mxu0 0
    %156 = vmatpush2.bf16.msra.mxu0 0
    %157 = vmatprep.subr.bf16.mxu0 0
    %158 = vmatpush2.bf16.msra.mxu0 0
    %159 = vmatprep.mubr.bf16.mxu0 0
    %160 = vmatmul.mubr.bf16.gmra.mxu0 %v121
    %v161 = vpop.f32.mrf.mxu0
    %v162 = vadd.f32 %v112, %v161
    %v163 = vpop.f32.mrf.mxu0
    %v164 = vpop.f32.mrf.mxu0
    %v165 = vadd.f32 %v112, %v164
    %v166 = vpop.f32.mrf.mxu0
    %167 = vdwg.mxu0
    %v168 = vld [vmem:[%s1] sm:$0xf]
    %v169 = vld [vmem:[%s1 + $0x4] sm:$0xf]
    %v170 = vld [vmem:[%s1 + $0x8] sm:$0xf]
    %v171 = vld [vmem:[%s1 + $0xc] sm:$0xf]
    %v172 = vld [vmem:[%s1 + $0x10] sm:$0xf]
    %v173 = vld [vmem:[%s1 + $0x14] sm:$0xf]
    %v174 = vld [vmem:[%s1 + $0x18] sm:$0xf]
    %v175 = vld [vmem:[%s1 + $0x1c] sm:$0xf]
    %v176 = vld [vmem:[%s7] sm:$0xf]
    %v177 = vld [vmem:[%s8] sm:$0x1]
    %v179 = vlaneseq
    %v180 = vshrl.u32 %v179, 7
    %v181 = vsub.s32 0, %v180
    %v182 = vrot.slane %v177, %v181
    %v192 = vunpack.c.l.b16 %v168
    %v193 = vunpack.c.l.b16 %v169
    %v194 = vunpack.c.l.b16 %v170
    %v195 = vunpack.c.l.b16 %v171
    %v196 = vunpack.c.l.b16 %v172
    %v197 = vunpack.c.l.b16 %v173
    %v198 = vunpack.c.l.b16 %v174
    %v199 = vunpack.c.l.b16 %v175
    %v200 = vpack.c.b16 %v193, %v192
    %v201 = vpack.c.b16 %v195, %v194
    %v202 = vpack.c.b16 %v197, %v196
    %v203 = vpack.c.b16 %v199, %v198
    %v205 = vsel %vm119, %v200, 0
    %v208 = vsel %vm119, %v201, 0
    %v211 = vsel %vm119, %v202, 0
    %v214 = vsel %vm119, %v203, 0
    %v217 = vsel %vm123, %v176, 0
    %219 = vmatprep.subr.bf16.mxu0 0
    %220 = vmatpush1.bf16.msra.mxu0 0
    %221 = vmatprep.subr.bf16.mxu0 0
    %222 = vmatpush1.bf16.msra.mxu0 0
    %223 = vmatprep.subr.bf16.mxu0 0
    %224 = vmatpush1.bf16.msra.mxu0 0
    %225 = vmatprep.subr.bf16.mxu0 0
    %226 = vmatpush1.bf16.msra.mxu0 0
    %227 = vmatprep.subr.bf16.mxu0 0
    %228 = vmatpush1.bf16.msra.mxu0 0
    %229 = vmatprep.subr.bf16.mxu0 0
    %230 = vmatpush1.bf16.msra.mxu0 0
    %231 = vmatprep.subr.bf16.mxu0 0
    %232 = vmatpush1.bf16.msra.mxu0 0
    %233 = vmatprep.subr.bf16.mxu0 0
    %234 = vmatpush1.bf16.msra.mxu0 %v217
    %235 = vmatprep.subr.bf16.mxu0 0
    %236 = vmatpush2.bf16.msra.mxu0 0
    %237 = vmatprep.subr.bf16.mxu0 0
    %238 = vmatpush2.bf16.msra.mxu0 0
    %239 = vmatprep.subr.bf16.mxu0 0
    %240 = vmatpush2.bf16.msra.mxu0 0
    %241 = vmatprep.subr.bf16.mxu0 0
    %242 = vmatpush2.bf16.msra.mxu0 0
    %243 = vmatprep.subr.bf16.mxu0 0
    %244 = vmatpush2.bf16.msra.mxu0 0
    %245 = vmatprep.subr.bf16.mxu0 0
    %246 = vmatpush2.bf16.msra.mxu0 0
    %247 = vmatprep.subr.bf16.mxu0 0
    %248 = vmatpush2.bf16.msra.mxu0 0
    %249 = vmatprep.subr.bf16.mxu0 0
    %250 = vmatpush2.bf16.msra.mxu0 0
    %251 = vmatprep.mubr.bf16.mxu0 0
    %252 = vmatmul.mubr.bf16.gmra.mxu0 %v205
    %v253 = vpop.f32.mrf.mxu0
    %v254 = vadd.f32 %v182, %v253
    %v255 = vpop.f32.mrf.mxu0
    %v256 = vpop.f32.mrf.mxu0
    %v257 = vadd.f32 %v182, %v256
    %v258 = vpop.f32.mrf.mxu0
    %259 = vmatprep.mubr.bf16.mxu0 0
    %260 = vmatmul.mubr.bf16.gmra.mxu0 %v208
    %v261 = vpop.f32.mrf.mxu0
    %v262 = vadd.f32 %v182, %v261
    %v263 = vpop.f32.mrf.mxu0
    %v264 = vpop.f32.mrf.mxu0
    %v265 = vadd.f32 %v182, %v264
    %v266 = vpop.f32.mrf.mxu0
    %267 = vmatprep.mubr.bf16.mxu0 0
    %268 = vmatmul.mubr.bf16.gmra.mxu0 %v211
    %v269 = vpop.f32.mrf.mxu0
    %v270 = vadd.f32 %v182, %v269
    %v271 = vpop.f32.mrf.mxu0
    %v272 = vpop.f32.mrf.mxu0
    %v273 = vadd.f32 %v182, %v272
    %v274 = vpop.f32.mrf.mxu0
    %275 = vmatprep.mubr.bf16.mxu0 0
    %276 = vmatmul.mubr.bf16.gmra.mxu0 %v214
    %v277 = vpop.f32.mrf.mxu0
    %v278 = vadd.f32 %v182, %v277
    %v279 = vpop.f32.mrf.mxu0
    %v280 = vpop.f32.mrf.mxu0
    %v281 = vadd.f32 %v182, %v280
    %v282 = vpop.f32.mrf.mxu0
    %283 = vdwg.mxu0
    %v284 = vlaneseq
    %v285 = vand.u32 %v284, 127
    %v286 = vld [vmem:[%s3] sm:$0xff]
    %v287 = vld [vmem:[%s3 + $0x8] sm:$0xff]
    %v288 = vld [vmem:[%s3 + $0x10] sm:$0xff]
    %v289 = vld [vmem:[%s3 + $0x18] sm:$0xff]
    %v290 = vld [vmem:[%s3 + $0x20] sm:$0xff]
    %v291 = vld [vmem:[%s3 + $0x28] sm:$0xff]
    %v292 = vld [vmem:[%s3 + $0x30] sm:$0xff]
    %v293 = vld [vmem:[%s3 + $0x38] sm:$0xff]
    %294 = vset.pattern.permute.xlu0 0
    %295 = vperm.xlu0 %294, %v286
    %v296 = vpop.permute.xlu0 %295
    %297 = vset.pattern.permute.xlu0 0
    %298 = vperm.xlu0 %297, %v287
    %v299 = vpop.permute.xlu0 %298
    %300 = vset.pattern.permute.xlu0 0
    %301 = vperm.xlu0 %300, %v288
    %v302 = vpop.permute.xlu0 %301
    %303 = vset.pattern.permute.xlu0 0
    %304 = vperm.xlu0 %303, %v289
    %v305 = vpop.permute.xlu0 %304
    %306 = vset.pattern.permute.xlu0 0
    %307 = vperm.xlu0 %306, %v290
    %v308 = vpop.permute.xlu0 %307
    %309 = vset.pattern.permute.xlu0 0
    %310 = vperm.xlu0 %309, %v291
    %v311 = vpop.permute.xlu0 %310
    %312 = vset.pattern.permute.xlu0 0
    %313 = vperm.xlu0 %312, %v292
    %v314 = vpop.permute.xlu0 %313
    %315 = vset.pattern.permute.xlu0 0
    %316 = vperm.xlu0 %315, %v293
    %v317 = vpop.permute.xlu0 %316
    %vm318 = vcmp.eq.s32.totalorder %v285, %v296
    %vm319 = vcmp.eq.s32.totalorder %v285, %v299
    %vm320 = vcmp.eq.s32.totalorder %v285, %v302
    %vm321 = vcmp.eq.s32.totalorder %v285, %v305
    %vm322 = vcmp.eq.s32.totalorder %v285, %v308
    %vm323 = vcmp.eq.s32.totalorder %v285, %v311
    %vm324 = vcmp.eq.s32.totalorder %v285, %v314
    %vm325 = vcmp.eq.s32.totalorder %v285, %v317
    %v326 = vld [vmem:[%s2] sm:$0xff]
    %v327 = vld [vmem:[%s2 + $0x8] sm:$0xff]
    %v328 = vld [vmem:[%s2 + $0x10] sm:$0xff]
    %v329 = vld [vmem:[%s2 + $0x18] sm:$0xff]
    %v330 = vld [vmem:[%s2 + $0x20] sm:$0xff]
    %v331 = vld [vmem:[%s2 + $0x28] sm:$0xff]
    %v332 = vld [vmem:[%s2 + $0x30] sm:$0xff]
    %v333 = vld [vmem:[%s2 + $0x38] sm:$0xff]
    %334 = vset.pattern.permute.xlu0 0
    %335 = vperm.xlu0 %334, %v326
    %v336 = vpop.permute.xlu0 %335
    %337 = vset.pattern.permute.xlu0 0
    %338 = vperm.xlu0 %337, %v327
    %v339 = vpop.permute.xlu0 %338
    %340 = vset.pattern.permute.xlu0 0
    %341 = vperm.xlu0 %340, %v328
    %v342 = vpop.permute.xlu0 %341
    %343 = vset.pattern.permute.xlu0 0
    %344 = vperm.xlu0 %343, %v329
    %v345 = vpop.permute.xlu0 %344
    %346 = vset.pattern.permute.xlu0 0
    %347 = vperm.xlu0 %346, %v330
    %v348 = vpop.permute.xlu0 %347
    %349 = vset.pattern.permute.xlu0 0
    %350 = vperm.xlu0 %349, %v331
    %v351 = vpop.permute.xlu0 %350
    %352 = vset.pattern.permute.xlu0 0
    %353 = vperm.xlu0 %352, %v332
    %v354 = vpop.permute.xlu0 %353
    %355 = vset.pattern.permute.xlu0 0
    %356 = vperm.xlu0 %355, %v333
    %v357 = vpop.permute.xlu0 %356
    %vm358 = vcmp.eq.s32.totalorder %v285, %v336
    %vm359 = vcmp.eq.s32.totalorder %v285, %v339
    %vm360 = vcmp.eq.s32.totalorder %v285, %v342
    %vm361 = vcmp.eq.s32.totalorder %v285, %v345
    %vm362 = vcmp.eq.s32.totalorder %v285, %v348
    %vm363 = vcmp.eq.s32.totalorder %v285, %v351
    %vm364 = vcmp.eq.s32.totalorder %v285, %v354
    %vm365 = vcmp.eq.s32.totalorder %v285, %v357
    %v366 = vsel %vm358, 1, 0
    %v367 = vsel %vm359, 1, 0
    %v368 = vsel %vm360, 1, 0
    %v369 = vsel %vm361, 1, 0
    %v370 = vsel %vm362, 1, 0
    %v371 = vsel %vm363, 1, 0
    %v372 = vsel %vm364, 1, 0
    %v373 = vsel %vm365, 1, 0
    %v374 = vcvt.s32.f32 %v366
    %v375 = vcvt.s32.f32 %v367
    %v376 = vcvt.s32.f32 %v368
    %v377 = vcvt.s32.f32 %v369
    %v378 = vcvt.s32.f32 %v370
    %v379 = vcvt.s32.f32 %v371
    %v380 = vcvt.s32.f32 %v372
    %v381 = vcvt.s32.f32 %v373
    %v382 = vpack.c.bf16 %v375, %v374
    %v383 = vpack.c.bf16 %v377, %v376
    %v384 = vpack.c.bf16 %v379, %v378
    %v385 = vpack.c.bf16 %v381, %v380
    %v386 = vsel %vm318, 1, 0
    %v387 = vsel %vm319, 1, 0
    %v388 = vsel %vm320, 1, 0
    %v389 = vsel %vm321, 1, 0
    %v390 = vsel %vm322, 1, 0
    %v391 = vsel %vm323, 1, 0
    %v392 = vsel %vm324, 1, 0
    %v393 = vsel %vm325, 1, 0
    %v394 = vcvt.s32.f32 %v386
    %v395 = vcvt.s32.f32 %v387
    %v396 = vcvt.s32.f32 %v388
    %v397 = vcvt.s32.f32 %v389
    %v398 = vcvt.s32.f32 %v390
    %v399 = vcvt.s32.f32 %v391
    %v400 = vcvt.s32.f32 %v392
    %v401 = vcvt.s32.f32 %v393
    %v402 = vpack.c.bf16 %v395, %v394
    %v403 = vpack.c.bf16 %v397, %v396
    %v404 = vpack.c.bf16 %v399, %v398
    %v405 = vpack.c.bf16 %v401, %v400
    %v406 = vsub.bf16 %v382, %v402
    %v407 = vsub.bf16 %v383, %v403
    %v408 = vsub.bf16 %v384, %v404
    %v409 = vsub.bf16 %v385, %v405
    %v410 = vlaneseq
    %v411 = vshrl.u32 %v410, 7
    %v412 = vadd.s32 %v411, 8
    %v413 = vld [vmem:[%s4] sm:$0x1]
    %v414 = vlaneseq
    %v415 = vshrl.u32 %v414, 7
    %v416 = vsub.s32 0, %v415
    %v417 = vrot.slane %v413, %v416
    %vm418 = vcmp.eq.s32.totalorder %v411, %v417
    %vm419 = vcmp.eq.s32.totalorder %v412, %v417
    %v420 = vsel %vm418, 1, 0
    %v421 = vsel %vm419, 1, 0
    %v422 = vcvt.s32.f32 %v420
    %v423 = vcvt.s32.f32 %v421
    %v424 = vpack.c.bf16 %v423, %v422
    %v425 = vpack.c.bf16 %v165, %v162
    %v426 = vld [vmem:[%s9] sm:$0xff]
    %v427 = vld [vmem:[%s9 + $0x8] sm:$0xff]
    %v428 = vld [vmem:[%s9 + $0x10] sm:$0xff]
    %v429 = vld [vmem:[%s9 + $0x18] sm:$0xff]
    %v430 = vld [vmem:[%s9 + $0x20] sm:$0xff]
    %v431 = vld [vmem:[%s9 + $0x28] sm:$0xff]
    %v432 = vld [vmem:[%s9 + $0x30] sm:$0xff]
    %v433 = vld [vmem:[%s9 + $0x38] sm:$0xff]
    %v434 = vld [vmem:[%s9 + $0x40] sm:$0xff]
    %v435 = vld [vmem:[%s9 + $0x48] sm:$0xff]
    %v436 = vld [vmem:[%s9 + $0x50] sm:$0xff]
    %v437 = vld [vmem:[%s9 + $0x58] sm:$0xff]
    %v438 = vld [vmem:[%s9 + $0x60] sm:$0xff]
    %v439 = vld [vmem:[%s9 + $0x68] sm:$0xff]
    %v440 = vld [vmem:[%s9 + $0x70] sm:$0xff]
    %v441 = vld [vmem:[%s9 + $0x78] sm:$0xff]
    %v442 = vld [vmem:[%s9 + $0x80] sm:$0xff]
    %v443 = vld [vmem:[%s9 + $0x88] sm:$0xff]
    %v444 = vld [vmem:[%s9 + $0x90] sm:$0xff]
    %v445 = vld [vmem:[%s9 + $0x98] sm:$0xff]
    %v446 = vld [vmem:[%s9 + $0xa0] sm:$0xff]
    %v447 = vld [vmem:[%s9 + $0xa8] sm:$0xff]
    %v448 = vld [vmem:[%s9 + $0xb0] sm:$0xff]
    %v449 = vld [vmem:[%s9 + $0xb8] sm:$0xff]
    %v450 = vld [vmem:[%s9 + $0xc0] sm:$0xff]
    %v451 = vld [vmem:[%s9 + $0xc8] sm:$0xff]
    %v452 = vld [vmem:[%s9 + $0xd0] sm:$0xff]
    %v453 = vld [vmem:[%s9 + $0xd8] sm:$0xff]
    %v454 = vld [vmem:[%s9 + $0xe0] sm:$0xff]
    %v455 = vld [vmem:[%s9 + $0xe8] sm:$0xff]
    %v456 = vld [vmem:[%s9 + $0xf0] sm:$0xff]
    %v457 = vld [vmem:[%s9 + $0xf8] sm:$0xff]
    %v458 = vld [vmem:[%s10] sm:$0xf]
    %v460 = vlaneseq
    %v461 = vshrl.u32 %v460, 7
    %v462 = vsub.s32 0, %v461
    %v463 = vrot.slane %v458, %v462
    %v464 = vlaneseq
    %v465 = vshrl.u32 %v464, 7
    %v466 = vsub.s32 1, %v465
    %v467 = vrot.slane %v458, %v466
    %v468 = vlaneseq
    %v469 = vshrl.u32 %v468, 7
    %v470 = vsub.s32 2, %v469
    %v471 = vrot.slane %v458, %v470
    %v472 = vlaneseq
    %v473 = vshrl.u32 %v472, 7
    %v474 = vsub.s32 3, %v473
    %v475 = vrot.slane %v458, %v474
    %v512 = vunpack.c.l.b16 %v426
    %v513 = vunpack.c.h.b16 %v426
    %v514 = vunpack.c.l.b16 %v427
    %v515 = vunpack.c.h.b16 %v427
    %v516 = vunpack.c.l.b16 %v428
    %v517 = vunpack.c.h.b16 %v428
    %v518 = vunpack.c.l.b16 %v429
    %v519 = vunpack.c.h.b16 %v429
    %v520 = vunpack.c.l.b16 %v430
    %v521 = vunpack.c.h.b16 %v430
    %v522 = vunpack.c.l.b16 %v431
    %v523 = vunpack.c.h.b16 %v431
    %v524 = vunpack.c.l.b16 %v432
    %v525 = vunpack.c.h.b16 %v432
    %v526 = vunpack.c.l.b16 %v433
    %v527 = vunpack.c.h.b16 %v433
    %v528 = vunpack.c.l.b16 %v434
    %v529 = vunpack.c.h.b16 %v434
    %v530 = vunpack.c.l.b16 %v435
    %v531 = vunpack.c.h.b16 %v435
    %v532 = vunpack.c.l.b16 %v436
    %v533 = vunpack.c.h.b16 %v436
    %v534 = vunpack.c.l.b16 %v437
    %v535 = vunpack.c.h.b16 %v437
    %v536 = vunpack.c.l.b16 %v438
    %v537 = vunpack.c.h.b16 %v438
    %v538 = vunpack.c.l.b16 %v439
    %v539 = vunpack.c.h.b16 %v439
    %v540 = vunpack.c.l.b16 %v440
    %v541 = vunpack.c.h.b16 %v440
    %v542 = vunpack.c.l.b16 %v441
    %v543 = vunpack.c.h.b16 %v441
    %v544 = vunpack.c.l.b16 %v442
    %v545 = vunpack.c.h.b16 %v442
    %v546 = vunpack.c.l.b16 %v443
    %v547 = vunpack.c.h.b16 %v443
    %v548 = vunpack.c.l.b16 %v444
    %v549 = vunpack.c.h.b16 %v444
    %v550 = vunpack.c.l.b16 %v445
    %v551 = vunpack.c.h.b16 %v445
    %v552 = vunpack.c.l.b16 %v446
    %v553 = vunpack.c.h.b16 %v446
    %v554 = vunpack.c.l.b16 %v447
    %v555 = vunpack.c.h.b16 %v447
    %v556 = vunpack.c.l.b16 %v448
    %v557 = vunpack.c.h.b16 %v448
    %v558 = vunpack.c.l.b16 %v449
    %v559 = vunpack.c.h.b16 %v449
    %v560 = vunpack.c.l.b16 %v450
    %v561 = vunpack.c.h.b16 %v450
    %v562 = vunpack.c.l.b16 %v451
    %v563 = vunpack.c.h.b16 %v451
    %v564 = vunpack.c.l.b16 %v452
    %v565 = vunpack.c.h.b16 %v452
    %v566 = vunpack.c.l.b16 %v453
    %v567 = vunpack.c.h.b16 %v453
    %v568 = vunpack.c.l.b16 %v454
    %v569 = vunpack.c.h.b16 %v454
    %v570 = vunpack.c.l.b16 %v455
    %v571 = vunpack.c.h.b16 %v455
    %v572 = vunpack.c.l.b16 %v456
    %v573 = vunpack.c.h.b16 %v456
    %v574 = vunpack.c.l.b16 %v457
    %v575 = vunpack.c.h.b16 %v457
    %v576 = vpack.c.b16 %v516, %v512
    %v577 = vpack.c.b16 %v517, %v513
    %v578 = vpack.c.b16 %v518, %v514
    %v579 = vpack.c.b16 %v519, %v515
    %v580 = vpack.c.b16 %v524, %v520
    %v581 = vpack.c.b16 %v525, %v521
    %v582 = vpack.c.b16 %v526, %v522
    %v583 = vpack.c.b16 %v527, %v523
    %v584 = vpack.c.b16 %v532, %v528
    %v585 = vpack.c.b16 %v533, %v529
    %v586 = vpack.c.b16 %v534, %v530
    %v587 = vpack.c.b16 %v535, %v531
    %v588 = vpack.c.b16 %v540, %v536
    %v589 = vpack.c.b16 %v541, %v537
    %v590 = vpack.c.b16 %v542, %v538
    %v591 = vpack.c.b16 %v543, %v539
    %v592 = vpack.c.b16 %v548, %v544
    %v593 = vpack.c.b16 %v549, %v545
    %v594 = vpack.c.b16 %v550, %v546
    %v595 = vpack.c.b16 %v551, %v547
    %v596 = vpack.c.b16 %v556, %v552
    %v597 = vpack.c.b16 %v557, %v553
    %v598 = vpack.c.b16 %v558, %v554
    %v599 = vpack.c.b16 %v559, %v555
    %v600 = vpack.c.b16 %v564, %v560
    %v601 = vpack.c.b16 %v565, %v561
    %v602 = vpack.c.b16 %v566, %v562
    %v603 = vpack.c.b16 %v567, %v563
    %v604 = vpack.c.b16 %v572, %v568
    %v605 = vpack.c.b16 %v573, %v569
    %v606 = vpack.c.b16 %v574, %v570
    %v607 = vpack.c.b16 %v575, %v571
    %640 = vmatprep.subr.bf16.mxu0 %v605
    %641 = vmatpush1.bf16.msra.mxu0 %v604
    %642 = vmatprep.subr.bf16.mxu0 %v601
    %643 = vmatpush1.bf16.msra.mxu0 %v600
    %644 = vmatprep.subr.bf16.mxu0 %v597
    %645 = vmatpush1.bf16.msra.mxu0 %v596
    %646 = vmatprep.subr.bf16.mxu0 %v593
    %647 = vmatpush1.bf16.msra.mxu0 %v592
    %648 = vmatprep.subr.bf16.mxu0 %v589
    %649 = vmatpush1.bf16.msra.mxu0 %v588
    %650 = vmatprep.subr.bf16.mxu0 %v585
    %651 = vmatpush1.bf16.msra.mxu0 %v584
    %652 = vmatprep.subr.bf16.mxu0 %v581
    %653 = vmatpush1.bf16.msra.mxu0 %v580
    %654 = vmatprep.subr.bf16.mxu0 %v577
    %655 = vmatpush1.bf16.msra.mxu0 %v576
    %656 = vmatprep.subr.bf16.mxu0 0
    %657 = vmatpush2.bf16.msra.mxu0 0
    %658 = vmatprep.subr.bf16.mxu0 0
    %659 = vmatpush2.bf16.msra.mxu0 0
    %660 = vmatprep.subr.bf16.mxu0 0
    %661 = vmatpush2.bf16.msra.mxu0 0
    %662 = vmatprep.subr.bf16.mxu0 0
    %663 = vmatpush2.bf16.msra.mxu0 0
    %664 = vmatprep.subr.bf16.mxu0 0
    %665 = vmatpush2.bf16.msra.mxu0 0
    %666 = vmatprep.subr.bf16.mxu0 0
    %667 = vmatpush2.bf16.msra.mxu0 0
    %668 = vmatprep.subr.bf16.mxu0 0
    %669 = vmatpush2.bf16.msra.mxu0 0
    %670 = vmatprep.subr.bf16.mxu0 0
    %671 = vmatpush2.bf16.msra.mxu0 0
    %672 = vmatprep.mubr.bf16.mxu0 0
    %673 = vmatmul.mubr.bf16.gmra.mxu0 %v425
    %v674 = vpop.f32.mrf.mxu0
    %v675 = vadd.f32 %v463, %v674
    %v676 = vpop.f32.mrf.mxu0
    %v677 = vadd.f32 %v467, %v676
    %v678 = vpop.f32.mrf.mxu0
    %v679 = vadd.f32 %v463, %v678
    %v680 = vpop.f32.mrf.mxu0
    %v681 = vadd.f32 %v467, %v680
    %682 = vdwg.mxu0
    %683 = vmatprep.subr.bf16.mxu0 %v607
    %684 = vmatpush1.bf16.msra.mxu0 %v606
    %685 = vmatprep.subr.bf16.mxu0 %v603
    %686 = vmatpush1.bf16.msra.mxu0 %v602
    %687 = vmatprep.subr.bf16.mxu0 %v599
    %688 = vmatpush1.bf16.msra.mxu0 %v598
    %689 = vmatprep.subr.bf16.mxu0 %v595
    %690 = vmatpush1.bf16.msra.mxu0 %v594
    %691 = vmatprep.subr.bf16.mxu0 %v591
    %692 = vmatpush1.bf16.msra.mxu0 %v590
    %693 = vmatprep.subr.bf16.mxu0 %v587
    %694 = vmatpush1.bf16.msra.mxu0 %v586
    %695 = vmatprep.subr.bf16.mxu0 %v583
    %696 = vmatpush1.bf16.msra.mxu0 %v582
    %697 = vmatprep.subr.bf16.mxu0 %v579
    %698 = vmatpush1.bf16.msra.mxu0 %v578
    %699 = vmatprep.subr.bf16.mxu0 0
    %700 = vmatpush2.bf16.msra.mxu0 0
    %701 = vmatprep.subr.bf16.mxu0 0
    %702 = vmatpush2.bf16.msra.mxu0 0
    %703 = vmatprep.subr.bf16.mxu0 0
    %704 = vmatpush2.bf16.msra.mxu0 0
    %705 = vmatprep.subr.bf16.mxu0 0
    %706 = vmatpush2.bf16.msra.mxu0 0
    %707 = vmatprep.subr.bf16.mxu0 0
    %708 = vmatpush2.bf16.msra.mxu0 0
    %709 = vmatprep.subr.bf16.mxu0 0
    %710 = vmatpush2.bf16.msra.mxu0 0
    %711 = vmatprep.subr.bf16.mxu0 0
    %712 = vmatpush2.bf16.msra.mxu0 0
    %713 = vmatprep.subr.bf16.mxu0 0
    %714 = vmatpush2.bf16.msra.mxu0 0
    %715 = vmatprep.mubr.bf16.mxu0 0
    %716 = vmatmul.mubr.bf16.gmra.mxu0 %v425
    %v717 = vpop.f32.mrf.mxu0
    %v718 = vadd.f32 %v471, %v717
    %v719 = vpop.f32.mrf.mxu0
    %v720 = vadd.f32 %v475, %v719
    %v721 = vpop.f32.mrf.mxu0
    %v722 = vadd.f32 %v471, %v721
    %v723 = vpop.f32.mrf.mxu0
    %v724 = vadd.f32 %v475, %v723
    %725 = vdwg.mxu0
    %v726 = vpack.c.bf16 %v679, %v675
    %v727 = vpack.c.bf16 %v681, %v677
    %v728 = vpack.c.bf16 %v722, %v718
    %vm729 = vcmask 130048
    %v731 = vsel %vm729, %v402, 0
    %v734 = vsel %vm729, %v403, 0
    %v737 = vsel %vm729, %v404, 0
    %v740 = vsel %vm729, %v405, 0
    %742 = vmatprep.subr.bf16.mxu0 0
    %743 = vmatpush1.bf16.msra.mxu0 0
    %744 = vmatprep.subr.bf16.mxu0 0
    %745 = vmatpush1.bf16.msra.mxu0 0
    %746 = vmatprep.subr.bf16.mxu0 0
    %747 = vmatpush1.bf16.msra.mxu0 0
    %748 = vmatprep.subr.bf16.mxu0 0
    %749 = vmatpush1.bf16.msra.mxu0 0
    %750 = vmatprep.subr.bf16.mxu0 0
    %751 = vmatpush1.bf16.msra.mxu0 0
    %752 = vmatprep.subr.bf16.mxu0 0
    %753 = vmatpush1.bf16.msra.mxu0 0
    %754 = vmatprep.subr.bf16.mxu0 0
    %755 = vmatpush1.bf16.msra.mxu0 0
    %756 = vmatprep.subr.bf16.mxu0 0
    %757 = vmatpush1.bf16.msra.mxu0 %v726
    %758 = vmatprep.subr.bf16.mxu0 0
    %759 = vmatpush2.bf16.msra.mxu0 0
    %760 = vmatprep.subr.bf16.mxu0 0
    %761 = vmatpush2.bf16.msra.mxu0 0
    %762 = vmatprep.subr.bf16.mxu0 0
    %763 = vmatpush2.bf16.msra.mxu0 0
    %764 = vmatprep.subr.bf16.mxu0 0
    %765 = vmatpush2.bf16.msra.mxu0 0
    %766 = vmatprep.subr.bf16.mxu0 0
    %767 = vmatpush2.bf16.msra.mxu0 0
    %768 = vmatprep.subr.bf16.mxu0 0
    %769 = vmatpush2.bf16.msra.mxu0 0
    %770 = vmatprep.subr.bf16.mxu0 0
    %771 = vmatpush2.bf16.msra.mxu0 0
    %772 = vmatprep.subr.bf16.mxu0 0
    %773 = vmatpush2.bf16.msra.mxu0 0
    %774 = vmatprep.mubr.bf16.mxu0 0
    %775 = vmatmul.mubr.bf16.gmra.mxu0 %v731
    %v776 = vpop.f32.mrf.mxu0
    %v777 = vadd.f32 0.0, %v776
    %v778 = vpop.f32.mrf.mxu0
    %v779 = vpop.f32.mrf.mxu0
    %v780 = vadd.f32 0.0, %v779
    %v781 = vpop.f32.mrf.mxu0
    %782 = vmatprep.mubr.bf16.mxu0 0
    %783 = vmatmul.mubr.bf16.gmra.mxu0 %v734
    %v784 = vpop.f32.mrf.mxu0
    %v785 = vadd.f32 0.0, %v784
    %v786 = vpop.f32.mrf.mxu0
    %v787 = vpop.f32.mrf.mxu0
    %v788 = vadd.f32 0.0, %v787
    %v789 = vpop.f32.mrf.mxu0
    %790 = vmatprep.mubr.bf16.mxu0 0
    %791 = vmatmul.mubr.bf16.gmra.mxu0 %v737
    %v792 = vpop.f32.mrf.mxu0
    %v793 = vadd.f32 0.0, %v792
    %v794 = vpop.f32.mrf.mxu0
    %v795 = vpop.f32.mrf.mxu0
    %v796 = vadd.f32 0.0, %v795
    %v797 = vpop.f32.mrf.mxu0
    %798 = vmatprep.mubr.bf16.mxu0 0
    %799 = vmatmul.mubr.bf16.gmra.mxu0 %v740
    %v800 = vpop.f32.mrf.mxu0
    %v801 = vadd.f32 0.0, %v800
    %v802 = vpop.f32.mrf.mxu0
    %v803 = vpop.f32.mrf.mxu0
    %v804 = vadd.f32 0.0, %v803
    %v805 = vpop.f32.mrf.mxu0
    %806 = vdwg.mxu0
    %v808 = vsel %vm729, %v382, 0
    %v811 = vsel %vm729, %v383, 0
    %v814 = vsel %vm729, %v384, 0
    %v817 = vsel %vm729, %v385, 0
    %819 = vmatprep.subr.bf16.mxu0 0
    %820 = vmatpush1.bf16.msra.mxu0 0
    %821 = vmatprep.subr.bf16.mxu0 0
    %822 = vmatpush1.bf16.msra.mxu0 0
    %823 = vmatprep.subr.bf16.mxu0 0
    %824 = vmatpush1.bf16.msra.mxu0 0
    %825 = vmatprep.subr.bf16.mxu0 0
    %826 = vmatpush1.bf16.msra.mxu0 0
    %827 = vmatprep.subr.bf16.mxu0 0
    %828 = vmatpush1.bf16.msra.mxu0 0
    %829 = vmatprep.subr.bf16.mxu0 0
    %830 = vmatpush1.bf16.msra.mxu0 0
    %831 = vmatprep.subr.bf16.mxu0 0
    %832 = vmatpush1.bf16.msra.mxu0 0
    %833 = vmatprep.subr.bf16.mxu0 %v728
    %834 = vmatpush1.bf16.msra.mxu0 %v727
    %835 = vmatprep.subr.bf16.mxu0 0
    %836 = vmatpush2.bf16.msra.mxu0 0
    %837 = vmatprep.subr.bf16.mxu0 0
    %838 = vmatpush2.bf16.msra.mxu0 0
    %839 = vmatprep.subr.bf16.mxu0 0
    %840 = vmatpush2.bf16.msra.mxu0 0
    %841 = vmatprep.subr.bf16.mxu0 0
    %842 = vmatpush2.bf16.msra.mxu0 0
    %843 = vmatprep.subr.bf16.mxu0 0
    %844 = vmatpush2.bf16.msra.mxu0 0
    %845 = vmatprep.subr.bf16.mxu0 0
    %846 = vmatpush2.bf16.msra.mxu0 0
    %847 = vmatprep.subr.bf16.mxu0 0
    %848 = vmatpush2.bf16.msra.mxu0 0
    %849 = vmatprep.subr.bf16.mxu0 0
    %850 = vmatpush2.bf16.msra.mxu0 0
    %851 = vmatprep.mubr.bf16.mxu0 0
    %852 = vmatmul.mubr.bf16.gmra.mxu0 %v808
    %v853 = vpop.f32.mrf.mxu0
    %v854 = vadd.f32 0.0, %v853
    %v855 = vpop.f32.mrf.mxu0
    %v856 = vadd.f32 0.0, %v855
    %v857 = vpop.f32.mrf.mxu0
    %v858 = vadd.f32 0.0, %v857
    %v859 = vpop.f32.mrf.mxu0
    %v860 = vadd.f32 0.0, %v859
    %861 = vmatprep.mubr.bf16.mxu0 0
    %862 = vmatmul.mubr.bf16.gmra.mxu0 %v811
    %v863 = vpop.f32.mrf.mxu0
    %v864 = vadd.f32 0.0, %v863
    %v865 = vpop.f32.mrf.mxu0
    %v866 = vadd.f32 0.0, %v865
    %v867 = vpop.f32.mrf.mxu0
    %v868 = vadd.f32 0.0, %v867
    %v869 = vpop.f32.mrf.mxu0
    %v870 = vadd.f32 0.0, %v869
    %871 = vmatprep.mubr.bf16.mxu0 0
    %872 = vmatmul.mubr.bf16.gmra.mxu0 %v814
    %v873 = vpop.f32.mrf.mxu0
    %v874 = vadd.f32 0.0, %v873
    %v875 = vpop.f32.mrf.mxu0
    %v876 = vadd.f32 0.0, %v875
    %v877 = vpop.f32.mrf.mxu0
    %v878 = vadd.f32 0.0, %v877
    %v879 = vpop.f32.mrf.mxu0
    %v880 = vadd.f32 0.0, %v879
    %881 = vmatprep.mubr.bf16.mxu0 0
    %882 = vmatmul.mubr.bf16.gmra.mxu0 %v817
    %v883 = vpop.f32.mrf.mxu0
    %v884 = vadd.f32 0.0, %v883
    %v885 = vpop.f32.mrf.mxu0
    %v886 = vadd.f32 0.0, %v885
    %v887 = vpop.f32.mrf.mxu0
    %v888 = vadd.f32 0.0, %v887
    %v889 = vpop.f32.mrf.mxu0
    %v890 = vadd.f32 0.0, %v889
    %891 = vdwg.mxu0
    %v892 = vmul.f32 %v777, %v854
    %v893 = vmul.f32 %v780, %v858
    %v894 = vmul.f32 %v785, %v864
    %v895 = vmul.f32 %v788, %v868
    %v896 = vmul.f32 %v793, %v874
    %v897 = vmul.f32 %v796, %v878
    %v898 = vmul.f32 %v801, %v884
    %v899 = vmul.f32 %v804, %v888
    %900 = vadd.xlane.f32.xlu0 %v892
    %v901 = vpop.xlane.xlu0 %900
    %902 = vadd.xlane.f32.xlu0 %v893
    %v903 = vpop.xlane.xlu0 %902
    %904 = vadd.xlane.f32.xlu0 %v894
    %v905 = vpop.xlane.xlu0 %904
    %906 = vadd.xlane.f32.xlu0 %v895
    %v907 = vpop.xlane.xlu0 %906
    %908 = vadd.xlane.f32.xlu0 %v896
    %v909 = vpop.xlane.xlu0 %908
    %910 = vadd.xlane.f32.xlu0 %v897
    %v911 = vpop.xlane.xlu0 %910
    %912 = vadd.xlane.f32.xlu0 %v898
    %v913 = vpop.xlane.xlu0 %912
    %914 = vadd.xlane.f32.xlu0 %v899
    %v915 = vpop.xlane.xlu0 %914
    %v916 = vmul.f32 %v901, 0.088388346
    %v917 = vmul.f32 %v903, 0.088388346
    %v918 = vmul.f32 %v905, 0.088388346
    %v919 = vmul.f32 %v907, 0.088388346
    %v920 = vmul.f32 %v909, 0.088388346
    %v921 = vmul.f32 %v911, 0.088388346
    %v922 = vmul.f32 %v913, 0.088388346
    %v923 = vmul.f32 %v915, 0.088388346
    %v924 = vsel %vm318, %v916, -1e+30
    %v925 = vsel %vm319, %v917, -1e+30
    %v926 = vsel %vm320, %v918, -1e+30
    %v927 = vsel %vm321, %v919, -1e+30
    %v928 = vsel %vm322, %v920, -1e+30
    %v929 = vsel %vm323, %v921, -1e+30
    %v930 = vsel %vm324, %v922, -1e+30
    %v931 = vsel %vm325, %v923, -1e+30
    %v932 = vsel %vm729, %v924, -inf
    %v933 = vsel %vm729, %v925, -inf
    %v934 = vsel %vm729, %v926, -inf
    %v935 = vsel %vm729, %v927, -inf
    %v936 = vsel %vm729, %v928, -inf
    %v937 = vmax.f32 %v932, %v936
    %v938 = vsel %vm729, %v929, -inf
    %v939 = vmax.f32 %v933, %v938
    %v940 = vsel %vm729, %v930, -inf
    %v941 = vmax.f32 %v934, %v940
    %v942 = vsel %vm729, %v931, -inf
    %v943 = vmax.f32 %v935, %v942
    %v944 = vmax.f32 %v937, %v939
    %v945 = vmax.f32 %v941, %v943
    %v946 = vmax.f32 %v944, %v945
    %v947 = vrot.slane %v946, 4
    %v948 = vmax.f32 %v946, %v947
    %v949 = vrot.slane %v948, 2
    %v950 = vmax.f32 %v948, %v949
    %v951 = vrot.slane %v950, 1
    %v952 = vmax.f32 %v950, %v951
    %v953 = vsel %vm318, %v952, -1e+30
    %v954 = vsel %vm319, %v952, -1e+30
    %v955 = vsel %vm320, %v952, -1e+30
    %v956 = vsel %vm321, %v952, -1e+30
    %v957 = vsel %vm322, %v952, -1e+30
    %v958 = vsel %vm323, %v952, -1e+30
    %v959 = vsel %vm324, %v952, -1e+30
    %v960 = vsel %vm325, %v952, -1e+30
    %v961 = vsel %vm729, %v953, -inf
    %962 = vmax.xlane.f32.xlu0 %v961
    %v963 = vpop.xlane.xlu0 %962
    %v964 = vsel %vm729, %v954, -inf
    %965 = vmax.xlane.f32.xlu0 %v964
    %v966 = vpop.xlane.xlu0 %965
    %v967 = vsel %vm729, %v955, -inf
    %968 = vmax.xlane.f32.xlu0 %v967
    %v969 = vpop.xlane.xlu0 %968
    %v970 = vsel %vm729, %v956, -inf
    %971 = vmax.xlane.f32.xlu0 %v970
    %v972 = vpop.xlane.xlu0 %971
    %v973 = vsel %vm729, %v957, -inf
    %974 = vmax.xlane.f32.xlu0 %v973
    %v975 = vpop.xlane.xlu0 %974
    %v976 = vsel %vm729, %v958, -inf
    %977 = vmax.xlane.f32.xlu0 %v976
    %v978 = vpop.xlane.xlu0 %977
    %v979 = vsel %vm729, %v959, -inf
    %980 = vmax.xlane.f32.xlu0 %v979
    %v981 = vpop.xlane.xlu0 %980
    %v982 = vsel %vm729, %v960, -inf
    %983 = vmax.xlane.f32.xlu0 %v982
    %v984 = vpop.xlane.xlu0 %983
    %v985 = vsub.f32 %v916, %v963
    %v986 = vsub.f32 %v917, %v966
    %v987 = vsub.f32 %v918, %v969
    %v988 = vsub.f32 %v919, %v972
    %v989 = vsub.f32 %v920, %v975
    %v990 = vsub.f32 %v921, %v978
    %v991 = vsub.f32 %v922, %v981
    %v992 = vsub.f32 %v923, %v984
    %v993 = vmul.f32 %v985, 1.442695
    %v994 = vpow.pop %v993
    %v995 = vmul.f32 %v986, 1.442695
    %v996 = vpow.pop %v995
    %v997 = vmul.f32 %v987, 1.442695
    %v998 = vpow.pop %v997
    %v999 = vmul.f32 %v988, 1.442695
    %v1000 = vpow.pop %v999
    %v1001 = vmul.f32 %v989, 1.442695
    %v1002 = vpow.pop %v1001
    %v1003 = vmul.f32 %v990, 1.442695
    %v1004 = vpow.pop %v1003
    %v1005 = vmul.f32 %v991, 1.442695
    %v1006 = vpow.pop %v1005
    %v1007 = vmul.f32 %v992, 1.442695
    %v1008 = vpow.pop %v1007
    %v1009 = vsel %vm318, %v994, 0.0
    %v1010 = vsel %vm319, %v996, 0.0
    %v1011 = vsel %vm320, %v998, 0.0
    %v1012 = vsel %vm321, %v1000, 0.0
    %v1013 = vsel %vm322, %v1002, 0.0
    %v1014 = vsel %vm323, %v1004, 0.0
    %v1015 = vsel %vm324, %v1006, 0.0
    %v1016 = vsel %vm325, %v1008, 0.0
    %v1017 = vsel %vm729, %v1009, 0.0
    %v1018 = vsel %vm729, %v1010, 0.0
    %v1019 = vadd.f32 %v1017, %v1018
    %v1020 = vsel %vm729, %v1011, 0.0
    %v1021 = vadd.f32 %v1019, %v1020
    %v1022 = vsel %vm729, %v1012, 0.0
    %v1023 = vadd.f32 %v1021, %v1022
    %v1024 = vsel %vm729, %v1013, 0.0
    %v1025 = vadd.f32 %v1023, %v1024
    %v1026 = vsel %vm729, %v1014, 0.0
    %v1027 = vadd.f32 %v1025, %v1026
    %v1028 = vsel %vm729, %v1015, 0.0
    %v1029 = vadd.f32 %v1027, %v1028
    %v1030 = vsel %vm729, %v1016, 0.0
    %v1031 = vadd.f32 %v1029, %v1030
    %v1032 = vrot.slane %v1031, 4
    %v1033 = vadd.f32 %v1031, %v1032
    %v1034 = vrot.slane %v1033, 2
    %v1035 = vadd.f32 %v1033, %v1034
    %v1036 = vrot.slane %v1035, 1
    %v1037 = vadd.f32 %v1035, %v1036
    %v1038 = vsel %vm318, %v1037, 0.0
    %v1039 = vsel %vm319, %v1037, 0.0
    %v1040 = vsel %vm320, %v1037, 0.0
    %v1041 = vsel %vm321, %v1037, 0.0
    %v1042 = vsel %vm322, %v1037, 0.0
    %v1043 = vsel %vm323, %v1037, 0.0
    %v1044 = vsel %vm324, %v1037, 0.0
    %v1045 = vsel %vm325, %v1037, 0.0
    %v1046 = vsel %vm729, %v1038, 0.0
    %1047 = vadd.xlane.f32.xlu0 %v1046
    %v1048 = vpop.xlane.xlu0 %1047
    %v1049 = vsel %vm729, %v1039, 0.0
    %1050 = vadd.xlane.f32.xlu0 %v1049
    %v1051 = vpop.xlane.xlu0 %1050
    %v1052 = vsel %vm729, %v1040, 0.0
    %1053 = vadd.xlane.f32.xlu0 %v1052
    %v1054 = vpop.xlane.xlu0 %1053
    %v1055 = vsel %vm729, %v1041, 0.0
    %1056 = vadd.xlane.f32.xlu0 %v1055
    %v1057 = vpop.xlane.xlu0 %1056
    %v1058 = vsel %vm729, %v1042, 0.0
    %1059 = vadd.xlane.f32.xlu0 %v1058
    %v1060 = vpop.xlane.xlu0 %1059
    %v1061 = vsel %vm729, %v1043, 0.0
    %1062 = vadd.xlane.f32.xlu0 %v1061
    %v1063 = vpop.xlane.xlu0 %1062
    %v1064 = vsel %vm729, %v1044, 0.0
    %1065 = vadd.xlane.f32.xlu0 %v1064
    %v1066 = vpop.xlane.xlu0 %1065
    %v1067 = vsel %vm729, %v1045, 0.0
    %1068 = vadd.xlane.f32.xlu0 %v1067
    %v1069 = vpop.xlane.xlu0 %1068
    %v1070 = vrcp.pop %v1048
    %v1071 = vrcp.pop %v1051
    %v1072 = vrcp.pop %v1054
    %v1073 = vrcp.pop %v1057
    %v1074 = vrcp.pop %v1060
    %v1075 = vrcp.pop %v1063
    %v1076 = vrcp.pop %v1066
    %v1077 = vrcp.pop %v1069
    %v1078 = vmul.f32 %v994, %v1070
    %v1079 = vmul.f32 %v996, %v1071
    %v1080 = vmul.f32 %v998, %v1072
    %v1081 = vmul.f32 %v1000, %v1073
    %v1082 = vmul.f32 %v1002, %v1074
    %v1083 = vmul.f32 %v1004, %v1075
    %v1084 = vmul.f32 %v1006, %v1076
    %v1085 = vmul.f32 %v1008, %v1077
    %v1086 = vmul.f32 %v1078, %v856
    %v1087 = vmul.f32 %v1079, %v860
    %v1088 = vmul.f32 %v1080, %v866
    %v1089 = vmul.f32 %v1081, %v870
    %v1090 = vmul.f32 %v1082, %v876
    %v1091 = vmul.f32 %v1083, %v880
    %v1092 = vmul.f32 %v1084, %v886
    %v1093 = vmul.f32 %v1085, %v890
    %v1094 = vpack.c.bf16 %v1087, %v1086
    %v1095 = vpack.c.bf16 %v1089, %v1088
    %v1096 = vpack.c.bf16 %v1091, %v1090
    %v1097 = vpack.c.bf16 %v1093, %v1092
    %vm1098 = vcmask 523264
    %v1100 = vsel %vm1098, %v424, 0
    %1102 = vmatprep.subr.bf16.mxu0 0
    %1103 = vmatpush1.bf16.msra.mxu0 0
    %1104 = vmatprep.subr.bf16.mxu0 0
    %1105 = vmatpush1.bf16.msra.mxu0 0
    %1106 = vmatprep.subr.bf16.mxu0 0
    %1107 = vmatpush1.bf16.msra.mxu0 0
    %1108 = vmatprep.subr.bf16.mxu0 0
    %1109 = vmatpush1.bf16.msra.mxu0 0
    %1110 = vmatprep.subr.bf16.mxu0 0
    %1111 = vmatpush1.bf16.msra.mxu0 %v1097
    %1112 = vmatprep.subr.bf16.mxu0 0
    %1113 = vmatpush1.bf16.msra.mxu0 %v1096
    %1114 = vmatprep.subr.bf16.mxu0 0
    %1115 = vmatpush1.bf16.msra.mxu0 %v1095
    %1116 = vmatprep.subr.bf16.mxu0 0
    %1117 = vmatpush1.bf16.msra.mxu0 %v1094
    %1118 = vmatprep.subr.bf16.mxu0 0
    %1119 = vmatpush2.bf16.msra.mxu0 0
    %1120 = vmatprep.subr.bf16.mxu0 0
    %1121 = vmatpush2.bf16.msra.mxu0 0
    %1122 = vmatprep.subr.bf16.mxu0 0
    %1123 = vmatpush2.bf16.msra.mxu0 0
    %1124 = vmatprep.subr.bf16.mxu0 0
    %1125 = vmatpush2.bf16.msra.mxu0 0
    %1126 = vmatprep.subr.bf16.mxu0 0
    %1127 = vmatpush2.bf16.msra.mxu0 0
    %1128 = vmatprep.subr.bf16.mxu0 0
    %1129 = vmatpush2.bf16.msra.mxu0 0
    %1130 = vmatprep.subr.bf16.mxu0 0
    %1131 = vmatpush2.bf16.msra.mxu0 0
    %1132 = vmatprep.subr.bf16.mxu0 0
    %1133 = vmatpush2.bf16.msra.mxu0 0
    %1134 = vmatprep.mubr.bf16.mxu0 0
    %1135 = vmatmul.mubr.bf16.gmra.mxu0 %v1100
    %v1136 = vpop.f32.mrf.mxu0
    %v1137 = vadd.f32 %v720, %v1136
    %v1138 = vpop.f32.mrf.mxu0
    %v1139 = vpop.f32.mrf.mxu0
    %v1140 = vadd.f32 %v724, %v1139
    %v1141 = vpop.f32.mrf.mxu0
    %1142 = vdwg.mxu0
    %v1143 = vpack.c.bf16 %v257, %v254
    %v1144 = vpack.c.bf16 %v265, %v262
    %v1145 = vpack.c.bf16 %v273, %v270
    %v1146 = vpack.c.bf16 %v281, %v278
    %v1147 = vld [vmem:[#allocation4] sm:$0xff]
    %v1148 = vld [vmem:[#allocation4 + $0x8] sm:$0xf]
    %v1149 = vld [vmem:[#allocation4 + $0xc] sm:$0xff]
    %v1150 = vld [vmem:[#allocation4 + $0x14] sm:$0xf]
    %v1151 = vld [vmem:[#allocation4 + $0x18] sm:$0xff]
    %v1152 = vld [vmem:[#allocation4 + $0x20] sm:$0xf]
    %v1153 = vld [vmem:[#allocation4 + $0x24] sm:$0xff]
    %v1154 = vld [vmem:[#allocation4 + $0x2c] sm:$0xf]
    %v1155 = vld [vmem:[#allocation4 + $0x30] sm:$0xff]
    %v1156 = vld [vmem:[#allocation4 + $0x38] sm:$0xf]
    %v1157 = vld [vmem:[#allocation4 + $0x3c] sm:$0xff]
    %v1158 = vld [vmem:[#allocation4 + $0x44] sm:$0xf]
    %v1159 = vld [vmem:[#allocation4 + $0x48] sm:$0xff]
    %v1160 = vld [vmem:[#allocation4 + $0x50] sm:$0xf]
    %v1161 = vld [vmem:[#allocation4 + $0x54] sm:$0xff]
    %v1162 = vld [vmem:[#allocation4 + $0x5c] sm:$0xf]
    %v1163 = vld [vmem:[#allocation4 + $0x60] sm:$0xff]
    %v1164 = vld [vmem:[#allocation4 + $0x68] sm:$0xf]
    %v1165 = vld [vmem:[#allocation4 + $0x6c] sm:$0xff]
    %v1166 = vld [vmem:[#allocation4 + $0x74] sm:$0xf]
    %v1167 = vld [vmem:[#allocation4 + $0x78] sm:$0xff]
    %v1168 = vld [vmem:[#allocation4 + $0x80] sm:$0xf]
    %v1169 = vld [vmem:[#allocation4 + $0x84] sm:$0xff]
    %v1170 = vld [vmem:[#allocation4 + $0x8c] sm:$0xf]
    %v1171 = vld [vmem:[#allocation4 + $0x90] sm:$0xff]
    %v1172 = vld [vmem:[#allocation4 + $0x98] sm:$0xf]
    %v1173 = vld [vmem:[#allocation4 + $0x9c] sm:$0xff]
    %v1174 = vld [vmem:[#allocation4 + $0xa4] sm:$0xf]
    %v1175 = vld [vmem:[#allocation4 + $0xa8] sm:$0xff]
    %v1176 = vld [vmem:[#allocation4 + $0xb0] sm:$0xf]
    %v1177 = vld [vmem:[#allocation4 + $0xb4] sm:$0xff]
    %v1178 = vld [vmem:[#allocation4 + $0xbc] sm:$0xf]
    %v1179 = vld [vmem:[%s14] sm:$0x7]
    %v1181 = vlaneseq
    %v1182 = vshrl.u32 %v1181, 7
    %v1183 = vsub.s32 0, %v1182
    %v1184 = vrot.slane %v1179, %v1183
    %v1185 = vlaneseq
    %v1186 = vshrl.u32 %v1185, 7
    %v1187 = vsub.s32 1, %v1186
    %v1188 = vrot.slane %v1179, %v1187
    %v1189 = vlaneseq
    %v1190 = vshrl.u32 %v1189, 7
    %v1191 = vsub.s32 2, %v1190
    %v1192 = vrot.slane %v1179, %v1191
    %v1228 = vunpack.c.l.b16 %v1147
    %v1229 = vunpack.c.h.b16 %v1147
    %v1230 = vunpack.c.l.b16 %v1148
    %v1231 = vunpack.c.l.b16 %v1149
    %v1232 = vunpack.c.h.b16 %v1149
    %v1233 = vunpack.c.l.b16 %v1150
    %v1234 = vunpack.c.l.b16 %v1151
    %v1235 = vunpack.c.h.b16 %v1151
    %v1236 = vunpack.c.l.b16 %v1152
    %v1237 = vunpack.c.l.b16 %v1153
    %v1238 = vunpack.c.h.b16 %v1153
    %v1239 = vunpack.c.l.b16 %v1154
    %v1240 = vunpack.c.l.b16 %v1155
    %v1241 = vunpack.c.h.b16 %v1155
    %v1242 = vunpack.c.l.b16 %v1156
    %v1243 = vunpack.c.l.b16 %v1157
    %v1244 = vunpack.c.h.b16 %v1157
    %v1245 = vunpack.c.l.b16 %v1158
    %v1246 = vunpack.c.l.b16 %v1159
    %v1247 = vunpack.c.h.b16 %v1159
    %v1248 = vunpack.c.l.b16 %v1160
    %v1249 = vunpack.c.l.b16 %v1161
    %v1250 = vunpack.c.h.b16 %v1161
    %v1251 = vunpack.c.l.b16 %v1162
    %v1252 = vunpack.c.l.b16 %v1163
    %v1253 = vunpack.c.h.b16 %v1163
    %v1254 = vunpack.c.l.b16 %v1164
    %v1255 = vunpack.c.l.b16 %v1165
    %v1256 = vunpack.c.h.b16 %v1165
    %v1257 = vunpack.c.l.b16 %v1166
    %v1258 = vunpack.c.l.b16 %v1167
    %v1259 = vunpack.c.h.b16 %v1167
    %v1260 = vunpack.c.l.b16 %v1168
    %v1261 = vunpack.c.l.b16 %v1169
    %v1262 = vunpack.c.h.b16 %v1169
    %v1263 = vunpack.c.l.b16 %v1170
    %v1264 = vunpack.c.l.b16 %v1171
    %v1265 = vunpack.c.h.b16 %v1171
    %v1266 = vunpack.c.l.b16 %v1172
    %v1267 = vunpack.c.l.b16 %v1173
    %v1268 = vunpack.c.h.b16 %v1173
    %v1269 = vunpack.c.l.b16 %v1174
    %v1270 = vunpack.c.l.b16 %v1175
    %v1271 = vunpack.c.h.b16 %v1175
    %v1272 = vunpack.c.l.b16 %v1176
    %v1273 = vunpack.c.l.b16 %v1177
    %v1274 = vunpack.c.h.b16 %v1177
    %v1275 = vunpack.c.l.b16 %v1178
    %v1276 = vpack.c.b16 %v1231, %v1228
    %v1277 = vpack.c.b16 %v1232, %v1229
    %v1278 = vpack.c.b16 %v1233, %v1230
    %v1279 = vpack.c.b16 %v1237, %v1234
    %v1280 = vpack.c.b16 %v1238, %v1235
    %v1281 = vpack.c.b16 %v1239, %v1236
    %v1282 = vpack.c.b16 %v1243, %v1240
    %v1283 = vpack.c.b16 %v1244, %v1241
    %v1284 = vpack.c.b16 %v1245, %v1242
    %v1285 = vpack.c.b16 %v1249, %v1246
    %v1286 = vpack.c.b16 %v1250, %v1247
    %v1287 = vpack.c.b16 %v1251, %v1248
    %v1288 = vpack.c.b16 %v1255, %v1252
    %v1289 = vpack.c.b16 %v1256, %v1253
    %v1290 = vpack.c.b16 %v1257, %v1254
    %v1291 = vpack.c.b16 %v1261, %v1258
    %v1292 = vpack.c.b16 %v1262, %v1259
    %v1293 = vpack.c.b16 %v1263, %v1260
    %v1294 = vpack.c.b16 %v1267, %v1264
    %v1295 = vpack.c.b16 %v1268, %v1265
    %v1296 = vpack.c.b16 %v1269, %v1266
    %v1297 = vpack.c.b16 %v1273, %v1270
    %v1298 = vpack.c.b16 %v1274, %v1271
    %v1299 = vpack.c.b16 %v1275, %v1272
    %1324 = vmatprep.subr.bf16.mxu0 %v1298
    %1325 = vmatpush1.bf16.msra.mxu0 %v1297
    %1326 = vmatprep.subr.bf16.mxu0 %v1295
    %1327 = vmatpush1.bf16.msra.mxu0 %v1294
    %1328 = vmatprep.subr.bf16.mxu0 %v1292
    %1329 = vmatpush1.bf16.msra.mxu0 %v1291
    %1330 = vmatprep.subr.bf16.mxu0 %v1289
    %1331 = vmatpush1.bf16.msra.mxu0 %v1288
    %1332 = vmatprep.subr.bf16.mxu0 %v1286
    %1333 = vmatpush1.bf16.msra.mxu0 %v1285
    %1334 = vmatprep.subr.bf16.mxu0 %v1283
    %1335 = vmatpush1.bf16.msra.mxu0 %v1282
    %1336 = vmatprep.subr.bf16.mxu0 %v1280
    %1337 = vmatpush1.bf16.msra.mxu0 %v1279
    %1338 = vmatprep.subr.bf16.mxu0 %v1277
    %1339 = vmatpush1.bf16.msra.mxu0 %v1276
    %1340 = vmatprep.subr.bf16.mxu0 0
    %1341 = vmatpush2.bf16.msra.mxu0 0
    %1342 = vmatprep.subr.bf16.mxu0 0
    %1343 = vmatpush2.bf16.msra.mxu0 0
    %1344 = vmatprep.subr.bf16.mxu0 0
    %1345 = vmatpush2.bf16.msra.mxu0 0
    %1346 = vmatprep.subr.bf16.mxu0 0
    %1347 = vmatpush2.bf16.msra.mxu0 0
    %1348 = vmatprep.subr.bf16.mxu0 0
    %1349 = vmatpush2.bf16.msra.mxu0 0
    %1350 = vmatprep.subr.bf16.mxu0 0
    %1351 = vmatpush2.bf16.msra.mxu0 0
    %1352 = vmatprep.subr.bf16.mxu0 0
    %1353 = vmatpush2.bf16.msra.mxu0 0
    %1354 = vmatprep.subr.bf16.mxu0 0
    %1355 = vmatpush2.bf16.msra.mxu0 0
    %1356 = vmatprep.mubr.bf16.mxu0 0
    %1357 = vmatmul.mubr.bf16.gmra.mxu0 %v1143
    %v1358 = vpop.f32.mrf.mxu0
    %v1359 = vadd.f32 %v1184, %v1358
    %v1360 = vpop.f32.mrf.mxu0
    %v1361 = vadd.f32 %v1188, %v1360
    %v1362 = vpop.f32.mrf.mxu0
    %v1363 = vadd.f32 %v1184, %v1362
    %v1364 = vpop.f32.mrf.mxu0
    %v1365 = vadd.f32 %v1188, %v1364
    %1366 = vmatprep.mubr.bf16.mxu0 0
    %1367 = vmatmul.mubr.bf16.gmra.mxu0 %v1144
    %v1368 = vpop.f32.mrf.mxu0
    %v1369 = vadd.f32 %v1184, %v1368
    %v1370 = vpop.f32.mrf.mxu0
    %v1371 = vadd.f32 %v1188, %v1370
    %v1372 = vpop.f32.mrf.mxu0
    %v1373 = vadd.f32 %v1184, %v1372
    %v1374 = vpop.f32.mrf.mxu0
    %v1375 = vadd.f32 %v1188, %v1374
    %1376 = vmatprep.mubr.bf16.mxu0 0
    %1377 = vmatmul.mubr.bf16.gmra.mxu0 %v1145
    %v1378 = vpop.f32.mrf.mxu0
    %v1379 = vadd.f32 %v1184, %v1378
    %v1380 = vpop.f32.mrf.mxu0
    %v1381 = vadd.f32 %v1188, %v1380
    %v1382 = vpop.f32.mrf.mxu0
    %v1383 = vadd.f32 %v1184, %v1382
    %v1384 = vpop.f32.mrf.mxu0
    %v1385 = vadd.f32 %v1188, %v1384
    %1386 = vmatprep.mubr.bf16.mxu0 0
    %1387 = vmatmul.mubr.bf16.gmra.mxu0 %v1146
    %v1388 = vpop.f32.mrf.mxu0
    %v1389 = vadd.f32 %v1184, %v1388
    %v1390 = vpop.f32.mrf.mxu0
    %v1391 = vadd.f32 %v1188, %v1390
    %v1392 = vpop.f32.mrf.mxu0
    %v1393 = vadd.f32 %v1184, %v1392
    %v1394 = vpop.f32.mrf.mxu0
    %v1395 = vadd.f32 %v1188, %v1394
    %1396 = vdwg.mxu0
    %1397 = vmatprep.subr.bf16.mxu0 0
    %1398 = vmatpush1.bf16.msra.mxu0 %v1299
    %1399 = vmatprep.subr.bf16.mxu0 0
    %1400 = vmatpush1.bf16.msra.mxu0 %v1296
    %1401 = vmatprep.subr.bf16.mxu0 0
    %1402 = vmatpush1.bf16.msra.mxu0 %v1293
    %1403 = vmatprep.subr.bf16.mxu0 0
    %1404 = vmatpush1.bf16.msra.mxu0 %v1290
    %1405 = vmatprep.subr.bf16.mxu0 0
    %1406 = vmatpush1.bf16.msra.mxu0 %v1287
    %1407 = vmatprep.subr.bf16.mxu0 0
    %1408 = vmatpush1.bf16.msra.mxu0 %v1284
    %1409 = vmatprep.subr.bf16.mxu0 0
    %1410 = vmatpush1.bf16.msra.mxu0 %v1281
    %1411 = vmatprep.subr.bf16.mxu0 0
    %1412 = vmatpush1.bf16.msra.mxu0 %v1278
    %1413 = vmatprep.subr.bf16.mxu0 0
    %1414 = vmatpush2.bf16.msra.mxu0 0
    %1415 = vmatprep.subr.bf16.mxu0 0
    %1416 = vmatpush2.bf16.msra.mxu0 0
    %1417 = vmatprep.subr.bf16.mxu0 0
    %1418 = vmatpush2.bf16.msra.mxu0 0
    %1419 = vmatprep.subr.bf16.mxu0 0
    %1420 = vmatpush2.bf16.msra.mxu0 0
    %1421 = vmatprep.subr.bf16.mxu0 0
    %1422 = vmatpush2.bf16.msra.mxu0 0
    %1423 = vmatprep.subr.bf16.mxu0 0
    %1424 = vmatpush2.bf16.msra.mxu0 0
    %1425 = vmatprep.subr.bf16.mxu0 0
    %1426 = vmatpush2.bf16.msra.mxu0 0
    %1427 = vmatprep.subr.bf16.mxu0 0
    %1428 = vmatpush2.bf16.msra.mxu0 0
    %1429 = vmatprep.mubr.bf16.mxu0 0
    %1430 = vmatmul.mubr.bf16.gmra.mxu0 %v1143
    %v1431 = vpop.f32.mrf.mxu0
    %v1432 = vadd.f32 %v1192, %v1431
    %v1433 = vpop.f32.mrf.mxu0
    %v1434 = vpop.f32.mrf.mxu0
    %v1435 = vadd.f32 %v1192, %v1434
    %v1436 = vpop.f32.mrf.mxu0
    %1437 = vmatprep.mubr.bf16.mxu0 0
    %1438 = vmatmul.mubr.bf16.gmra.mxu0 %v1144
    %v1439 = vpop.f32.mrf.mxu0
    %v1440 = vadd.f32 %v1192, %v1439
    %v1441 = vpop.f32.mrf.mxu0
    %v1442 = vpop.f32.mrf.mxu0
    %v1443 = vadd.f32 %v1192, %v1442
    %v1444 = vpop.f32.mrf.mxu0
    %1445 = vmatprep.mubr.bf16.mxu0 0
    %1446 = vmatmul.mubr.bf16.gmra.mxu0 %v1145
    %v1447 = vpop.f32.mrf.mxu0
    %v1448 = vadd.f32 %v1192, %v1447
    %v1449 = vpop.f32.mrf.mxu0
    %v1450 = vpop.f32.mrf.mxu0
    %v1451 = vadd.f32 %v1192, %v1450
    %v1452 = vpop.f32.mrf.mxu0
    %1453 = vmatprep.mubr.bf16.mxu0 0
    %1454 = vmatmul.mubr.bf16.gmra.mxu0 %v1146
    %v1455 = vpop.f32.mrf.mxu0
    %v1456 = vadd.f32 %v1192, %v1455
    %v1457 = vpop.f32.mrf.mxu0
    %v1458 = vpop.f32.mrf.mxu0
    %v1459 = vadd.f32 %v1192, %v1458
    %v1460 = vpop.f32.mrf.mxu0
    %1461 = vdwg.mxu0
    %v1462 = vpack.c.bf16 %v1140, %v1137
    %v1463 = vld [vmem:[#allocation2] sm:$0xff]
    %v1464 = vld [vmem:[#allocation2 + $0x8] sm:$0xff]
    %v1465 = vld [vmem:[#allocation2 + $0x10] sm:$0xff]
    %v1466 = vld [vmem:[#allocation2 + $0x18] sm:$0xff]
    %v1467 = vld [vmem:[#allocation2 + $0x20] sm:$0xff]
    %v1468 = vld [vmem:[#allocation2 + $0x28] sm:$0xff]
    %v1469 = vld [vmem:[#allocation2 + $0x30] sm:$0xff]
    %v1470 = vld [vmem:[#allocation2 + $0x38] sm:$0xff]
    %v1471 = vld [vmem:[#allocation2 + $0x40] sm:$0xff]
    %v1472 = vld [vmem:[#allocation2 + $0x48] sm:$0xff]
    %v1473 = vld [vmem:[#allocation2 + $0x50] sm:$0xff]
    %v1474 = vld [vmem:[#allocation2 + $0x58] sm:$0xff]
    %v1475 = vld [vmem:[#allocation2 + $0x60] sm:$0xff]
    %v1476 = vld [vmem:[#allocation2 + $0x68] sm:$0xff]
    %v1477 = vld [vmem:[#allocation2 + $0x70] sm:$0xff]
    %v1478 = vld [vmem:[#allocation2 + $0x78] sm:$0xff]
    %v1479 = vld [vmem:[#allocation2 + $0x80] sm:$0xff]
    %v1480 = vld [vmem:[#allocation2 + $0x88] sm:$0xff]
    %v1481 = vld [vmem:[#allocation2 + $0x90] sm:$0xff]
    %v1482 = vld [vmem:[#allocation2 + $0x98] sm:$0xff]
    %v1483 = vld [vmem:[#allocation2 + $0xa0] sm:$0xff]
    %v1484 = vld [vmem:[#allocation2 + $0xa8] sm:$0xff]
    %v1485 = vld [vmem:[#allocation2 + $0xb0] sm:$0xff]
    %v1486 = vld [vmem:[#allocation2 + $0xb8] sm:$0xff]
    %v1487 = vld [vmem:[#allocation2 + $0xc0] sm:$0xff]
    %v1488 = vld [vmem:[#allocation2 + $0xc8] sm:$0xff]
    %v1489 = vld [vmem:[#allocation2 + $0xd0] sm:$0xff]
    %v1490 = vld [vmem:[#allocation2 + $0xd8] sm:$0xff]
    %v1491 = vld [vmem:[#allocation2 + $0xe0] sm:$0xff]
    %v1492 = vld [vmem:[#allocation2 + $0xe8] sm:$0xff]
    %v1493 = vld [vmem:[#allocation2 + $0xf0] sm:$0xff]
    %v1494 = vld [vmem:[#allocation2 + $0xf8] sm:$0xff]
    %v1495 = vld [vmem:[%s12] ss:$4 sm:$0xf]
    %v1497 = vlaneseq
    %v1498 = vshrl.u32 %v1497, 7
    %v1499 = vsub.s32 0, %v1498
    %v1500 = vrot.slane %v1495, %v1499
    %v1501 = vlaneseq
    %v1502 = vshrl.u32 %v1501, 7
    %v1503 = vsub.s32 1, %v1502
    %v1504 = vrot.slane %v1495, %v1503
    %v1505 = vlaneseq
    %v1506 = vshrl.u32 %v1505, 7
    %v1507 = vsub.s32 2, %v1506
    %v1508 = vrot.slane %v1495, %v1507
    %v1509 = vlaneseq
    %v1510 = vshrl.u32 %v1509, 7
    %v1511 = vsub.s32 3, %v1510
    %v1512 = vrot.slane %v1495, %v1511
    %v1549 = vunpack.c.l.b16 %v1463
    %v1550 = vunpack.c.h.b16 %v1463
    %v1551 = vunpack.c.l.b16 %v1464
    %v1552 = vunpack.c.h.b16 %v1464
    %v1553 = vunpack.c.l.b16 %v1465
    %v1554 = vunpack.c.h.b16 %v1465
    %v1555 = vunpack.c.l.b16 %v1466
    %v1556 = vunpack.c.h.b16 %v1466
    %v1557 = vunpack.c.l.b16 %v1467
    %v1558 = vunpack.c.h.b16 %v1467
    %v1559 = vunpack.c.l.b16 %v1468
    %v1560 = vunpack.c.h.b16 %v1468
    %v1561 = vunpack.c.l.b16 %v1469
    %v1562 = vunpack.c.h.b16 %v1469
    %v1563 = vunpack.c.l.b16 %v1470
    %v1564 = vunpack.c.h.b16 %v1470
    %v1565 = vunpack.c.l.b16 %v1471
    %v1566 = vunpack.c.h.b16 %v1471
    %v1567 = vunpack.c.l.b16 %v1472
    %v1568 = vunpack.c.h.b16 %v1472
    %v1569 = vunpack.c.l.b16 %v1473
    %v1570 = vunpack.c.h.b16 %v1473
    %v1571 = vunpack.c.l.b16 %v1474
    %v1572 = vunpack.c.h.b16 %v1474
    %v1573 = vunpack.c.l.b16 %v1475
    %v1574 = vunpack.c.h.b16 %v1475
    %v1575 = vunpack.c.l.b16 %v1476
    %v1576 = vunpack.c.h.b16 %v1476
    %v1577 = vunpack.c.l.b16 %v1477
    %v1578 = vunpack.c.h.b16 %v1477
    %v1579 = vunpack.c.l.b16 %v1478
    %v1580 = vunpack.c.h.b16 %v1478
    %v1581 = vunpack.c.l.b16 %v1479
    %v1582 = vunpack.c.h.b16 %v1479
    %v1583 = vunpack.c.l.b16 %v1480
    %v1584 = vunpack.c.h.b16 %v1480
    %v1585 = vunpack.c.l.b16 %v1481
    %v1586 = vunpack.c.h.b16 %v1481
    %v1587 = vunpack.c.l.b16 %v1482
    %v1588 = vunpack.c.h.b16 %v1482
    %v1589 = vunpack.c.l.b16 %v1483
    %v1590 = vunpack.c.h.b16 %v1483
    %v1591 = vunpack.c.l.b16 %v1484
    %v1592 = vunpack.c.h.b16 %v1484
    %v1593 = vunpack.c.l.b16 %v1485
    %v1594 = vunpack.c.h.b16 %v1485
    %v1595 = vunpack.c.l.b16 %v1486
    %v1596 = vunpack.c.h.b16 %v1486
    %v1597 = vunpack.c.l.b16 %v1487
    %v1598 = vunpack.c.h.b16 %v1487
    %v1599 = vunpack.c.l.b16 %v1488
    %v1600 = vunpack.c.h.b16 %v1488
    %v1601 = vunpack.c.l.b16 %v1489
    %v1602 = vunpack.c.h.b16 %v1489
    %v1603 = vunpack.c.l.b16 %v1490
    %v1604 = vunpack.c.h.b16 %v1490
    %v1605 = vunpack.c.l.b16 %v1491
    %v1606 = vunpack.c.h.b16 %v1491
    %v1607 = vunpack.c.l.b16 %v1492
    %v1608 = vunpack.c.h.b16 %v1492
    %v1609 = vunpack.c.l.b16 %v1493
    %v1610 = vunpack.c.h.b16 %v1493
    %v1611 = vunpack.c.l.b16 %v1494
    %v1612 = vunpack.c.h.b16 %v1494
    %v1613 = vpack.c.b16 %v1553, %v1549
    %v1614 = vpack.c.b16 %v1554, %v1550
    %v1615 = vpack.c.b16 %v1555, %v1551
    %v1616 = vpack.c.b16 %v1556, %v1552
    %v1617 = vpack.c.b16 %v1561, %v1557
    %v1618 = vpack.c.b16 %v1562, %v1558
    %v1619 = vpack.c.b16 %v1563, %v1559
    %v1620 = vpack.c.b16 %v1564, %v1560
    %v1621 = vpack.c.b16 %v1569, %v1565
    %v1622 = vpack.c.b16 %v1570, %v1566
    %v1623 = vpack.c.b16 %v1571, %v1567
    %v1624 = vpack.c.b16 %v1572, %v1568
    %v1625 = vpack.c.b16 %v1577, %v1573
    %v1626 = vpack.c.b16 %v1578, %v1574
    %v1627 = vpack.c.b16 %v1579, %v1575
    %v1628 = vpack.c.b16 %v1580, %v1576
    %v1629 = vpack.c.b16 %v1585, %v1581
    %v1630 = vpack.c.b16 %v1586, %v1582
    %v1631 = vpack.c.b16 %v1587, %v1583
    %v1632 = vpack.c.b16 %v1588, %v1584
    %v1633 = vpack.c.b16 %v1593, %v1589
    %v1634 = vpack.c.b16 %v1594, %v1590
    %v1635 = vpack.c.b16 %v1595, %v1591
    %v1636 = vpack.c.b16 %v1596, %v1592
    %v1637 = vpack.c.b16 %v1601, %v1597
    %v1638 = vpack.c.b16 %v1602, %v1598
    %v1639 = vpack.c.b16 %v1603, %v1599
    %v1640 = vpack.c.b16 %v1604, %v1600
    %v1641 = vpack.c.b16 %v1609, %v1605
    %v1642 = vpack.c.b16 %v1610, %v1606
    %v1643 = vpack.c.b16 %v1611, %v1607
    %v1644 = vpack.c.b16 %v1612, %v1608
    %1677 = vmatprep.subr.bf16.mxu0 %v1642
    %1678 = vmatpush1.bf16.msra.mxu0 %v1641
    %1679 = vmatprep.subr.bf16.mxu0 %v1638
    %1680 = vmatpush1.bf16.msra.mxu0 %v1637
    %1681 = vmatprep.subr.bf16.mxu0 %v1634
    %1682 = vmatpush1.bf16.msra.mxu0 %v1633
    %1683 = vmatprep.subr.bf16.mxu0 %v1630
    %1684 = vmatpush1.bf16.msra.mxu0 %v1629
    %1685 = vmatprep.subr.bf16.mxu0 %v1626
    %1686 = vmatpush1.bf16.msra.mxu0 %v1625
    %1687 = vmatprep.subr.bf16.mxu0 %v1622
    %1688 = vmatpush1.bf16.msra.mxu0 %v1621
    %1689 = vmatprep.subr.bf16.mxu0 %v1618
    %1690 = vmatpush1.bf16.msra.mxu0 %v1617
    %1691 = vmatprep.subr.bf16.mxu0 %v1614
    %1692 = vmatpush1.bf16.msra.mxu0 %v1613
    %1693 = vmatprep.subr.bf16.mxu0 0
    %1694 = vmatpush2.bf16.msra.mxu0 0
    %1695 = vmatprep.subr.bf16.mxu0 0
    %1696 = vmatpush2.bf16.msra.mxu0 0
    %1697 = vmatprep.subr.bf16.mxu0 0
    %1698 = vmatpush2.bf16.msra.mxu0 0
    %1699 = vmatprep.subr.bf16.mxu0 0
    %1700 = vmatpush2.bf16.msra.mxu0 0
    %1701 = vmatprep.subr.bf16.mxu0 0
    %1702 = vmatpush2.bf16.msra.mxu0 0
    %1703 = vmatprep.subr.bf16.mxu0 0
    %1704 = vmatpush2.bf16.msra.mxu0 0
    %1705 = vmatprep.subr.bf16.mxu0 0
    %1706 = vmatpush2.bf16.msra.mxu0 0
    %1707 = vmatprep.subr.bf16.mxu0 0
    %1708 = vmatpush2.bf16.msra.mxu0 0
    %1709 = vmatprep.mubr.bf16.mxu0 0
    %1710 = vmatmul.mubr.bf16.gmra.mxu0 %v1462
    %v1711 = vpop.f32.mrf.mxu0
    %v1712 = vadd.f32 %v1500, %v1711
    %v1713 = vpop.f32.mrf.mxu0
    %v1714 = vadd.f32 %v1504, %v1713
    %v1715 = vpop.f32.mrf.mxu0
    %v1716 = vadd.f32 %v1500, %v1715
    %v1717 = vpop.f32.mrf.mxu0
    %v1718 = vadd.f32 %v1504, %v1717
    %1719 = vdwg.mxu0
    %1720 = vmatprep.subr.bf16.mxu0 %v1644
    %1721 = vmatpush1.bf16.msra.mxu0 %v1643
    %1722 = vmatprep.subr.bf16.mxu0 %v1640
    %1723 = vmatpush1.bf16.msra.mxu0 %v1639
    %1724 = vmatprep.subr.bf16.mxu0 %v1636
    %1725 = vmatpush1.bf16.msra.mxu0 %v1635
    %1726 = vmatprep.subr.bf16.mxu0 %v1632
    %1727 = vmatpush1.bf16.msra.mxu0 %v1631
    %1728 = vmatprep.subr.bf16.mxu0 %v1628
    %1729 = vmatpush1.bf16.msra.mxu0 %v1627
    %1730 = vmatprep.subr.bf16.mxu0 %v1624
    %1731 = vmatpush1.bf16.msra.mxu0 %v1623
    %1732 = vmatprep.subr.bf16.mxu0 %v1620
    %1733 = vmatpush1.bf16.msra.mxu0 %v1619
    %1734 = vmatprep.subr.bf16.mxu0 %v1616
    %1735 = vmatpush1.bf16.msra.mxu0 %v1615
    %1736 = vmatprep.subr.bf16.mxu0 0
    %1737 = vmatpush2.bf16.msra.mxu0 0
    %1738 = vmatprep.subr.bf16.mxu0 0
    %1739 = vmatpush2.bf16.msra.mxu0 0
    %1740 = vmatprep.subr.bf16.mxu0 0
    %1741 = vmatpush2.bf16.msra.mxu0 0
    %1742 = vmatprep.subr.bf16.mxu0 0
    %1743 = vmatpush2.bf16.msra.mxu0 0
    %1744 = vmatprep.subr.bf16.mxu0 0
    %1745 = vmatpush2.bf16.msra.mxu0 0
    %1746 = vmatprep.subr.bf16.mxu0 0
    %1747 = vmatpush2.bf16.msra.mxu0 0
    %1748 = vmatprep.subr.bf16.mxu0 0
    %1749 = vmatpush2.bf16.msra.mxu0 0
    %1750 = vmatprep.subr.bf16.mxu0 0
    %1751 = vmatpush2.bf16.msra.mxu0 0
    %1752 = vmatprep.mubr.bf16.mxu0 0
    %1753 = vmatmul.mubr.bf16.gmra.mxu0 %v1462
    %v1754 = vpop.f32.mrf.mxu0
    %v1755 = vadd.f32 %v1508, %v1754
    %v1756 = vpop.f32.mrf.mxu0
    %v1757 = vadd.f32 %v1512, %v1756
    %v1758 = vpop.f32.mrf.mxu0
    %v1759 = vadd.f32 %v1508, %v1758
    %v1760 = vpop.f32.mrf.mxu0
    %v1761 = vadd.f32 %v1512, %v1760
    %1762 = vdwg.mxu0
    %v1763 = vpack.c.bf16 %v1716, %v1712
    %v1764 = vpack.c.bf16 %v1718, %v1714
    %v1765 = vpack.c.bf16 %v1759, %v1755
    %1766 = vmatprep.subr.bf16.mxu0 0
    %1767 = vmatpush1.bf16.msra.mxu0 0
    %1768 = vmatprep.subr.bf16.mxu0 0
    %1769 = vmatpush1.bf16.msra.mxu0 0
    %1770 = vmatprep.subr.bf16.mxu0 0
    %1771 = vmatpush1.bf16.msra.mxu0 0
    %1772 = vmatprep.subr.bf16.mxu0 0
    %1773 = vmatpush1.bf16.msra.mxu0 0
    %1774 = vmatprep.subr.bf16.mxu0 0
    %1775 = vmatpush1.bf16.msra.mxu0 0
    %1776 = vmatprep.subr.bf16.mxu0 0
    %1777 = vmatpush1.bf16.msra.mxu0 0
    %1778 = vmatprep.subr.bf16.mxu0 0
    %1779 = vmatpush1.bf16.msra.mxu0 0
    %1780 = vmatprep.subr.bf16.mxu0 %v1764
    %1781 = vmatpush1.bf16.msra.mxu0 %v1763
    %1782 = vmatprep.subr.bf16.mxu0 0
    %1783 = vmatpush2.bf16.msra.mxu0 0
    %1784 = vmatprep.subr.bf16.mxu0 0
    %1785 = vmatpush2.bf16.msra.mxu0 0
    %1786 = vmatprep.subr.bf16.mxu0 0
    %1787 = vmatpush2.bf16.msra.mxu0 0
    %1788 = vmatprep.subr.bf16.mxu0 0
    %1789 = vmatpush2.bf16.msra.mxu0 0
    %1790 = vmatprep.subr.bf16.mxu0 0
    %1791 = vmatpush2.bf16.msra.mxu0 0
    %1792 = vmatprep.subr.bf16.mxu0 0
    %1793 = vmatpush2.bf16.msra.mxu0 0
    %1794 = vmatprep.subr.bf16.mxu0 0
    %1795 = vmatpush2.bf16.msra.mxu0 0
    %1796 = vmatprep.subr.bf16.mxu0 0
    %1797 = vmatpush2.bf16.msra.mxu0 0
    %1798 = vmatprep.mubr.bf16.mxu0 0
    %1799 = vmatmul.mubr.bf16.gmra.mxu0 %v808
    %v1800 = vpop.f32.mrf.mxu0
    %v1801 = vadd.f32 0.0, %v1800
    %v1802 = vpop.f32.mrf.mxu0
    %v1803 = vadd.f32 0.0, %v1802
    %v1804 = vpop.f32.mrf.mxu0
    %v1805 = vadd.f32 0.0, %v1804
    %v1806 = vpop.f32.mrf.mxu0
    %v1807 = vadd.f32 0.0, %v1806
    %1808 = vmatprep.mubr.bf16.mxu0 0
    %1809 = vmatmul.mubr.bf16.gmra.mxu0 %v811
    %v1810 = vpop.f32.mrf.mxu0
    %v1811 = vadd.f32 0.0, %v1810
    %v1812 = vpop.f32.mrf.mxu0
    %v1813 = vadd.f32 0.0, %v1812
    %v1814 = vpop.f32.mrf.mxu0
    %v1815 = vadd.f32 0.0, %v1814
    %v1816 = vpop.f32.mrf.mxu0
    %v1817 = vadd.f32 0.0, %v1816
    %1818 = vmatprep.mubr.bf16.mxu0 0
    %1819 = vmatmul.mubr.bf16.gmra.mxu0 %v814
    %v1820 = vpop.f32.mrf.mxu0
    %v1821 = vadd.f32 0.0, %v1820
    %v1822 = vpop.f32.mrf.mxu0
    %v1823 = vadd.f32 0.0, %v1822
    %v1824 = vpop.f32.mrf.mxu0
    %v1825 = vadd.f32 0.0, %v1824
    %v1826 = vpop.f32.mrf.mxu0
    %v1827 = vadd.f32 0.0, %v1826
    %1828 = vmatprep.mubr.bf16.mxu0 0
    %1829 = vmatmul.mubr.bf16.gmra.mxu0 %v817
    %v1830 = vpop.f32.mrf.mxu0
    %v1831 = vadd.f32 0.0, %v1830
    %v1832 = vpop.f32.mrf.mxu0
    %v1833 = vadd.f32 0.0, %v1832
    %v1834 = vpop.f32.mrf.mxu0
    %v1835 = vadd.f32 0.0, %v1834
    %v1836 = vpop.f32.mrf.mxu0
    %v1837 = vadd.f32 0.0, %v1836
    %1838 = vdwg.mxu0
    %1839 = vmatprep.subr.bf16.mxu0 0
    %1840 = vmatpush1.bf16.msra.mxu0 0
    %1841 = vmatprep.subr.bf16.mxu0 0
    %1842 = vmatpush1.bf16.msra.mxu0 0
    %1843 = vmatprep.subr.bf16.mxu0 0
    %1844 = vmatpush1.bf16.msra.mxu0 0
    %1845 = vmatprep.subr.bf16.mxu0 0
    %1846 = vmatpush1.bf16.msra.mxu0 0
    %1847 = vmatprep.subr.bf16.mxu0 0
    %1848 = vmatpush1.bf16.msra.mxu0 0
    %1849 = vmatprep.subr.bf16.mxu0 0
    %1850 = vmatpush1.bf16.msra.mxu0 0
    %1851 = vmatprep.subr.bf16.mxu0 0
    %1852 = vmatpush1.bf16.msra.mxu0 0
    %1853 = vmatprep.subr.bf16.mxu0 0
    %1854 = vmatpush1.bf16.msra.mxu0 %v1765
    %1855 = vmatprep.subr.bf16.mxu0 0
    %1856 = vmatpush2.bf16.msra.mxu0 0
    %1857 = vmatprep.subr.bf16.mxu0 0
    %1858 = vmatpush2.bf16.msra.mxu0 0
    %1859 = vmatprep.subr.bf16.mxu0 0
    %1860 = vmatpush2.bf16.msra.mxu0 0
    %1861 = vmatprep.subr.bf16.mxu0 0
    %1862 = vmatpush2.bf16.msra.mxu0 0
    %1863 = vmatprep.subr.bf16.mxu0 0
    %1864 = vmatpush2.bf16.msra.mxu0 0
    %1865 = vmatprep.subr.bf16.mxu0 0
    %1866 = vmatpush2.bf16.msra.mxu0 0
    %1867 = vmatprep.subr.bf16.mxu0 0
    %1868 = vmatpush2.bf16.msra.mxu0 0
    %1869 = vmatprep.subr.bf16.mxu0 0
    %1870 = vmatpush2.bf16.msra.mxu0 0
    %1871 = vmatprep.mubr.bf16.mxu0 0
    %1872 = vmatmul.mubr.bf16.gmra.mxu0 %v731
    %v1873 = vpop.f32.mrf.mxu0
    %v1874 = vadd.f32 0.0, %v1873
    %v1875 = vpop.f32.mrf.mxu0
    %v1876 = vpop.f32.mrf.mxu0
    %v1877 = vadd.f32 0.0, %v1876
    %v1878 = vpop.f32.mrf.mxu0
    %1879 = vmatprep.mubr.bf16.mxu0 0
    %1880 = vmatmul.mubr.bf16.gmra.mxu0 %v734
    %v1881 = vpop.f32.mrf.mxu0
    %v1882 = vadd.f32 0.0, %v1881
    %v1883 = vpop.f32.mrf.mxu0
    %v1884 = vpop.f32.mrf.mxu0
    %v1885 = vadd.f32 0.0, %v1884
    %v1886 = vpop.f32.mrf.mxu0
    %1887 = vmatprep.mubr.bf16.mxu0 0
    %1888 = vmatmul.mubr.bf16.gmra.mxu0 %v737
    %v1889 = vpop.f32.mrf.mxu0
    %v1890 = vadd.f32 0.0, %v1889
    %v1891 = vpop.f32.mrf.mxu0
    %v1892 = vpop.f32.mrf.mxu0
    %v1893 = vadd.f32 0.0, %v1892
    %v1894 = vpop.f32.mrf.mxu0
    %1895 = vmatprep.mubr.bf16.mxu0 0
    %1896 = vmatmul.mubr.bf16.gmra.mxu0 %v740
    %v1897 = vpop.f32.mrf.mxu0
    %v1898 = vadd.f32 0.0, %v1897
    %v1899 = vpop.f32.mrf.mxu0
    %v1900 = vpop.f32.mrf.mxu0
    %v1901 = vadd.f32 0.0, %v1900
    %v1902 = vpop.f32.mrf.mxu0
    %1903 = vdwg.mxu0
    %v1904 = vadd.f32 %v1803, %v1874
    %v1905 = vadd.f32 %v1807, %v1877
    %v1906 = vadd.f32 %v1813, %v1882
    %v1907 = vadd.f32 %v1817, %v1885
    %v1908 = vadd.f32 %v1823, %v1890
    %v1909 = vadd.f32 %v1827, %v1893
    %v1910 = vadd.f32 %v1833, %v1898
    %v1911 = vadd.f32 %v1837, %v1901
    %v1912 = vadd.f32 %v1904, %v1359
    %v1913 = vadd.f32 %v1905, %v1363
    %v1914 = vadd.f32 %v1906, %v1369
    %v1915 = vadd.f32 %v1907, %v1373
    %v1916 = vadd.f32 %v1908, %v1379
    %v1917 = vadd.f32 %v1909, %v1383
    %v1918 = vadd.f32 %v1910, %v1389
    %v1919 = vadd.f32 %v1911, %v1393
    %v1920 = vxor.u32 %v1912, 2147483648
    %v1921 = vxor.u32 %v1913, 2147483648
    %v1922 = vxor.u32 %v1914, 2147483648
    %v1923 = vxor.u32 %v1915, 2147483648
    %v1924 = vxor.u32 %v1916, 2147483648
    %v1925 = vxor.u32 %v1917, 2147483648
    %v1926 = vxor.u32 %v1918, 2147483648
    %v1927 = vxor.u32 %v1919, 2147483648
    %v1928 = vmul.f32 %v1920, 1.442695
    %v1929 = vpow.pop %v1928
    %v1930 = vmul.f32 %v1921, 1.442695
    %v1931 = vpow.pop %v1930
    %v1932 = vmul.f32 %v1922, 1.442695
    %v1933 = vpow.pop %v1932
    %v1934 = vmul.f32 %v1923, 1.442695
    %v1935 = vpow.pop %v1934
    %v1936 = vmul.f32 %v1924, 1.442695
    %v1937 = vpow.pop %v1936
    %v1938 = vmul.f32 %v1925, 1.442695
    %v1939 = vpow.pop %v1938
    %v1940 = vmul.f32 %v1926, 1.442695
    %v1941 = vpow.pop %v1940
    %v1942 = vmul.f32 %v1927, 1.442695
    %v1943 = vpow.pop %v1942
    %v1944 = vadd.f32 %v1929, 1.0
    %v1945 = vadd.f32 %v1931, 1.0
    %v1946 = vadd.f32 %v1933, 1.0
    %v1947 = vadd.f32 %v1935, 1.0
    %v1948 = vadd.f32 %v1937, 1.0
    %v1949 = vadd.f32 %v1939, 1.0
    %v1950 = vadd.f32 %v1941, 1.0
    %v1951 = vadd.f32 %v1943, 1.0
    %v1952 = vrcp.pop %v1944
    %v1953 = vmul.f32 1.0, %v1952
    %v1954 = vrcp.pop %v1945
    %v1955 = vmul.f32 1.0, %v1954
    %v1956 = vrcp.pop %v1946
    %v1957 = vmul.f32 1.0, %v1956
    %v1958 = vrcp.pop %v1947
    %v1959 = vmul.f32 1.0, %v1958
    %v1960 = vrcp.pop %v1948
    %v1961 = vmul.f32 1.0, %v1960
    %v1962 = vrcp.pop %v1949
    %v1963 = vmul.f32 1.0, %v1962
    %v1964 = vrcp.pop %v1950
    %v1965 = vmul.f32 1.0, %v1964
    %v1966 = vrcp.pop %v1951
    %v1967 = vmul.f32 1.0, %v1966
    %v1968 = vmul.f32 %v1953, %v1801
    %v1969 = vmul.f32 %v1955, %v1805
    %v1970 = vmul.f32 %v1957, %v1811
    %v1971 = vmul.f32 %v1959, %v1815
    %v1972 = vmul.f32 %v1961, %v1821
    %v1973 = vmul.f32 %v1963, %v1825
    %v1974 = vmul.f32 %v1965, %v1831
    %v1975 = vmul.f32 %v1967, %v1835
    %v1976 = vpack.c.bf16 %v1969, %v1968
    %v1977 = vpack.c.bf16 %v1971, %v1970
    %v1978 = vpack.c.bf16 %v1973, %v1972
    %v1979 = vpack.c.bf16 %v1975, %v1974
    %1980 = vmatprep.subr.bf16.mxu0 0
    %1981 = vmatpush1.bf16.msra.mxu0 0
    %1982 = vmatprep.subr.bf16.mxu0 0
    %1983 = vmatpush1.bf16.msra.mxu0 0
    %1984 = vmatprep.subr.bf16.mxu0 0
    %1985 = vmatpush1.bf16.msra.mxu0 0
    %1986 = vmatprep.subr.bf16.mxu0 0
    %1987 = vmatpush1.bf16.msra.mxu0 0
    %1988 = vmatprep.subr.bf16.mxu0 0
    %1989 = vmatpush1.bf16.msra.mxu0 %v1979
    %1990 = vmatprep.subr.bf16.mxu0 0
    %1991 = vmatpush1.bf16.msra.mxu0 %v1978
    %1992 = vmatprep.subr.bf16.mxu0 0
    %1993 = vmatpush1.bf16.msra.mxu0 %v1977
    %1994 = vmatprep.subr.bf16.mxu0 0
    %1995 = vmatpush1.bf16.msra.mxu0 %v1976
    %1996 = vmatprep.subr.bf16.mxu0 0
    %1997 = vmatpush2.bf16.msra.mxu0 0
    %1998 = vmatprep.subr.bf16.mxu0 0
    %1999 = vmatpush2.bf16.msra.mxu0 0
    %2000 = vmatprep.subr.bf16.mxu0 0
    %2001 = vmatpush2.bf16.msra.mxu0 0
    %2002 = vmatprep.subr.bf16.mxu0 0
    %2003 = vmatpush2.bf16.msra.mxu0 0
    %2004 = vmatprep.subr.bf16.mxu0 0
    %2005 = vmatpush2.bf16.msra.mxu0 0
    %2006 = vmatprep.subr.bf16.mxu0 0
    %2007 = vmatpush2.bf16.msra.mxu0 0
    %2008 = vmatprep.subr.bf16.mxu0 0
    %2009 = vmatpush2.bf16.msra.mxu0 0
    %2010 = vmatprep.subr.bf16.mxu0 0
    %2011 = vmatpush2.bf16.msra.mxu0 0
    %2012 = vmatprep.mubr.bf16.mxu0 0
    %2013 = vmatmul.mubr.bf16.gmra.mxu0 %v1100
    %v2014 = vpop.f32.mrf.mxu0
    %v2015 = vadd.f32 %v1757, %v2014
    %v2016 = vpop.f32.mrf.mxu0
    %v2017 = vpop.f32.mrf.mxu0
    %v2018 = vadd.f32 %v1761, %v2017
    %v2019 = vpop.f32.mrf.mxu0
    %2020 = vdwg.mxu0
    %v2021 = vmax.f32 %v2015, 0.0
    %v2022 = vmax.f32 %v2018, 0.0
    %v2023 = vpack.c.bf16 %v2022, %v2021
    %v2024 = vld [vmem:[#allocation2 + $0x100] sm:$0xff]
    %v2025 = vld [vmem:[#allocation2 + $0x108] sm:$0xff]
    %v2026 = vld [vmem:[#allocation2 + $0x110] sm:$0xff]
    %v2027 = vld [vmem:[#allocation2 + $0x118] sm:$0xff]
    %v2028 = vld [vmem:[#allocation2 + $0x120] sm:$0xff]
    %v2029 = vld [vmem:[#allocation2 + $0x128] sm:$0xff]
    %v2030 = vld [vmem:[#allocation2 + $0x130] sm:$0xff]
    %v2031 = vld [vmem:[#allocation2 + $0x138] sm:$0xff]
    %v2032 = vld [vmem:[#allocation2 + $0x140] sm:$0xff]
    %v2033 = vld [vmem:[#allocation2 + $0x148] sm:$0xff]
    %v2034 = vld [vmem:[#allocation2 + $0x150] sm:$0xff]
    %v2035 = vld [vmem:[#allocation2 + $0x158] sm:$0xff]
    %v2036 = vld [vmem:[#allocation2 + $0x160] sm:$0xff]
    %v2037 = vld [vmem:[#allocation2 + $0x168] sm:$0xff]
    %v2038 = vld [vmem:[#allocation2 + $0x170] sm:$0xff]
    %v2039 = vld [vmem:[#allocation2 + $0x178] sm:$0xff]
    %v2040 = vld [vmem:[#allocation2 + $0x180] sm:$0xff]
    %v2041 = vld [vmem:[#allocation2 + $0x188] sm:$0xff]
    %v2042 = vld [vmem:[#allocation2 + $0x190] sm:$0xff]
    %v2043 = vld [vmem:[#allocation2 + $0x198] sm:$0xff]
    %v2044 = vld [vmem:[#allocation2 + $0x1a0] sm:$0xff]
    %v2045 = vld [vmem:[#allocation2 + $0x1a8] sm:$0xff]
    %v2046 = vld [vmem:[#allocation2 + $0x1b0] sm:$0xff]
    %v2047 = vld [vmem:[#allocation2 + $0x1b8] sm:$0xff]
    %v2048 = vld [vmem:[#allocation2 + $0x1c0] sm:$0xff]
    %v2049 = vld [vmem:[#allocation2 + $0x1c8] sm:$0xff]
    %v2050 = vld [vmem:[#allocation2 + $0x1d0] sm:$0xff]
    %v2051 = vld [vmem:[#allocation2 + $0x1d8] sm:$0xff]
    %v2052 = vld [vmem:[#allocation2 + $0x1e0] sm:$0xff]
    %v2053 = vld [vmem:[#allocation2 + $0x1e8] sm:$0xff]
    %v2054 = vld [vmem:[#allocation2 + $0x1f0] sm:$0xff]
    %v2055 = vld [vmem:[#allocation2 + $0x1f8] sm:$0xff]
    %s2056 = scalar_lea.vmem %s12, 1
    %v2057 = vld [vmem:[%s2056] ss:$4 sm:$0xf]
    %v2059 = vlaneseq
    %v2060 = vshrl.u32 %v2059, 7
    %v2061 = vsub.s32 0, %v2060
    %v2062 = vrot.slane %v2057, %v2061
    %v2063 = vlaneseq
    %v2064 = vshrl.u32 %v2063, 7
    %v2065 = vsub.s32 1, %v2064
    %v2066 = vrot.slane %v2057, %v2065
    %v2067 = vlaneseq
    %v2068 = vshrl.u32 %v2067, 7
    %v2069 = vsub.s32 2, %v2068
    %v2070 = vrot.slane %v2057, %v2069
    %v2071 = vlaneseq
    %v2072 = vshrl.u32 %v2071, 7
    %v2073 = vsub.s32 3, %v2072
    %v2074 = vrot.slane %v2057, %v2073
    %v2111 = vunpack.c.l.b16 %v2024
    %v2112 = vunpack.c.h.b16 %v2024
    %v2113 = vunpack.c.l.b16 %v2025
    %v2114 = vunpack.c.h.b16 %v2025
    %v2115 = vunpack.c.l.b16 %v2026
    %v2116 = vunpack.c.h.b16 %v2026
    %v2117 = vunpack.c.l.b16 %v2027
    %v2118 = vunpack.c.h.b16 %v2027
    %v2119 = vunpack.c.l.b16 %v2028
    %v2120 = vunpack.c.h.b16 %v2028
    %v2121 = vunpack.c.l.b16 %v2029
    %v2122 = vunpack.c.h.b16 %v2029
    %v2123 = vunpack.c.l.b16 %v2030
    %v2124 = vunpack.c.h.b16 %v2030
    %v2125 = vunpack.c.l.b16 %v2031
    %v2126 = vunpack.c.h.b16 %v2031
    %v2127 = vunpack.c.l.b16 %v2032
    %v2128 = vunpack.c.h.b16 %v2032
    %v2129 = vunpack.c.l.b16 %v2033
    %v2130 = vunpack.c.h.b16 %v2033
    %v2131 = vunpack.c.l.b16 %v2034
    %v2132 = vunpack.c.h.b16 %v2034
    %v2133 = vunpack.c.l.b16 %v2035
    %v2134 = vunpack.c.h.b16 %v2035
    %v2135 = vunpack.c.l.b16 %v2036
    %v2136 = vunpack.c.h.b16 %v2036
    %v2137 = vunpack.c.l.b16 %v2037
    %v2138 = vunpack.c.h.b16 %v2037
    %v2139 = vunpack.c.l.b16 %v2038
    %v2140 = vunpack.c.h.b16 %v2038
    %v2141 = vunpack.c.l.b16 %v2039
    %v2142 = vunpack.c.h.b16 %v2039
    %v2143 = vunpack.c.l.b16 %v2040
    %v2144 = vunpack.c.h.b16 %v2040
    %v2145 = vunpack.c.l.b16 %v2041
    %v2146 = vunpack.c.h.b16 %v2041
    %v2147 = vunpack.c.l.b16 %v2042
    %v2148 = vunpack.c.h.b16 %v2042
    %v2149 = vunpack.c.l.b16 %v2043
    %v2150 = vunpack.c.h.b16 %v2043
    %v2151 = vunpack.c.l.b16 %v2044
    %v2152 = vunpack.c.h.b16 %v2044
    %v2153 = vunpack.c.l.b16 %v2045
    %v2154 = vunpack.c.h.b16 %v2045
    %v2155 = vunpack.c.l.b16 %v2046
    %v2156 = vunpack.c.h.b16 %v2046
    %v2157 = vunpack.c.l.b16 %v2047
    %v2158 = vunpack.c.h.b16 %v2047
    %v2159 = vunpack.c.l.b16 %v2048
    %v2160 = vunpack.c.h.b16 %v2048
    %v2161 = vunpack.c.l.b16 %v2049
    %v2162 = vunpack.c.h.b16 %v2049
    %v2163 = vunpack.c.l.b16 %v2050
    %v2164 = vunpack.c.h.b16 %v2050
    %v2165 = vunpack.c.l.b16 %v2051
    %v2166 = vunpack.c.h.b16 %v2051
    %v2167 = vunpack.c.l.b16 %v2052
    %v2168 = vunpack.c.h.b16 %v2052
    %v2169 = vunpack.c.l.b16 %v2053
    %v2170 = vunpack.c.h.b16 %v2053
    %v2171 = vunpack.c.l.b16 %v2054
    %v2172 = vunpack.c.h.b16 %v2054
    %v2173 = vunpack.c.l.b16 %v2055
    %v2174 = vunpack.c.h.b16 %v2055
    %v2175 = vpack.c.b16 %v2115, %v2111
    %v2176 = vpack.c.b16 %v2116, %v2112
    %v2177 = vpack.c.b16 %v2117, %v2113
    %v2178 = vpack.c.b16 %v2118, %v2114
    %v2179 = vpack.c.b16 %v2123, %v2119
    %v2180 = vpack.c.b16 %v2124, %v2120
    %v2181 = vpack.c.b16 %v2125, %v2121
    %v2182 = vpack.c.b16 %v2126, %v2122
    %v2183 = vpack.c.b16 %v2131, %v2127
    %v2184 = vpack.c.b16 %v2132, %v2128
    %v2185 = vpack.c.b16 %v2133, %v2129
    %v2186 = vpack.c.b16 %v2134, %v2130
    %v2187 = vpack.c.b16 %v2139, %v2135
    %v2188 = vpack.c.b16 %v2140, %v2136
    %v2189 = vpack.c.b16 %v2141, %v2137
    %v2190 = vpack.c.b16 %v2142, %v2138
    %v2191 = vpack.c.b16 %v2147, %v2143
    %v2192 = vpack.c.b16 %v2148, %v2144
    %v2193 = vpack.c.b16 %v2149, %v2145
    %v2194 = vpack.c.b16 %v2150, %v2146
    %v2195 = vpack.c.b16 %v2155, %v2151
    %v2196 = vpack.c.b16 %v2156, %v2152
    %v2197 = vpack.c.b16 %v2157, %v2153
    %v2198 = vpack.c.b16 %v2158, %v2154
    %v2199 = vpack.c.b16 %v2163, %v2159
    %v2200 = vpack.c.b16 %v2164, %v2160
    %v2201 = vpack.c.b16 %v2165, %v2161
    %v2202 = vpack.c.b16 %v2166, %v2162
    %v2203 = vpack.c.b16 %v2171, %v2167
    %v2204 = vpack.c.b16 %v2172, %v2168
    %v2205 = vpack.c.b16 %v2173, %v2169
    %v2206 = vpack.c.b16 %v2174, %v2170
    %2239 = vmatprep.subr.bf16.mxu0 %v2204
    %2240 = vmatpush1.bf16.msra.mxu0 %v2203
    %2241 = vmatprep.subr.bf16.mxu0 %v2200
    %2242 = vmatpush1.bf16.msra.mxu0 %v2199
    %2243 = vmatprep.subr.bf16.mxu0 %v2196
    %2244 = vmatpush1.bf16.msra.mxu0 %v2195
    %2245 = vmatprep.subr.bf16.mxu0 %v2192
    %2246 = vmatpush1.bf16.msra.mxu0 %v2191
    %2247 = vmatprep.subr.bf16.mxu0 %v2188
    %2248 = vmatpush1.bf16.msra.mxu0 %v2187
    %2249 = vmatprep.subr.bf16.mxu0 %v2184
    %2250 = vmatpush1.bf16.msra.mxu0 %v2183
    %2251 = vmatprep.subr.bf16.mxu0 %v2180
    %2252 = vmatpush1.bf16.msra.mxu0 %v2179
    %2253 = vmatprep.subr.bf16.mxu0 %v2176
    %2254 = vmatpush1.bf16.msra.mxu0 %v2175
    %2255 = vmatprep.subr.bf16.mxu0 0
    %2256 = vmatpush2.bf16.msra.mxu0 0
    %2257 = vmatprep.subr.bf16.mxu0 0
    %2258 = vmatpush2.bf16.msra.mxu0 0
    %2259 = vmatprep.subr.bf16.mxu0 0
    %2260 = vmatpush2.bf16.msra.mxu0 0
    %2261 = vmatprep.subr.bf16.mxu0 0
    %2262 = vmatpush2.bf16.msra.mxu0 0
    %2263 = vmatprep.subr.bf16.mxu0 0
    %2264 = vmatpush2.bf16.msra.mxu0 0
    %2265 = vmatprep.subr.bf16.mxu0 0
    %2266 = vmatpush2.bf16.msra.mxu0 0
    %2267 = vmatprep.subr.bf16.mxu0 0
    %2268 = vmatpush2.bf16.msra.mxu0 0
    %2269 = vmatprep.subr.bf16.mxu0 0
    %2270 = vmatpush2.bf16.msra.mxu0 0
    %2271 = vmatprep.mubr.bf16.mxu0 0
    %2272 = vmatmul.mubr.bf16.gmra.mxu0 %v2023
    %v2273 = vpop.f32.mrf.mxu0
    %v2274 = vadd.f32 %v2062, %v2273
    %v2275 = vpop.f32.mrf.mxu0
    %v2276 = vadd.f32 %v2066, %v2275
    %v2277 = vpop.f32.mrf.mxu0
    %v2278 = vadd.f32 %v2062, %v2277
    %v2279 = vpop.f32.mrf.mxu0
    %v2280 = vadd.f32 %v2066, %v2279
    %2281 = vdwg.mxu0
    %2282 = vmatprep.subr.bf16.mxu0 %v2206
    %2283 = vmatpush1.bf16.msra.mxu0 %v2205
    %2284 = vmatprep.subr.bf16.mxu0 %v2202
    %2285 = vmatpush1.bf16.msra.mxu0 %v2201
    %2286 = vmatprep.subr.bf16.mxu0 %v2198
    %2287 = vmatpush1.bf16.msra.mxu0 %v2197
    %2288 = vmatprep.subr.bf16.mxu0 %v2194
    %2289 = vmatpush1.bf16.msra.mxu0 %v2193
    %2290 = vmatprep.subr.bf16.mxu0 %v2190
    %2291 = vmatpush1.bf16.msra.mxu0 %v2189
    %2292 = vmatprep.subr.bf16.mxu0 %v2186
    %2293 = vmatpush1.bf16.msra.mxu0 %v2185
    %2294 = vmatprep.subr.bf16.mxu0 %v2182
    %2295 = vmatpush1.bf16.msra.mxu0 %v2181
    %2296 = vmatprep.subr.bf16.mxu0 %v2178
    %2297 = vmatpush1.bf16.msra.mxu0 %v2177
    %2298 = vmatprep.subr.bf16.mxu0 0
    %2299 = vmatpush2.bf16.msra.mxu0 0
    %2300 = vmatprep.subr.bf16.mxu0 0
    %2301 = vmatpush2.bf16.msra.mxu0 0
    %2302 = vmatprep.subr.bf16.mxu0 0
    %2303 = vmatpush2.bf16.msra.mxu0 0
    %2304 = vmatprep.subr.bf16.mxu0 0
    %2305 = vmatpush2.bf16.msra.mxu0 0
    %2306 = vmatprep.subr.bf16.mxu0 0
    %2307 = vmatpush2.bf16.msra.mxu0 0
    %2308 = vmatprep.subr.bf16.mxu0 0
    %2309 = vmatpush2.bf16.msra.mxu0 0
    %2310 = vmatprep.subr.bf16.mxu0 0
    %2311 = vmatpush2.bf16.msra.mxu0 0
    %2312 = vmatprep.subr.bf16.mxu0 0
    %2313 = vmatpush2.bf16.msra.mxu0 0
    %2314 = vmatprep.mubr.bf16.mxu0 0
    %2315 = vmatmul.mubr.bf16.gmra.mxu0 %v2023
    %v2316 = vpop.f32.mrf.mxu0
    %v2317 = vadd.f32 %v2070, %v2316
    %v2318 = vpop.f32.mrf.mxu0
    %v2319 = vadd.f32 %v2074, %v2318
    %v2320 = vpop.f32.mrf.mxu0
    %v2321 = vadd.f32 %v2070, %v2320
    %v2322 = vpop.f32.mrf.mxu0
    %v2323 = vadd.f32 %v2074, %v2322
    %2324 = vdwg.mxu0
    %v2325 = vpack.c.bf16 %v2278, %v2274
    %v2326 = vpack.c.bf16 %v2280, %v2276
    %v2327 = vpack.c.bf16 %v2321, %v2317
    %2328 = vmatprep.subr.bf16.mxu0 0
    %2329 = vmatpush1.bf16.msra.mxu0 0
    %2330 = vmatprep.subr.bf16.mxu0 0
    %2331 = vmatpush1.bf16.msra.mxu0 0
    %2332 = vmatprep.subr.bf16.mxu0 0
    %2333 = vmatpush1.bf16.msra.mxu0 0
    %2334 = vmatprep.subr.bf16.mxu0 0
    %2335 = vmatpush1.bf16.msra.mxu0 0
    %2336 = vmatprep.subr.bf16.mxu0 0
    %2337 = vmatpush1.bf16.msra.mxu0 0
    %2338 = vmatprep.subr.bf16.mxu0 0
    %2339 = vmatpush1.bf16.msra.mxu0 0
    %2340 = vmatprep.subr.bf16.mxu0 0
    %2341 = vmatpush1.bf16.msra.mxu0 0
    %2342 = vmatprep.subr.bf16.mxu0 %v2326
    %2343 = vmatpush1.bf16.msra.mxu0 %v2325
    %2344 = vmatprep.subr.bf16.mxu0 0
    %2345 = vmatpush2.bf16.msra.mxu0 0
    %2346 = vmatprep.subr.bf16.mxu0 0
    %2347 = vmatpush2.bf16.msra.mxu0 0
    %2348 = vmatprep.subr.bf16.mxu0 0
    %2349 = vmatpush2.bf16.msra.mxu0 0
    %2350 = vmatprep.subr.bf16.mxu0 0
    %2351 = vmatpush2.bf16.msra.mxu0 0
    %2352 = vmatprep.subr.bf16.mxu0 0
    %2353 = vmatpush2.bf16.msra.mxu0 0
    %2354 = vmatprep.subr.bf16.mxu0 0
    %2355 = vmatpush2.bf16.msra.mxu0 0
    %2356 = vmatprep.subr.bf16.mxu0 0
    %2357 = vmatpush2.bf16.msra.mxu0 0
    %2358 = vmatprep.subr.bf16.mxu0 0
    %2359 = vmatpush2.bf16.msra.mxu0 0
    %2360 = vmatprep.mubr.bf16.mxu0 0
    %2361 = vmatmul.mubr.bf16.gmra.mxu0 %v808
    %v2362 = vpop.f32.mrf.mxu0
    %v2363 = vadd.f32 0.0, %v2362
    %v2364 = vpop.f32.mrf.mxu0
    %v2365 = vadd.f32 0.0, %v2364
    %v2366 = vpop.f32.mrf.mxu0
    %v2367 = vadd.f32 0.0, %v2366
    %v2368 = vpop.f32.mrf.mxu0
    %v2369 = vadd.f32 0.0, %v2368
    %2370 = vmatprep.mubr.bf16.mxu0 0
    %2371 = vmatmul.mubr.bf16.gmra.mxu0 %v811
    %v2372 = vpop.f32.mrf.mxu0
    %v2373 = vadd.f32 0.0, %v2372
    %v2374 = vpop.f32.mrf.mxu0
    %v2375 = vadd.f32 0.0, %v2374
    %v2376 = vpop.f32.mrf.mxu0
    %v2377 = vadd.f32 0.0, %v2376
    %v2378 = vpop.f32.mrf.mxu0
    %v2379 = vadd.f32 0.0, %v2378
    %2380 = vmatprep.mubr.bf16.mxu0 0
    %2381 = vmatmul.mubr.bf16.gmra.mxu0 %v814
    %v2382 = vpop.f32.mrf.mxu0
    %v2383 = vadd.f32 0.0, %v2382
    %v2384 = vpop.f32.mrf.mxu0
    %v2385 = vadd.f32 0.0, %v2384
    %v2386 = vpop.f32.mrf.mxu0
    %v2387 = vadd.f32 0.0, %v2386
    %v2388 = vpop.f32.mrf.mxu0
    %v2389 = vadd.f32 0.0, %v2388
    %2390 = vmatprep.mubr.bf16.mxu0 0
    %2391 = vmatmul.mubr.bf16.gmra.mxu0 %v817
    %v2392 = vpop.f32.mrf.mxu0
    %v2393 = vadd.f32 0.0, %v2392
    %v2394 = vpop.f32.mrf.mxu0
    %v2395 = vadd.f32 0.0, %v2394
    %v2396 = vpop.f32.mrf.mxu0
    %v2397 = vadd.f32 0.0, %v2396
    %v2398 = vpop.f32.mrf.mxu0
    %v2399 = vadd.f32 0.0, %v2398
    %2400 = vdwg.mxu0
    %2401 = vmatprep.subr.bf16.mxu0 0
    %2402 = vmatpush1.bf16.msra.mxu0 0
    %2403 = vmatprep.subr.bf16.mxu0 0
    %2404 = vmatpush1.bf16.msra.mxu0 0
    %2405 = vmatprep.subr.bf16.mxu0 0
    %2406 = vmatpush1.bf16.msra.mxu0 0
    %2407 = vmatprep.subr.bf16.mxu0 0
    %2408 = vmatpush1.bf16.msra.mxu0 0
    %2409 = vmatprep.subr.bf16.mxu0 0
    %2410 = vmatpush1.bf16.msra.mxu0 0
    %2411 = vmatprep.subr.bf16.mxu0 0
    %2412 = vmatpush1.bf16.msra.mxu0 0
    %2413 = vmatprep.subr.bf16.mxu0 0
    %2414 = vmatpush1.bf16.msra.mxu0 0
    %2415 = vmatprep.subr.bf16.mxu0 0
    %2416 = vmatpush1.bf16.msra.mxu0 %v2327
    %2417 = vmatprep.subr.bf16.mxu0 0
    %2418 = vmatpush2.bf16.msra.mxu0 0
    %2419 = vmatprep.subr.bf16.mxu0 0
    %2420 = vmatpush2.bf16.msra.mxu0 0
    %2421 = vmatprep.subr.bf16.mxu0 0
    %2422 = vmatpush2.bf16.msra.mxu0 0
    %2423 = vmatprep.subr.bf16.mxu0 0
    %2424 = vmatpush2.bf16.msra.mxu0 0
    %2425 = vmatprep.subr.bf16.mxu0 0
    %2426 = vmatpush2.bf16.msra.mxu0 0
    %2427 = vmatprep.subr.bf16.mxu0 0
    %2428 = vmatpush2.bf16.msra.mxu0 0
    %2429 = vmatprep.subr.bf16.mxu0 0
    %2430 = vmatpush2.bf16.msra.mxu0 0
    %2431 = vmatprep.subr.bf16.mxu0 0
    %2432 = vmatpush2.bf16.msra.mxu0 0
    %2433 = vmatprep.mubr.bf16.mxu0 0
    %2434 = vmatmul.mubr.bf16.gmra.mxu0 %v731
    %v2435 = vpop.f32.mrf.mxu0
    %v2436 = vadd.f32 0.0, %v2435
    %v2437 = vpop.f32.mrf.mxu0
    %v2438 = vpop.f32.mrf.mxu0
    %v2439 = vadd.f32 0.0, %v2438
    %v2440 = vpop.f32.mrf.mxu0
    %2441 = vmatprep.mubr.bf16.mxu0 0
    %2442 = vmatmul.mubr.bf16.gmra.mxu0 %v734
    %v2443 = vpop.f32.mrf.mxu0
    %v2444 = vadd.f32 0.0, %v2443
    %v2445 = vpop.f32.mrf.mxu0
    %v2446 = vpop.f32.mrf.mxu0
    %v2447 = vadd.f32 0.0, %v2446
    %v2448 = vpop.f32.mrf.mxu0
    %2449 = vmatprep.mubr.bf16.mxu0 0
    %2450 = vmatmul.mubr.bf16.gmra.mxu0 %v737
    %v2451 = vpop.f32.mrf.mxu0
    %v2452 = vadd.f32 0.0, %v2451
    %v2453 = vpop.f32.mrf.mxu0
    %v2454 = vpop.f32.mrf.mxu0
    %v2455 = vadd.f32 0.0, %v2454
    %v2456 = vpop.f32.mrf.mxu0
    %2457 = vmatprep.mubr.bf16.mxu0 0
    %2458 = vmatmul.mubr.bf16.gmra.mxu0 %v740
    %v2459 = vpop.f32.mrf.mxu0
    %v2460 = vadd.f32 0.0, %v2459
    %v2461 = vpop.f32.mrf.mxu0
    %v2462 = vpop.f32.mrf.mxu0
    %v2463 = vadd.f32 0.0, %v2462
    %v2464 = vpop.f32.mrf.mxu0
    %2465 = vdwg.mxu0
    %v2466 = vadd.f32 %v2365, %v2436
    %v2467 = vadd.f32 %v2369, %v2439
    %v2468 = vadd.f32 %v2375, %v2444
    %v2469 = vadd.f32 %v2379, %v2447
    %v2470 = vadd.f32 %v2385, %v2452
    %v2471 = vadd.f32 %v2389, %v2455
    %v2472 = vadd.f32 %v2395, %v2460
    %v2473 = vadd.f32 %v2399, %v2463
    %v2474 = vadd.f32 %v2466, %v1361
    %v2475 = vadd.f32 %v2467, %v1365
    %v2476 = vadd.f32 %v2468, %v1371
    %v2477 = vadd.f32 %v2469, %v1375
    %v2478 = vadd.f32 %v2470, %v1381
    %v2479 = vadd.f32 %v2471, %v1385
    %v2480 = vadd.f32 %v2472, %v1391
    %v2481 = vadd.f32 %v2473, %v1395
    %v2482 = vxor.u32 %v2474, 2147483648
    %v2483 = vxor.u32 %v2475, 2147483648
    %v2484 = vxor.u32 %v2476, 2147483648
    %v2485 = vxor.u32 %v2477, 2147483648
    %v2486 = vxor.u32 %v2478, 2147483648
    %v2487 = vxor.u32 %v2479, 2147483648
    %v2488 = vxor.u32 %v2480, 2147483648
    %v2489 = vxor.u32 %v2481, 2147483648
    %v2490 = vmul.f32 %v2482, 1.442695
    %v2491 = vpow.pop %v2490
    %v2492 = vmul.f32 %v2483, 1.442695
    %v2493 = vpow.pop %v2492
    %v2494 = vmul.f32 %v2484, 1.442695
    %v2495 = vpow.pop %v2494
    %v2496 = vmul.f32 %v2485, 1.442695
    %v2497 = vpow.pop %v2496
    %v2498 = vmul.f32 %v2486, 1.442695
    %v2499 = vpow.pop %v2498
    %v2500 = vmul.f32 %v2487, 1.442695
    %v2501 = vpow.pop %v2500
    %v2502 = vmul.f32 %v2488, 1.442695
    %v2503 = vpow.pop %v2502
    %v2504 = vmul.f32 %v2489, 1.442695
    %v2505 = vpow.pop %v2504
    %v2506 = vadd.f32 %v2491, 1.0
    %v2507 = vadd.f32 %v2493, 1.0
    %v2508 = vadd.f32 %v2495, 1.0
    %v2509 = vadd.f32 %v2497, 1.0
    %v2510 = vadd.f32 %v2499, 1.0
    %v2511 = vadd.f32 %v2501, 1.0
    %v2512 = vadd.f32 %v2503, 1.0
    %v2513 = vadd.f32 %v2505, 1.0
    %v2514 = vrcp.pop %v2506
    %v2515 = vmul.f32 1.0, %v2514
    %v2516 = vrcp.pop %v2507
    %v2517 = vmul.f32 1.0, %v2516
    %v2518 = vrcp.pop %v2508
    %v2519 = vmul.f32 1.0, %v2518
    %v2520 = vrcp.pop %v2509
    %v2521 = vmul.f32 1.0, %v2520
    %v2522 = vrcp.pop %v2510
    %v2523 = vmul.f32 1.0, %v2522
    %v2524 = vrcp.pop %v2511
    %v2525 = vmul.f32 1.0, %v2524
    %v2526 = vrcp.pop %v2512
    %v2527 = vmul.f32 1.0, %v2526
    %v2528 = vrcp.pop %v2513
    %v2529 = vmul.f32 1.0, %v2528
    %v2530 = vmul.f32 %v2515, %v2363
    %v2531 = vmul.f32 %v2517, %v2367
    %v2532 = vmul.f32 %v2519, %v2373
    %v2533 = vmul.f32 %v2521, %v2377
    %v2534 = vmul.f32 %v2523, %v2383
    %v2535 = vmul.f32 %v2525, %v2387
    %v2536 = vmul.f32 %v2527, %v2393
    %v2537 = vmul.f32 %v2529, %v2397
    %v2538 = vpack.c.bf16 %v2531, %v2530
    %v2539 = vpack.c.bf16 %v2533, %v2532
    %v2540 = vpack.c.bf16 %v2535, %v2534
    %v2541 = vpack.c.bf16 %v2537, %v2536
    %2542 = vmatprep.subr.bf16.mxu0 0
    %2543 = vmatpush1.bf16.msra.mxu0 0
    %2544 = vmatprep.subr.bf16.mxu0 0
    %2545 = vmatpush1.bf16.msra.mxu0 0
    %2546 = vmatprep.subr.bf16.mxu0 0
    %2547 = vmatpush1.bf16.msra.mxu0 0
    %2548 = vmatprep.subr.bf16.mxu0 0
    %2549 = vmatpush1.bf16.msra.mxu0 0
    %2550 = vmatprep.subr.bf16.mxu0 0
    %2551 = vmatpush1.bf16.msra.mxu0 %v2541
    %2552 = vmatprep.subr.bf16.mxu0 0
    %2553 = vmatpush1.bf16.msra.mxu0 %v2540
    %2554 = vmatprep.subr.bf16.mxu0 0
    %2555 = vmatpush1.bf16.msra.mxu0 %v2539
    %2556 = vmatprep.subr.bf16.mxu0 0
    %2557 = vmatpush1.bf16.msra.mxu0 %v2538
    %2558 = vmatprep.subr.bf16.mxu0 0
    %2559 = vmatpush2.bf16.msra.mxu0 0
    %2560 = vmatprep.subr.bf16.mxu0 0
    %2561 = vmatpush2.bf16.msra.mxu0 0
    %2562 = vmatprep.subr.bf16.mxu0 0
    %2563 = vmatpush2.bf16.msra.mxu0 0
    %2564 = vmatprep.subr.bf16.mxu0 0
    %2565 = vmatpush2.bf16.msra.mxu0 0
    %2566 = vmatprep.subr.bf16.mxu0 0
    %2567 = vmatpush2.bf16.msra.mxu0 0
    %2568 = vmatprep.subr.bf16.mxu0 0
    %2569 = vmatpush2.bf16.msra.mxu0 0
    %2570 = vmatprep.subr.bf16.mxu0 0
    %2571 = vmatpush2.bf16.msra.mxu0 0
    %2572 = vmatprep.subr.bf16.mxu0 0
    %2573 = vmatpush2.bf16.msra.mxu0 0
    %2574 = vmatprep.mubr.bf16.mxu0 0
    %2575 = vmatmul.mubr.bf16.gmra.mxu0 %v1100
    %v2576 = vpop.f32.mrf.mxu0
    %v2577 = vadd.f32 %v2319, %v2576
    %v2578 = vpop.f32.mrf.mxu0
    %v2579 = vpop.f32.mrf.mxu0
    %v2580 = vadd.f32 %v2323, %v2579
    %v2581 = vpop.f32.mrf.mxu0
    %2582 = vdwg.mxu0
    %v2583 = vmax.f32 %v2577, 0.0
    %v2584 = vmax.f32 %v2580, 0.0
    %v2585 = vpack.c.bf16 %v2584, %v2583
    %v2586 = vld [vmem:[#allocation2 + $0x200] sm:$0xff]
    %v2587 = vld [vmem:[#allocation2 + $0x208] sm:$0xff]
    %v2588 = vld [vmem:[#allocation2 + $0x210] sm:$0xff]
    %v2589 = vld [vmem:[#allocation2 + $0x218] sm:$0xff]
    %v2590 = vld [vmem:[#allocation2 + $0x220] sm:$0xff]
    %v2591 = vld [vmem:[#allocation2 + $0x228] sm:$0xff]
    %v2592 = vld [vmem:[#allocation2 + $0x230] sm:$0xff]
    %v2593 = vld [vmem:[#allocation2 + $0x238] sm:$0xff]
    %v2594 = vld [vmem:[#allocation2 + $0x240] sm:$0xff]
    %v2595 = vld [vmem:[#allocation2 + $0x248] sm:$0xff]
    %v2596 = vld [vmem:[#allocation2 + $0x250] sm:$0xff]
    %v2597 = vld [vmem:[#allocation2 + $0x258] sm:$0xff]
    %v2598 = vld [vmem:[#allocation2 + $0x260] sm:$0xff]
    %v2599 = vld [vmem:[#allocation2 + $0x268] sm:$0xff]
    %v2600 = vld [vmem:[#allocation2 + $0x270] sm:$0xff]
    %v2601 = vld [vmem:[#allocation2 + $0x278] sm:$0xff]
    %v2602 = vld [vmem:[#allocation2 + $0x280] sm:$0xff]
    %v2603 = vld [vmem:[#allocation2 + $0x288] sm:$0xff]
    %v2604 = vld [vmem:[#allocation2 + $0x290] sm:$0xff]
    %v2605 = vld [vmem:[#allocation2 + $0x298] sm:$0xff]
    %v2606 = vld [vmem:[#allocation2 + $0x2a0] sm:$0xff]
    %v2607 = vld [vmem:[#allocation2 + $0x2a8] sm:$0xff]
    %v2608 = vld [vmem:[#allocation2 + $0x2b0] sm:$0xff]
    %v2609 = vld [vmem:[#allocation2 + $0x2b8] sm:$0xff]
    %v2610 = vld [vmem:[#allocation2 + $0x2c0] sm:$0xff]
    %v2611 = vld [vmem:[#allocation2 + $0x2c8] sm:$0xff]
    %v2612 = vld [vmem:[#allocation2 + $0x2d0] sm:$0xff]
    %v2613 = vld [vmem:[#allocation2 + $0x2d8] sm:$0xff]
    %v2614 = vld [vmem:[#allocation2 + $0x2e0] sm:$0xff]
    %v2615 = vld [vmem:[#allocation2 + $0x2e8] sm:$0xff]
    %v2616 = vld [vmem:[#allocation2 + $0x2f0] sm:$0xff]
    %v2617 = vld [vmem:[#allocation2 + $0x2f8] sm:$0xff]
    %s2618 = scalar_lea.vmem %s12, 2
    %v2619 = vld [vmem:[%s2618] ss:$4 sm:$0xf]
    %v2621 = vlaneseq
    %v2622 = vshrl.u32 %v2621, 7
    %v2623 = vsub.s32 0, %v2622
    %v2624 = vrot.slane %v2619, %v2623
    %v2625 = vlaneseq
    %v2626 = vshrl.u32 %v2625, 7
    %v2627 = vsub.s32 1, %v2626
    %v2628 = vrot.slane %v2619, %v2627
    %v2629 = vlaneseq
    %v2630 = vshrl.u32 %v2629, 7
    %v2631 = vsub.s32 2, %v2630
    %v2632 = vrot.slane %v2619, %v2631
    %v2633 = vlaneseq
    %v2634 = vshrl.u32 %v2633, 7
    %v2635 = vsub.s32 3, %v2634
    %v2636 = vrot.slane %v2619, %v2635
    %v2673 = vunpack.c.l.b16 %v2586
    %v2674 = vunpack.c.h.b16 %v2586
    %v2675 = vunpack.c.l.b16 %v2587
    %v2676 = vunpack.c.h.b16 %v2587
    %v2677 = vunpack.c.l.b16 %v2588
    %v2678 = vunpack.c.h.b16 %v2588
    %v2679 = vunpack.c.l.b16 %v2589
    %v2680 = vunpack.c.h.b16 %v2589
    %v2681 = vunpack.c.l.b16 %v2590
    %v2682 = vunpack.c.h.b16 %v2590
    %v2683 = vunpack.c.l.b16 %v2591
    %v2684 = vunpack.c.h.b16 %v2591
    %v2685 = vunpack.c.l.b16 %v2592
    %v2686 = vunpack.c.h.b16 %v2592
    %v2687 = vunpack.c.l.b16 %v2593
    %v2688 = vunpack.c.h.b16 %v2593
    %v2689 = vunpack.c.l.b16 %v2594
    %v2690 = vunpack.c.h.b16 %v2594
    %v2691 = vunpack.c.l.b16 %v2595
    %v2692 = vunpack.c.h.b16 %v2595
    %v2693 = vunpack.c.l.b16 %v2596
    %v2694 = vunpack.c.h.b16 %v2596
    %v2695 = vunpack.c.l.b16 %v2597
    %v2696 = vunpack.c.h.b16 %v2597
    %v2697 = vunpack.c.l.b16 %v2598
    %v2698 = vunpack.c.h.b16 %v2598
    %v2699 = vunpack.c.l.b16 %v2599
    %v2700 = vunpack.c.h.b16 %v2599
    %v2701 = vunpack.c.l.b16 %v2600
    %v2702 = vunpack.c.h.b16 %v2600
    %v2703 = vunpack.c.l.b16 %v2601
    %v2704 = vunpack.c.h.b16 %v2601
    %v2705 = vunpack.c.l.b16 %v2602
    %v2706 = vunpack.c.h.b16 %v2602
    %v2707 = vunpack.c.l.b16 %v2603
    %v2708 = vunpack.c.h.b16 %v2603
    %v2709 = vunpack.c.l.b16 %v2604
    %v2710 = vunpack.c.h.b16 %v2604
    %v2711 = vunpack.c.l.b16 %v2605
    %v2712 = vunpack.c.h.b16 %v2605
    %v2713 = vunpack.c.l.b16 %v2606
    %v2714 = vunpack.c.h.b16 %v2606
    %v2715 = vunpack.c.l.b16 %v2607
    %v2716 = vunpack.c.h.b16 %v2607
    %v2717 = vunpack.c.l.b16 %v2608
    %v2718 = vunpack.c.h.b16 %v2608
    %v2719 = vunpack.c.l.b16 %v2609
    %v2720 = vunpack.c.h.b16 %v2609
    %v2721 = vunpack.c.l.b16 %v2610
    %v2722 = vunpack.c.h.b16 %v2610
    %v2723 = vunpack.c.l.b16 %v2611
    %v2724 = vunpack.c.h.b16 %v2611
    %v2725 = vunpack.c.l.b16 %v2612
    %v2726 = vunpack.c.h.b16 %v2612
    %v2727 = vunpack.c.l.b16 %v2613
    %v2728 = vunpack.c.h.b16 %v2613
    %v2729 = vunpack.c.l.b16 %v2614
    %v2730 = vunpack.c.h.b16 %v2614
    %v2731 = vunpack.c.l.b16 %v2615
    %v2732 = vunpack.c.h.b16 %v2615
    %v2733 = vunpack.c.l.b16 %v2616
    %v2734 = vunpack.c.h.b16 %v2616
    %v2735 = vunpack.c.l.b16 %v2617
    %v2736 = vunpack.c.h.b16 %v2617
    %v2737 = vpack.c.b16 %v2677, %v2673
    %v2738 = vpack.c.b16 %v2678, %v2674
    %v2739 = vpack.c.b16 %v2679, %v2675
    %v2740 = vpack.c.b16 %v2680, %v2676
    %v2741 = vpack.c.b16 %v2685, %v2681
    %v2742 = vpack.c.b16 %v2686, %v2682
    %v2743 = vpack.c.b16 %v2687, %v2683
    %v2744 = vpack.c.b16 %v2688, %v2684
    %v2745 = vpack.c.b16 %v2693, %v2689
    %v2746 = vpack.c.b16 %v2694, %v2690
    %v2747 = vpack.c.b16 %v2695, %v2691
    %v2748 = vpack.c.b16 %v2696, %v2692
    %v2749 = vpack.c.b16 %v2701, %v2697
    %v2750 = vpack.c.b16 %v2702, %v2698
    %v2751 = vpack.c.b16 %v2703, %v2699
    %v2752 = vpack.c.b16 %v2704, %v2700
    %v2753 = vpack.c.b16 %v2709, %v2705
    %v2754 = vpack.c.b16 %v2710, %v2706
    %v2755 = vpack.c.b16 %v2711, %v2707
    %v2756 = vpack.c.b16 %v2712, %v2708
    %v2757 = vpack.c.b16 %v2717, %v2713
    %v2758 = vpack.c.b16 %v2718, %v2714
    %v2759 = vpack.c.b16 %v2719, %v2715
    %v2760 = vpack.c.b16 %v2720, %v2716
    %v2761 = vpack.c.b16 %v2725, %v2721
    %v2762 = vpack.c.b16 %v2726, %v2722
    %v2763 = vpack.c.b16 %v2727, %v2723
    %v2764 = vpack.c.b16 %v2728, %v2724
    %v2765 = vpack.c.b16 %v2733, %v2729
    %v2766 = vpack.c.b16 %v2734, %v2730
    %v2767 = vpack.c.b16 %v2735, %v2731
    %v2768 = vpack.c.b16 %v2736, %v2732
    %2801 = vmatprep.subr.bf16.mxu0 %v2766
    %2802 = vmatpush1.bf16.msra.mxu0 %v2765
    %2803 = vmatprep.subr.bf16.mxu0 %v2762
    %2804 = vmatpush1.bf16.msra.mxu0 %v2761
    %2805 = vmatprep.subr.bf16.mxu0 %v2758
    %2806 = vmatpush1.bf16.msra.mxu0 %v2757
    %2807 = vmatprep.subr.bf16.mxu0 %v2754
    %2808 = vmatpush1.bf16.msra.mxu0 %v2753
    %2809 = vmatprep.subr.bf16.mxu0 %v2750
    %2810 = vmatpush1.bf16.msra.mxu0 %v2749
    %2811 = vmatprep.subr.bf16.mxu0 %v2746
    %2812 = vmatpush1.bf16.msra.mxu0 %v2745
    %2813 = vmatprep.subr.bf16.mxu0 %v2742
    %2814 = vmatpush1.bf16.msra.mxu0 %v2741
    %2815 = vmatprep.subr.bf16.mxu0 %v2738
    %2816 = vmatpush1.bf16.msra.mxu0 %v2737
    %2817 = vmatprep.subr.bf16.mxu0 0
    %2818 = vmatpush2.bf16.msra.mxu0 0
    %2819 = vmatprep.subr.bf16.mxu0 0
    %2820 = vmatpush2.bf16.msra.mxu0 0
    %2821 = vmatprep.subr.bf16.mxu0 0
    %2822 = vmatpush2.bf16.msra.mxu0 0
    %2823 = vmatprep.subr.bf16.mxu0 0
    %2824 = vmatpush2.bf16.msra.mxu0 0
    %2825 = vmatprep.subr.bf16.mxu0 0
    %2826 = vmatpush2.bf16.msra.mxu0 0
    %2827 = vmatprep.subr.bf16.mxu0 0
    %2828 = vmatpush2.bf16.msra.mxu0 0
    %2829 = vmatprep.subr.bf16.mxu0 0
    %2830 = vmatpush2.bf16.msra.mxu0 0
    %2831 = vmatprep.subr.bf16.mxu0 0
    %2832 = vmatpush2.bf16.msra.mxu0 0
    %2833 = vmatprep.mubr.bf16.mxu0 0
    %2834 = vmatmul.mubr.bf16.gmra.mxu0 %v2585
    %v2835 = vpop.f32.mrf.mxu0
    %v2836 = vadd.f32 %v2624, %v2835
    %v2837 = vpop.f32.mrf.mxu0
    %v2838 = vadd.f32 %v2628, %v2837
    %v2839 = vpop.f32.mrf.mxu0
    %v2840 = vadd.f32 %v2624, %v2839
    %v2841 = vpop.f32.mrf.mxu0
    %v2842 = vadd.f32 %v2628, %v2841
    %2843 = vdwg.mxu0
    %2844 = vmatprep.subr.bf16.mxu0 %v2768
    %2845 = vmatpush1.bf16.msra.mxu0 %v2767
    %2846 = vmatprep.subr.bf16.mxu0 %v2764
    %2847 = vmatpush1.bf16.msra.mxu0 %v2763
    %2848 = vmatprep.subr.bf16.mxu0 %v2760
    %2849 = vmatpush1.bf16.msra.mxu0 %v2759
    %2850 = vmatprep.subr.bf16.mxu0 %v2756
    %2851 = vmatpush1.bf16.msra.mxu0 %v2755
    %2852 = vmatprep.subr.bf16.mxu0 %v2752
    %2853 = vmatpush1.bf16.msra.mxu0 %v2751
    %2854 = vmatprep.subr.bf16.mxu0 %v2748
    %2855 = vmatpush1.bf16.msra.mxu0 %v2747
    %2856 = vmatprep.subr.bf16.mxu0 %v2744
    %2857 = vmatpush1.bf16.msra.mxu0 %v2743
    %2858 = vmatprep.subr.bf16.mxu0 %v2740
    %2859 = vmatpush1.bf16.msra.mxu0 %v2739
    %2860 = vmatprep.subr.bf16.mxu0 0
    %2861 = vmatpush2.bf16.msra.mxu0 0
    %2862 = vmatprep.subr.bf16.mxu0 0
    %2863 = vmatpush2.bf16.msra.mxu0 0
    %2864 = vmatprep.subr.bf16.mxu0 0
    %2865 = vmatpush2.bf16.msra.mxu0 0
    %2866 = vmatprep.subr.bf16.mxu0 0
    %2867 = vmatpush2.bf16.msra.mxu0 0
    %2868 = vmatprep.subr.bf16.mxu0 0
    %2869 = vmatpush2.bf16.msra.mxu0 0
    %2870 = vmatprep.subr.bf16.mxu0 0
    %2871 = vmatpush2.bf16.msra.mxu0 0
    %2872 = vmatprep.subr.bf16.mxu0 0
    %2873 = vmatpush2.bf16.msra.mxu0 0
    %2874 = vmatprep.subr.bf16.mxu0 0
    %2875 = vmatpush2.bf16.msra.mxu0 0
    %2876 = vmatprep.mubr.bf16.mxu0 0
    %2877 = vmatmul.mubr.bf16.gmra.mxu0 %v2585
    %v2878 = vpop.f32.mrf.mxu0
    %v2879 = vadd.f32 %v2632, %v2878
    %v2880 = vpop.f32.mrf.mxu0
    %v2881 = vadd.f32 %v2636, %v2880
    %v2882 = vpop.f32.mrf.mxu0
    %v2883 = vadd.f32 %v2632, %v2882
    %v2884 = vpop.f32.mrf.mxu0
    %v2885 = vadd.f32 %v2636, %v2884
    %2886 = vdwg.mxu0
    %v2887 = vpack.c.bf16 %v2840, %v2836
    %v2888 = vpack.c.bf16 %v2842, %v2838
    %v2889 = vpack.c.bf16 %v2883, %v2879
    %2890 = vmatprep.subr.bf16.mxu0 0
    %2891 = vmatpush1.bf16.msra.mxu0 0
    %2892 = vmatprep.subr.bf16.mxu0 0
    %2893 = vmatpush1.bf16.msra.mxu0 0
    %2894 = vmatprep.subr.bf16.mxu0 0
    %2895 = vmatpush1.bf16.msra.mxu0 0
    %2896 = vmatprep.subr.bf16.mxu0 0
    %2897 = vmatpush1.bf16.msra.mxu0 0
    %2898 = vmatprep.subr.bf16.mxu0 0
    %2899 = vmatpush1.bf16.msra.mxu0 0
    %2900 = vmatprep.subr.bf16.mxu0 0
    %2901 = vmatpush1.bf16.msra.mxu0 0
    %2902 = vmatprep.subr.bf16.mxu0 0
    %2903 = vmatpush1.bf16.msra.mxu0 0
    %2904 = vmatprep.subr.bf16.mxu0 %v2888
    %2905 = vmatpush1.bf16.msra.mxu0 %v2887
    %2906 = vmatprep.subr.bf16.mxu0 0
    %2907 = vmatpush2.bf16.msra.mxu0 0
    %2908 = vmatprep.subr.bf16.mxu0 0
    %2909 = vmatpush2.bf16.msra.mxu0 0
    %2910 = vmatprep.subr.bf16.mxu0 0
    %2911 = vmatpush2.bf16.msra.mxu0 0
    %2912 = vmatprep.subr.bf16.mxu0 0
    %2913 = vmatpush2.bf16.msra.mxu0 0
    %2914 = vmatprep.subr.bf16.mxu0 0
    %2915 = vmatpush2.bf16.msra.mxu0 0
    %2916 = vmatprep.subr.bf16.mxu0 0
    %2917 = vmatpush2.bf16.msra.mxu0 0
    %2918 = vmatprep.subr.bf16.mxu0 0
    %2919 = vmatpush2.bf16.msra.mxu0 0
    %2920 = vmatprep.subr.bf16.mxu0 0
    %2921 = vmatpush2.bf16.msra.mxu0 0
    %2922 = vmatprep.mubr.bf16.mxu0 0
    %2923 = vmatmul.mubr.bf16.gmra.mxu0 %v808
    %v2924 = vpop.f32.mrf.mxu0
    %v2925 = vadd.f32 0.0, %v2924
    %v2926 = vpop.f32.mrf.mxu0
    %v2927 = vadd.f32 0.0, %v2926
    %v2928 = vpop.f32.mrf.mxu0
    %v2929 = vadd.f32 0.0, %v2928
    %v2930 = vpop.f32.mrf.mxu0
    %v2931 = vadd.f32 0.0, %v2930
    %2932 = vmatprep.mubr.bf16.mxu0 0
    %2933 = vmatmul.mubr.bf16.gmra.mxu0 %v811
    %v2934 = vpop.f32.mrf.mxu0
    %v2935 = vadd.f32 0.0, %v2934
    %v2936 = vpop.f32.mrf.mxu0
    %v2937 = vadd.f32 0.0, %v2936
    %v2938 = vpop.f32.mrf.mxu0
    %v2939 = vadd.f32 0.0, %v2938
    %v2940 = vpop.f32.mrf.mxu0
    %v2941 = vadd.f32 0.0, %v2940
    %2942 = vmatprep.mubr.bf16.mxu0 0
    %2943 = vmatmul.mubr.bf16.gmra.mxu0 %v814
    %v2944 = vpop.f32.mrf.mxu0
    %v2945 = vadd.f32 0.0, %v2944
    %v2946 = vpop.f32.mrf.mxu0
    %v2947 = vadd.f32 0.0, %v2946
    %v2948 = vpop.f32.mrf.mxu0
    %v2949 = vadd.f32 0.0, %v2948
    %v2950 = vpop.f32.mrf.mxu0
    %v2951 = vadd.f32 0.0, %v2950
    %2952 = vmatprep.mubr.bf16.mxu0 0
    %2953 = vmatmul.mubr.bf16.gmra.mxu0 %v817
    %v2954 = vpop.f32.mrf.mxu0
    %v2955 = vadd.f32 0.0, %v2954
    %v2956 = vpop.f32.mrf.mxu0
    %v2957 = vadd.f32 0.0, %v2956
    %v2958 = vpop.f32.mrf.mxu0
    %v2959 = vadd.f32 0.0, %v2958
    %v2960 = vpop.f32.mrf.mxu0
    %v2961 = vadd.f32 0.0, %v2960
    %2962 = vdwg.mxu0
    %2963 = vmatprep.subr.bf16.mxu0 0
    %2964 = vmatpush1.bf16.msra.mxu0 0
    %2965 = vmatprep.subr.bf16.mxu0 0
    %2966 = vmatpush1.bf16.msra.mxu0 0
    %2967 = vmatprep.subr.bf16.mxu0 0
    %2968 = vmatpush1.bf16.msra.mxu0 0
    %2969 = vmatprep.subr.bf16.mxu0 0
    %2970 = vmatpush1.bf16.msra.mxu0 0
    %2971 = vmatprep.subr.bf16.mxu0 0
    %2972 = vmatpush1.bf16.msra.mxu0 0
    %2973 = vmatprep.subr.bf16.mxu0 0
    %2974 = vmatpush1.bf16.msra.mxu0 0
    %2975 = vmatprep.subr.bf16.mxu0 0
    %2976 = vmatpush1.bf16.msra.mxu0 0
    %2977 = vmatprep.subr.bf16.mxu0 0
    %2978 = vmatpush1.bf16.msra.mxu0 %v2889
    %2979 = vmatprep.subr.bf16.mxu0 0
    %2980 = vmatpush2.bf16.msra.mxu0 0
    %2981 = vmatprep.subr.bf16.mxu0 0
    %2982 = vmatpush2.bf16.msra.mxu0 0
    %2983 = vmatprep.subr.bf16.mxu0 0
    %2984 = vmatpush2.bf16.msra.mxu0 0
    %2985 = vmatprep.subr.bf16.mxu0 0
    %2986 = vmatpush2.bf16.msra.mxu0 0
    %2987 = vmatprep.subr.bf16.mxu0 0
    %2988 = vmatpush2.bf16.msra.mxu0 0
    %2989 = vmatprep.subr.bf16.mxu0 0
    %2990 = vmatpush2.bf16.msra.mxu0 0
    %2991 = vmatprep.subr.bf16.mxu0 0
    %2992 = vmatpush2.bf16.msra.mxu0 0
    %2993 = vmatprep.subr.bf16.mxu0 0
    %2994 = vmatpush2.bf16.msra.mxu0 0
    %2995 = vmatprep.mubr.bf16.mxu0 0
    %2996 = vmatmul.mubr.bf16.gmra.mxu0 %v731
    %v2997 = vpop.f32.mrf.mxu0
    %v2998 = vadd.f32 0.0, %v2997
    %v2999 = vpop.f32.mrf.mxu0
    %v3000 = vpop.f32.mrf.mxu0
    %v3001 = vadd.f32 0.0, %v3000
    %v3002 = vpop.f32.mrf.mxu0
    %3003 = vmatprep.mubr.bf16.mxu0 0
    %3004 = vmatmul.mubr.bf16.gmra.mxu0 %v734
    %v3005 = vpop.f32.mrf.mxu0
    %v3006 = vadd.f32 0.0, %v3005
    %v3007 = vpop.f32.mrf.mxu0
    %v3008 = vpop.f32.mrf.mxu0
    %v3009 = vadd.f32 0.0, %v3008
    %v3010 = vpop.f32.mrf.mxu0
    %3011 = vmatprep.mubr.bf16.mxu0 0
    %3012 = vmatmul.mubr.bf16.gmra.mxu0 %v737
    %v3013 = vpop.f32.mrf.mxu0
    %v3014 = vadd.f32 0.0, %v3013
    %v3015 = vpop.f32.mrf.mxu0
    %v3016 = vpop.f32.mrf.mxu0
    %v3017 = vadd.f32 0.0, %v3016
    %v3018 = vpop.f32.mrf.mxu0
    %3019 = vmatprep.mubr.bf16.mxu0 0
    %3020 = vmatmul.mubr.bf16.gmra.mxu0 %v740
    %v3021 = vpop.f32.mrf.mxu0
    %v3022 = vadd.f32 0.0, %v3021
    %v3023 = vpop.f32.mrf.mxu0
    %v3024 = vpop.f32.mrf.mxu0
    %v3025 = vadd.f32 0.0, %v3024
    %v3026 = vpop.f32.mrf.mxu0
    %3027 = vdwg.mxu0
    %v3028 = vadd.f32 %v2927, %v2998
    %v3029 = vadd.f32 %v2931, %v3001
    %v3030 = vadd.f32 %v2937, %v3006
    %v3031 = vadd.f32 %v2941, %v3009
    %v3032 = vadd.f32 %v2947, %v3014
    %v3033 = vadd.f32 %v2951, %v3017
    %v3034 = vadd.f32 %v2957, %v3022
    %v3035 = vadd.f32 %v2961, %v3025
    %v3036 = vadd.f32 %v3028, %v1432
    %v3037 = vadd.f32 %v3029, %v1435
    %v3038 = vadd.f32 %v3030, %v1440
    %v3039 = vadd.f32 %v3031, %v1443
    %v3040 = vadd.f32 %v3032, %v1448
    %v3041 = vadd.f32 %v3033, %v1451
    %v3042 = vadd.f32 %v3034, %v1456
    %v3043 = vadd.f32 %v3035, %v1459
    %v3044 = vxor.u32 %v3036, 2147483648
    %v3045 = vxor.u32 %v3037, 2147483648
    %v3046 = vxor.u32 %v3038, 2147483648
    %v3047 = vxor.u32 %v3039, 2147483648
    %v3048 = vxor.u32 %v3040, 2147483648
    %v3049 = vxor.u32 %v3041, 2147483648
    %v3050 = vxor.u32 %v3042, 2147483648
    %v3051 = vxor.u32 %v3043, 2147483648
    %v3052 = vmul.f32 %v3044, 1.442695
    %v3053 = vpow.pop %v3052
    %v3054 = vmul.f32 %v3045, 1.442695
    %v3055 = vpow.pop %v3054
    %v3056 = vmul.f32 %v3046, 1.442695
    %v3057 = vpow.pop %v3056
    %v3058 = vmul.f32 %v3047, 1.442695
    %v3059 = vpow.pop %v3058
    %v3060 = vmul.f32 %v3048, 1.442695
    %v3061 = vpow.pop %v3060
    %v3062 = vmul.f32 %v3049, 1.442695
    %v3063 = vpow.pop %v3062
    %v3064 = vmul.f32 %v3050, 1.442695
    %v3065 = vpow.pop %v3064
    %v3066 = vmul.f32 %v3051, 1.442695
    %v3067 = vpow.pop %v3066
    %v3068 = vadd.f32 %v3053, 1.0
    %v3069 = vadd.f32 %v3055, 1.0
    %v3070 = vadd.f32 %v3057, 1.0
    %v3071 = vadd.f32 %v3059, 1.0
    %v3072 = vadd.f32 %v3061, 1.0
    %v3073 = vadd.f32 %v3063, 1.0
    %v3074 = vadd.f32 %v3065, 1.0
    %v3075 = vadd.f32 %v3067, 1.0
    %v3076 = vrcp.pop %v3068
    %v3077 = vmul.f32 1.0, %v3076
    %v3078 = vrcp.pop %v3069
    %v3079 = vmul.f32 1.0, %v3078
    %v3080 = vrcp.pop %v3070
    %v3081 = vmul.f32 1.0, %v3080
    %v3082 = vrcp.pop %v3071
    %v3083 = vmul.f32 1.0, %v3082
    %v3084 = vrcp.pop %v3072
    %v3085 = vmul.f32 1.0, %v3084
    %v3086 = vrcp.pop %v3073
    %v3087 = vmul.f32 1.0, %v3086
    %v3088 = vrcp.pop %v3074
    %v3089 = vmul.f32 1.0, %v3088
    %v3090 = vrcp.pop %v3075
    %v3091 = vmul.f32 1.0, %v3090
    %v3092 = vmul.f32 %v3077, %v2925
    %v3093 = vmul.f32 %v3079, %v2929
    %v3094 = vmul.f32 %v3081, %v2935
    %v3095 = vmul.f32 %v3083, %v2939
    %v3096 = vmul.f32 %v3085, %v2945
    %v3097 = vmul.f32 %v3087, %v2949
    %v3098 = vmul.f32 %v3089, %v2955
    %v3099 = vmul.f32 %v3091, %v2959
    %v3100 = vpack.c.bf16 %v3093, %v3092
    %v3101 = vpack.c.bf16 %v3095, %v3094
    %v3102 = vpack.c.bf16 %v3097, %v3096
    %v3103 = vpack.c.bf16 %v3099, %v3098
    %3104 = vmatprep.subr.bf16.mxu0 0
    %3105 = vmatpush1.bf16.msra.mxu0 0
    %3106 = vmatprep.subr.bf16.mxu0 0
    %3107 = vmatpush1.bf16.msra.mxu0 0
    %3108 = vmatprep.subr.bf16.mxu0 0
    %3109 = vmatpush1.bf16.msra.mxu0 0
    %3110 = vmatprep.subr.bf16.mxu0 0
    %3111 = vmatpush1.bf16.msra.mxu0 0
    %3112 = vmatprep.subr.bf16.mxu0 0
    %3113 = vmatpush1.bf16.msra.mxu0 %v3103
    %3114 = vmatprep.subr.bf16.mxu0 0
    %3115 = vmatpush1.bf16.msra.mxu0 %v3102
    %3116 = vmatprep.subr.bf16.mxu0 0
    %3117 = vmatpush1.bf16.msra.mxu0 %v3101
    %3118 = vmatprep.subr.bf16.mxu0 0
    %3119 = vmatpush1.bf16.msra.mxu0 %v3100
    %3120 = vmatprep.subr.bf16.mxu0 0
    %3121 = vmatpush2.bf16.msra.mxu0 0
    %3122 = vmatprep.subr.bf16.mxu0 0
    %3123 = vmatpush2.bf16.msra.mxu0 0
    %3124 = vmatprep.subr.bf16.mxu0 0
    %3125 = vmatpush2.bf16.msra.mxu0 0
    %3126 = vmatprep.subr.bf16.mxu0 0
    %3127 = vmatpush2.bf16.msra.mxu0 0
    %3128 = vmatprep.subr.bf16.mxu0 0
    %3129 = vmatpush2.bf16.msra.mxu0 0
    %3130 = vmatprep.subr.bf16.mxu0 0
    %3131 = vmatpush2.bf16.msra.mxu0 0
    %3132 = vmatprep.subr.bf16.mxu0 0
    %3133 = vmatpush2.bf16.msra.mxu0 0
    %3134 = vmatprep.subr.bf16.mxu0 0
    %3135 = vmatpush2.bf16.msra.mxu0 0
    %3136 = vmatprep.mubr.bf16.mxu0 0
    %3137 = vmatmul.mubr.bf16.gmra.mxu0 %v1100
    %v3138 = vpop.f32.mrf.mxu0
    %v3139 = vadd.f32 %v2881, %v3138
    %v3140 = vpop.f32.mrf.mxu0
    %v3141 = vpop.f32.mrf.mxu0
    %v3142 = vadd.f32 %v2885, %v3141
    %v3143 = vpop.f32.mrf.mxu0
    %3144 = vdwg.mxu0
    %v3145 = vmax.f32 %v3139, 0.0
    %v3146 = vmax.f32 %v3142, 0.0
    %v3147 = vpack.c.bf16 %v3146, %v3145
    %v3149 = vsel %vm729, %v406, 0
    %v3152 = vsel %vm729, %v407, 0
    %v3155 = vsel %vm729, %v408, 0
    %v3158 = vsel %vm729, %v409, 0
    %3160 = vmatprep.subr.bf16.mxu0 0
    %3161 = vmatpush1.bf16.msra.mxu0 0
    %3162 = vmatprep.subr.bf16.mxu0 0
    %3163 = vmatpush1.bf16.msra.mxu0 0
    %3164 = vmatprep.subr.bf16.mxu0 0
    %3165 = vmatpush1.bf16.msra.mxu0 0
    %3166 = vmatprep.subr.bf16.mxu0 0
    %3167 = vmatpush1.bf16.msra.mxu0 0
    %3168 = vmatprep.subr.bf16.mxu0 0
    %3169 = vmatpush1.bf16.msra.mxu0 0
    %3170 = vmatprep.subr.bf16.mxu0 0
    %3171 = vmatpush1.bf16.msra.mxu0 0
    %3172 = vmatprep.subr.bf16.mxu0 0
    %3173 = vmatpush1.bf16.msra.mxu0 0
    %3174 = vmatprep.subr.bf16.mxu0 0
    %3175 = vmatpush1.bf16.msra.mxu0 %v3147
    %3176 = vmatprep.subr.bf16.mxu0 0
    %3177 = vmatpush2.bf16.msra.mxu0 0
    %3178 = vmatprep.subr.bf16.mxu0 0
    %3179 = vmatpush2.bf16.msra.mxu0 0
    %3180 = vmatprep.subr.bf16.mxu0 0
    %3181 = vmatpush2.bf16.msra.mxu0 0
    %3182 = vmatprep.subr.bf16.mxu0 0
    %3183 = vmatpush2.bf16.msra.mxu0 0
    %3184 = vmatprep.subr.bf16.mxu0 0
    %3185 = vmatpush2.bf16.msra.mxu0 0
    %3186 = vmatprep.subr.bf16.mxu0 0
    %3187 = vmatpush2.bf16.msra.mxu0 0
    %3188 = vmatprep.subr.bf16.mxu0 0
    %3189 = vmatpush2.bf16.msra.mxu0 0
    %3190 = vmatprep.subr.bf16.mxu0 0
    %3191 = vmatpush2.bf16.msra.mxu0 0
    %3192 = vmatprep.mubr.bf16.mxu0 0
    %3193 = vmatmul.mubr.bf16.gmra.mxu0 %v3149
    %v3194 = vpop.f32.mrf.mxu0
    %v3195 = vadd.f32 0.0, %v3194
    %v3196 = vpop.f32.mrf.mxu0
    %v3197 = vpop.f32.mrf.mxu0
    %v3198 = vadd.f32 0.0, %v3197
    %v3199 = vpop.f32.mrf.mxu0
    %3200 = vmatprep.mubr.bf16.mxu0 0
    %3201 = vmatmul.mubr.bf16.gmra.mxu0 %v3152
    %v3202 = vpop.f32.mrf.mxu0
    %v3203 = vadd.f32 0.0, %v3202
    %v3204 = vpop.f32.mrf.mxu0
    %v3205 = vpop.f32.mrf.mxu0
    %v3206 = vadd.f32 0.0, %v3205
    %v3207 = vpop.f32.mrf.mxu0
    %3208 = vmatprep.mubr.bf16.mxu0 0
    %3209 = vmatmul.mubr.bf16.gmra.mxu0 %v3155
    %v3210 = vpop.f32.mrf.mxu0
    %v3211 = vadd.f32 0.0, %v3210
    %v3212 = vpop.f32.mrf.mxu0
    %v3213 = vpop.f32.mrf.mxu0
    %v3214 = vadd.f32 0.0, %v3213
    %v3215 = vpop.f32.mrf.mxu0
    %3216 = vmatprep.mubr.bf16.mxu0 0
    %3217 = vmatmul.mubr.bf16.gmra.mxu0 %v3158
    %v3218 = vpop.f32.mrf.mxu0
    %v3219 = vadd.f32 0.0, %v3218
    %v3220 = vpop.f32.mrf.mxu0
    %v3221 = vpop.f32.mrf.mxu0
    %v3222 = vadd.f32 0.0, %v3221
    %v3223 = vpop.f32.mrf.mxu0
    %3224 = vdwg.mxu0
    %v3225 = vand.u32 2147483647, %v3195
    %v3226 = vand.u32 2147483647, %v3198
    %v3227 = vand.u32 2147483647, %v3203
    %v3228 = vand.u32 2147483647, %v3206
    %v3229 = vand.u32 2147483647, %v3211
    %v3230 = vand.u32 2147483647, %v3214
    %v3231 = vand.u32 2147483647, %v3219
    %v3232 = vand.u32 2147483647, %v3222
    %v3233 = vpack.c.bf16 %v3226, %v3225
    %v3234 = vpack.c.bf16 %v3228, %v3227
    %v3235 = vpack.c.bf16 %v3230, %v3229
    %v3236 = vpack.c.bf16 %v3232, %v3231
    %v3237 = vld [vmem:[%s15] sm:$0xf]
    %v3238 = vld [vmem:[%s15 + $0x4] sm:$0xf]
    %v3239 = vld [vmem:[%s15 + $0x8] sm:$0xf]
    %v3240 = vld [vmem:[%s15 + $0xc] sm:$0xf]
    %v3241 = vld [vmem:[%s15 + $0x10] sm:$0xf]
    %v3242 = vld [vmem:[%s15 + $0x14] sm:$0xf]
    %v3243 = vld [vmem:[%s15 + $0x18] sm:$0xf]
    %v3244 = vld [vmem:[%s15 + $0x1c] sm:$0xf]
    %v3245 = vld [vmem:[%s15 + $0x20] sm:$0xf]
    %v3246 = vld [vmem:[%s15 + $0x24] sm:$0xf]
    %v3247 = vld [vmem:[%s15 + $0x28] sm:$0xf]
    %v3248 = vld [vmem:[%s15 + $0x2c] sm:$0xf]
    %v3249 = vld [vmem:[%s15 + $0x30] sm:$0xf]
    %v3250 = vld [vmem:[%s15 + $0x34] sm:$0xf]
    %v3251 = vld [vmem:[%s15 + $0x38] sm:$0xf]
    %v3252 = vld [vmem:[%s15 + $0x3c] sm:$0xf]
    %v3253 = vld [vmem:[%s16] sm:$0x1]
    %v3255 = vlaneseq
    %v3256 = vshrl.u32 %v3255, 7
    %v3257 = vsub.s32 0, %v3256
    %v3258 = vrot.slane %v3253, %v3257
    %v3276 = vunpack.c.l.b16 %v3237
    %v3277 = vunpack.c.l.b16 %v3238
    %v3278 = vunpack.c.l.b16 %v3239
    %v3279 = vunpack.c.l.b16 %v3240
    %v3280 = vunpack.c.l.b16 %v3241
    %v3281 = vunpack.c.l.b16 %v3242
    %v3282 = vunpack.c.l.b16 %v3243
    %v3283 = vunpack.c.l.b16 %v3244
    %v3284 = vunpack.c.l.b16 %v3245
    %v3285 = vunpack.c.l.b16 %v3246
    %v3286 = vunpack.c.l.b16 %v3247
    %v3287 = vunpack.c.l.b16 %v3248
    %v3288 = vunpack.c.l.b16 %v3249
    %v3289 = vunpack.c.l.b16 %v3250
    %v3290 = vunpack.c.l.b16 %v3251
    %v3291 = vunpack.c.l.b16 %v3252
    %v3292 = vpack.c.b16 %v3277, %v3276
    %v3293 = vpack.c.b16 %v3279, %v3278
    %v3294 = vpack.c.b16 %v3281, %v3280
    %v3295 = vpack.c.b16 %v3283, %v3282
    %v3296 = vpack.c.b16 %v3285, %v3284
    %v3297 = vpack.c.b16 %v3287, %v3286
    %v3298 = vpack.c.b16 %v3289, %v3288
    %v3299 = vpack.c.b16 %v3291, %v3290
    %3308 = vmatprep.subr.bf16.mxu0 0
    %3309 = vmatpush1.bf16.msra.mxu0 %v3299
    %3310 = vmatprep.subr.bf16.mxu0 0
    %3311 = vmatpush1.bf16.msra.mxu0 %v3298
    %3312 = vmatprep.subr.bf16.mxu0 0
    %3313 = vmatpush1.bf16.msra.mxu0 %v3297
    %3314 = vmatprep.subr.bf16.mxu0 0
    %3315 = vmatpush1.bf16.msra.mxu0 %v3296
    %3316 = vmatprep.subr.bf16.mxu0 0
    %3317 = vmatpush1.bf16.msra.mxu0 %v3295
    %3318 = vmatprep.subr.bf16.mxu0 0
    %3319 = vmatpush1.bf16.msra.mxu0 %v3294
    %3320 = vmatprep.subr.bf16.mxu0 0
    %3321 = vmatpush1.bf16.msra.mxu0 %v3293
    %3322 = vmatprep.subr.bf16.mxu0 0
    %3323 = vmatpush1.bf16.msra.mxu0 %v3292
    %3324 = vmatprep.subr.bf16.mxu0 0
    %3325 = vmatpush2.bf16.msra.mxu0 0
    %3326 = vmatprep.subr.bf16.mxu0 0
    %3327 = vmatpush2.bf16.msra.mxu0 0
    %3328 = vmatprep.subr.bf16.mxu0 0
    %3329 = vmatpush2.bf16.msra.mxu0 0
    %3330 = vmatprep.subr.bf16.mxu0 0
    %3331 = vmatpush2.bf16.msra.mxu0 0
    %3332 = vmatprep.subr.bf16.mxu0 0
    %3333 = vmatpush2.bf16.msra.mxu0 0
    %3334 = vmatprep.subr.bf16.mxu0 0
    %3335 = vmatpush2.bf16.msra.mxu0 0
    %3336 = vmatprep.subr.bf16.mxu0 0
    %3337 = vmatpush2.bf16.msra.mxu0 0
    %3338 = vmatprep.subr.bf16.mxu0 0
    %3339 = vmatpush2.bf16.msra.mxu0 0
    %3340 = vmatprep.mubr.bf16.mxu0 0
    %3341 = vmatmul.mubr.bf16.gmra.mxu0 %v3233
    %v3342 = vpop.f32.mrf.mxu0
    %v3343 = vadd.f32 %v3258, %v3342
    %v3344 = vpop.f32.mrf.mxu0
    %v3345 = vpop.f32.mrf.mxu0
    %v3346 = vadd.f32 %v3258, %v3345
    %v3347 = vpop.f32.mrf.mxu0
    %3348 = vmatprep.mubr.bf16.mxu0 0
    %3349 = vmatmul.mubr.bf16.gmra.mxu0 %v3234
    %v3350 = vpop.f32.mrf.mxu0
    %v3351 = vadd.f32 %v3258, %v3350
    %v3352 = vpop.f32.mrf.mxu0
    %v3353 = vpop.f32.mrf.mxu0
    %v3354 = vadd.f32 %v3258, %v3353
    %v3355 = vpop.f32.mrf.mxu0
    %3356 = vmatprep.mubr.bf16.mxu0 0
    %3357 = vmatmul.mubr.bf16.gmra.mxu0 %v3235
    %v3358 = vpop.f32.mrf.mxu0
    %v3359 = vadd.f32 %v3258, %v3358
    %v3360 = vpop.f32.mrf.mxu0
    %v3361 = vpop.f32.mrf.mxu0
    %v3362 = vadd.f32 %v3258, %v3361
    %v3363 = vpop.f32.mrf.mxu0
    %3364 = vmatprep.mubr.bf16.mxu0 0
    %3365 = vmatmul.mubr.bf16.gmra.mxu0 %v3236
    %v3366 = vpop.f32.mrf.mxu0
    %v3367 = vadd.f32 %v3258, %v3366
    %v3368 = vpop.f32.mrf.mxu0
    %v3369 = vpop.f32.mrf.mxu0
    %v3370 = vadd.f32 %v3258, %v3369
    %v3371 = vpop.f32.mrf.mxu0
    %3372 = vdwg.mxu0
    %v3373 = vmax.f32 %v3343, 0.0
    %v3374 = vmax.f32 %v3346, 0.0
    %v3375 = vmax.f32 %v3351, 0.0
    %v3376 = vmax.f32 %v3354, 0.0
    %v3377 = vmax.f32 %v3359, 0.0
    %v3378 = vmax.f32 %v3362, 0.0
    %v3379 = vmax.f32 %v3367, 0.0
    %v3380 = vmax.f32 %v3370, 0.0
    %v3381 = vpack.c.bf16 %v3374, %v3373
    %v3382 = vpack.c.bf16 %v3376, %v3375
    %v3383 = vpack.c.bf16 %v3378, %v3377
    %v3384 = vpack.c.bf16 %v3380, %v3379
    %v3385 = vld [vmem:[#allocation6] sm:$0xf]
    %v3386 = vld [vmem:[#allocation6 + $0x4] sm:$0xf]
    %v3387 = vld [vmem:[#allocation6 + $0x8] sm:$0xf]
    %v3388 = vld [vmem:[#allocation6 + $0xc] sm:$0xf]
    %v3389 = vld [vmem:[#allocation6 + $0x10] sm:$0xf]
    %v3390 = vld [vmem:[#allocation6 + $0x14] sm:$0xf]
    %v3391 = vld [vmem:[#allocation6 + $0x18] sm:$0xf]
    %v3392 = vld [vmem:[#allocation6 + $0x1c] sm:$0xf]
    %v3393 = vld [vmem:[#allocation6 + $0x20] sm:$0xf]
    %v3394 = vld [vmem:[#allocation6 + $0x24] sm:$0xf]
    %v3395 = vld [vmem:[#allocation6 + $0x28] sm:$0xf]
    %v3396 = vld [vmem:[#allocation6 + $0x2c] sm:$0xf]
    %v3397 = vld [vmem:[#allocation6 + $0x30] sm:$0xf]
    %v3398 = vld [vmem:[#allocation6 + $0x34] sm:$0xf]
    %v3399 = vld [vmem:[#allocation6 + $0x38] sm:$0xf]
    %v3400 = vld [vmem:[#allocation6 + $0x3c] sm:$0xf]
    %v3401 = vld [vmem:[%s18] sm:$0x1]
    %v3403 = vlaneseq
    %v3404 = vshrl.u32 %v3403, 7
    %v3405 = vsub.s32 0, %v3404
    %v3406 = vrot.slane %v3401, %v3405
    %v3424 = vunpack.c.l.b16 %v3385
    %v3425 = vunpack.c.l.b16 %v3386
    %v3426 = vunpack.c.l.b16 %v3387
    %v3427 = vunpack.c.l.b16 %v3388
    %v3428 = vunpack.c.l.b16 %v3389
    %v3429 = vunpack.c.l.b16 %v3390
    %v3430 = vunpack.c.l.b16 %v3391
    %v3431 = vunpack.c.l.b16 %v3392
    %v3432 = vunpack.c.l.b16 %v3393
    %v3433 = vunpack.c.l.b16 %v3394
    %v3434 = vunpack.c.l.b16 %v3395
    %v3435 = vunpack.c.l.b16 %v3396
    %v3436 = vunpack.c.l.b16 %v3397
    %v3437 = vunpack.c.l.b16 %v3398
    %v3438 = vunpack.c.l.b16 %v3399
    %v3439 = vunpack.c.l.b16 %v3400
    %v3440 = vpack.c.b16 %v3425, %v3424
    %v3441 = vpack.c.b16 %v3427, %v3426
    %v3442 = vpack.c.b16 %v3429, %v3428
    %v3443 = vpack.c.b16 %v3431, %v3430
    %v3444 = vpack.c.b16 %v3433, %v3432
    %v3445 = vpack.c.b16 %v3435, %v3434
    %v3446 = vpack.c.b16 %v3437, %v3436
    %v3447 = vpack.c.b16 %v3439, %v3438
    %3456 = vmatprep.subr.bf16.mxu0 0
    %3457 = vmatpush1.bf16.msra.mxu0 %v3447
    %3458 = vmatprep.subr.bf16.mxu0 0
    %3459 = vmatpush1.bf16.msra.mxu0 %v3446
    %3460 = vmatprep.subr.bf16.mxu0 0
    %3461 = vmatpush1.bf16.msra.mxu0 %v3445
    %3462 = vmatprep.subr.bf16.mxu0 0
    %3463 = vmatpush1.bf16.msra.mxu0 %v3444
    %3464 = vmatprep.subr.bf16.mxu0 0
    %3465 = vmatpush1.bf16.msra.mxu0 %v3443
    %3466 = vmatprep.subr.bf16.mxu0 0
    %3467 = vmatpush1.bf16.msra.mxu0 %v3442
    %3468 = vmatprep.subr.bf16.mxu0 0
    %3469 = vmatpush1.bf16.msra.mxu0 %v3441
    %3470 = vmatprep.subr.bf16.mxu0 0
    %3471 = vmatpush1.bf16.msra.mxu0 %v3440
    %3472 = vmatprep.subr.bf16.mxu0 0
    %3473 = vmatpush2.bf16.msra.mxu0 0
    %3474 = vmatprep.subr.bf16.mxu0 0
    %3475 = vmatpush2.bf16.msra.mxu0 0
    %3476 = vmatprep.subr.bf16.mxu0 0
    %3477 = vmatpush2.bf16.msra.mxu0 0
    %3478 = vmatprep.subr.bf16.mxu0 0
    %3479 = vmatpush2.bf16.msra.mxu0 0
    %3480 = vmatprep.subr.bf16.mxu0 0
    %3481 = vmatpush2.bf16.msra.mxu0 0
    %3482 = vmatprep.subr.bf16.mxu0 0
    %3483 = vmatpush2.bf16.msra.mxu0 0
    %3484 = vmatprep.subr.bf16.mxu0 0
    %3485 = vmatpush2.bf16.msra.mxu0 0
    %3486 = vmatprep.subr.bf16.mxu0 0
    %3487 = vmatpush2.bf16.msra.mxu0 0
    %3488 = vmatprep.mubr.bf16.mxu0 0
    %3489 = vmatmul.mubr.bf16.gmra.mxu0 %v3381
    %v3490 = vpop.f32.mrf.mxu0
    %v3491 = vadd.f32 %v3406, %v3490
    %v3492 = vpop.f32.mrf.mxu0
    %v3493 = vpop.f32.mrf.mxu0
    %v3494 = vadd.f32 %v3406, %v3493
    %v3495 = vpop.f32.mrf.mxu0
    %3496 = vmatprep.mubr.bf16.mxu0 0
    %3497 = vmatmul.mubr.bf16.gmra.mxu0 %v3382
    %v3498 = vpop.f32.mrf.mxu0
    %v3499 = vadd.f32 %v3406, %v3498
    %v3500 = vpop.f32.mrf.mxu0
    %v3501 = vpop.f32.mrf.mxu0
    %v3502 = vadd.f32 %v3406, %v3501
    %v3503 = vpop.f32.mrf.mxu0
    %3504 = vmatprep.mubr.bf16.mxu0 0
    %3505 = vmatmul.mubr.bf16.gmra.mxu0 %v3383
    %v3506 = vpop.f32.mrf.mxu0
    %v3507 = vadd.f32 %v3406, %v3506
    %v3508 = vpop.f32.mrf.mxu0
    %v3509 = vpop.f32.mrf.mxu0
    %v3510 = vadd.f32 %v3406, %v3509
    %v3511 = vpop.f32.mrf.mxu0
    %3512 = vmatprep.mubr.bf16.mxu0 0
    %3513 = vmatmul.mubr.bf16.gmra.mxu0 %v3384
    %v3514 = vpop.f32.mrf.mxu0
    %v3515 = vadd.f32 %v3406, %v3514
    %v3516 = vpop.f32.mrf.mxu0
    %v3517 = vpop.f32.mrf.mxu0
    %v3518 = vadd.f32 %v3406, %v3517
    %v3519 = vpop.f32.mrf.mxu0
    %3520 = vdwg.mxu0
    %3521 = vst [vmem:[%s19] sm:$0xff] %v3491
    %3522 = vst [vmem:[%s19 + $0x8] sm:$0xff] %v3494
    %3523 = vst [vmem:[%s19 + $0x10] sm:$0xff] %v3499
    %3524 = vst [vmem:[%s19 + $0x18] sm:$0xff] %v3502
    %3525 = vst [vmem:[%s19 + $0x20] sm:$0xff] %v3507
    %3526 = vst [vmem:[%s19 + $0x28] sm:$0xff] %v3510
    %3527 = vst [vmem:[%s19 + $0x30] sm:$0xff] %v3515
    %3528 = vst [vmem:[%s19 + $0x38] sm:$0xff] %v3518
    // Predicated region
    $region90: #{tspgnn_forward.1} parent=1 // pred_check
      _
    $region91: #{tspgnn_forward.1} parent=1 // pred_check_branch
      %3530 = sbr.rel (0) target = $region93
    $region92: #{tspgnn_forward.1} parent=1 // pred_region
      _
    $region93: #{tspgnn_forward.1} parent=1 // pred_fallthru
      _
    // Predicated region
    $region94: #{tspgnn_forward.1} parent=1 // pred_check
      _
    $region95: #{tspgnn_forward.1} parent=1 // pred_check_branch
      %3532 = sbr.rel (0) target = $region97
    $region96: #{tspgnn_forward.1} parent=1 // pred_region
      _
    $region97: #{tspgnn_forward.1} parent=1 // pred_fallthru
      _
    %3533 = vsyncpa [#allocation3], 1
    %3534 = vsyncpa [#allocation5], 1

</llo_original>
